<compile_context>
chip_gen: v6e
topology: v6e:2x2x1
jax: 0.10.0
libtpu: 0.0.40
codegen_flags: <defaults>
</compile_context>

<pallas_src>
import math

import jax
import jax.numpy as jnp
from jax.experimental import pallas as pl
from jax.experimental.pallas import tpu as pltpu

# ---------------- small synthetic LayoutLMv2 configuration ----------------
B = 2                # batch
L_TEXT = 8           # text sequence length
GH, GW = 4, 4        # visual feature-map grid (real model uses 7x7)
V = GH * GW          # number of visual tokens
S = L_TEXT + V       # total (logical) sequence length = 24
H = 48               # logical hidden size
NH = 4               # attention heads
HD = H // NH         # logical head dim = 12
INTER = 96           # logical FFN intermediate size
NUM_LAYERS = 2
VOCAB = 100          # == `embedding_size` after resize_token_embeddings
MAX_POS = 64
MAX_2D = 1024        # 2-D coordinate embedding table size (coords in [0, 1000])
COORD = H // 6       # coordinate_size == shape_size, 6 * COORD == H
REL_POS_BINS, MAX_REL_POS = 32, 128
REL_2D_BINS, MAX_REL_2D = 64, 256
IMG_C, IMG_HW = 3, 16
LN_EPS = 1e-12

# lane/sublane-dense padded sizes used inside the fused Pallas kernel
S_PAD = 32           # per-batch sequence padded to a multiple of 8 sublanes
H_PAD = 128          # hidden padded to one full lane (128)
I_PAD = 128          # FFN intermediate padded to one full lane
HD_PAD = H_PAD // NH # 32-wide per-head slot (12 real + 20 zero)
BS = B * S_PAD       # collapsed (batch-major) token rows carried in VMEM


# ---------------------------- in-kernel helpers ----------------------------
def _masked_layernorm(x, g, b, fmask):
    """LayerNorm over the first H (real) features of a zero-padded row."""
    mu = jnp.sum(x * fmask, axis=-1, keepdims=True) * (1.0 / H)
    d = (x - mu) * fmask
    var = jnp.sum(d * d, axis=-1, keepdims=True) * (1.0 / H)
    return d * jax.lax.rsqrt(var + LN_EPS) * g + b


def _gelu(x):
    # TODO(synk): HF "gelu" is the exact erf form; tanh approximation used here
    # for Mosaic-safe lowering (difference is ~1e-3 relative).
    c = math.sqrt(2.0 / math.pi)
    return 0.5 * x * (1.0 + jnp.tanh(c * (x + 0.044715 * x * x * x)))


# ------------------------------ fused Pallas kernel ------------------------------
def encoder_kernel(emb_ref, ln0g_ref, ln0b_ref, bias_ref,
                   wqkv_ref, bqkv_ref, wo_ref, bo_ref,
                   ln1g_ref, ln1b_ref, w1_ref, fb1_ref, w2_ref, fb2_ref,
                   ln2g_ref, ln2b_ref, wp_ref, bp_ref,
                   hid_ref, pool_ref):
    """Embeddings-LN + all encoder layers + pooler, whole batch per step.

    grid = (NUM_LAYERS,).  The (B*S_PAD, H_PAD) hidden state lives in the
    resident output block (index map constant along the 'arbitrary' layer
    axis), so it stays in VMEM across layers and is written to HBM once.
    """
    layer = pl.program_id(0)
    last = pl.num_programs(0) - 1

    col = jax.lax.broadcasted_iota(jnp.int32, (1, H_PAD), 1)
    fmask = (col < H).astype(jnp.float32)          # real-feature mask (1, H_PAD)

    # layer 0: embeddings LayerNorm straight into the live value (no VMEM
    # store -> reload round trip); later layers read the resident hidden state.
    x = jax.lax.cond(
        layer == 0,
        lambda: _masked_layernorm(emb_ref[...], ln0g_ref[...], ln0b_ref[...], fmask),
        lambda: hid_ref[...])                       # (BS, H_PAD) f32, pad cols == 0

    # ---- fused lane-dense QKV projection: (BS,128) @ (128,384), bf16 MXU ----
    x16 = x.astype(jnp.bfloat16)
    qkv = (jnp.dot(x16, wqkv_ref[0], preferred_element_type=jnp.float32)
           + bqkv_ref[0])                           # f32 (BS, 3*H_PAD)
    q = qkv[:, 0:H_PAD]
    k = qkv[:, H_PAD:2 * H_PAD]
    v = qkv[:, 2 * H_PAD:3 * H_PAD]

    # bias: (NH, BS, BS), rel-1D + rel-2D + attention mask folded on the host;
    # block-diagonal over the batch (-10000 on cross-batch blocks) so one
    # matmul / softmax chain per head covers the whole batch.
    bias = bias_ref[...]
    scale = 1.0 / math.sqrt(HD)
    wo = wo_ref[0]                                  # (H_PAD, H_PAD) bf16, head-slot rows

    acc = jnp.zeros((BS, H_PAD), jnp.float32)
    for h in range(NH):                             # static unroll over heads
        sl = slice(h * HD_PAD, (h + 1) * HD_PAD)    # 32-wide head slot (12 real)
        qh = q[:, sl].astype(jnp.bfloat16)
        kh = k[:, sl].astype(jnp.bfloat16)
        vh = v[:, sl].astype(jnp.bfloat16)
        s = jax.lax.dot_general(qh, kh, (((1,), (1,)), ((), ())),
                                preferred_element_type=jnp.float32) * scale
        s = s + bias[h]
        s = s - jnp.max(s, axis=-1, keepdims=True)
        p = jnp.exp(s)
        p = p * pl.reciprocal(jnp.sum(p, axis=-1, keepdims=True), approx=True)
        ctx = jnp.dot(p.astype(jnp.bfloat16), vh,
                      preferred_element_type=jnp.float32)          # (BS, HD_PAD)
        # accumulate straight into the output projection (no ctx concat)
        acc = acc + jnp.dot(ctx.astype(jnp.bfloat16), wo[sl, :],
                            preferred_element_type=jnp.float32)
    attn = acc + bo_ref[0]
    y = _masked_layernorm(attn + x, ln1g_ref[0], ln1b_ref[0], fmask)

    # ---- FFN (bf16 MXU, f32 accumulate) ----
    # NOTE: at production shapes (H=768, INTER=3072) chunk the intermediate
    # dim over an inner loop / grid axis and use bf16 everywhere so the
    # per-layer weight set fits v7x's 64 MiB VMEM.
    f = _gelu(jnp.dot(y.astype(jnp.bfloat16), w1_ref[0],
                      preferred_element_type=jnp.float32) + fb1_ref[0])
    f = (jnp.dot(f.astype(jnp.bfloat16), w2_ref[0],
                 preferred_element_type=jnp.float32) + fb2_ref[0])
    new_h = _masked_layernorm(f + y, ln2g_ref[0], ln2b_ref[0], fmask)
    hid_ref[...] = new_h

    # ---- last layer: pooler (dense + tanh) on the CLS rows only ----
    @pl.when(layer == last)
    def _():
        cls = jnp.concatenate(
            [new_h[b * S_PAD:b * S_PAD + 8, :] for b in range(B)], axis=0)  # (B*8, 128)
        pooled = jnp.tanh(
            jnp.dot(cls.astype(jnp.bfloat16), wp_ref[...],
                    preferred_element_type=jnp.float32) + bp_ref[...])
        pool_ref[...] = pooled


def fused_encoder(emb_flat, bias_bd, kp):
    def const_spec(shape):
        nd = len(shape)
        return pl.BlockSpec(tuple(shape), lambda l, _n=nd: (0,) * _n)

    def layer_spec(shape):
        nd = len(shape)
        return pl.BlockSpec((1,) + tuple(shape[1:]),
                            lambda l, _n=nd: (l,) + (0,) * (_n - 1))

    layer_names = ("wqkv", "bqkv", "wo", "bo", "ln1_g", "ln1_b",
                   "w1", "fb1", "w2", "fb2", "ln2_g", "ln2_b")
    layer_args = [kp[n] for n in layer_names]

    in_specs = ([const_spec(emb_flat.shape),
                 const_spec(kp["ln0_g"].shape), const_spec(kp["ln0_b"].shape),
                 const_spec(bias_bd.shape)]
                + [layer_spec(a.shape) for a in layer_args]
                + [const_spec(kp["pool_w"].shape), const_spec(kp["pool_b"].shape)])

    out_shape = (jax.ShapeDtypeStruct((BS, H_PAD), jnp.float32),
                 jax.ShapeDtypeStruct((B * 8, H_PAD), jnp.float32))
    out_specs = (pl.BlockSpec((BS, H_PAD), lambda l: (0, 0)),
                 pl.BlockSpec((B * 8, H_PAD), lambda l: (0, 0)))

    # NOTE: at production shapes (S~561, NH=12) the (NH, B*S, B*S) resident
    # bias must be replaced by a per-batch, key-block-tiled (flash-style) bias
    # and vmem_limit_bytes tuned with headroom under the chip's VMEM.
    return pl.pallas_call(
        encoder_kernel,
        out_shape=out_shape,
        grid=(NUM_LAYERS,),
        in_specs=in_specs,
        out_specs=out_specs,
        compiler_params=pltpu.CompilerParams(
            dimension_semantics=("arbitrary",),
            vmem_limit_bytes=32 * 1024 * 1024),
    )(emb_flat, kp["ln0_g"], kp["ln0_b"], bias_bd,
      *layer_args, kp["pool_w"], kp["pool_b"])


# ------------------------------- JAX-side glue -------------------------------
def rel_bucket(rel, num_buckets, max_distance):
    """HF LayoutLMv2 relative_position_bucket (bidirectional=True)."""
    nb = num_buckets // 2
    ret = (rel > 0).astype(jnp.int32) * nb
    n = jnp.abs(rel)
    max_exact = nb // 2
    is_small = n < max_exact
    val_if_large = max_exact + (
        jnp.log(jnp.maximum(n, 1).astype(jnp.float32) / max_exact)
        / math.log(max_distance / max_exact) * (nb - max_exact)
    ).astype(jnp.int32)
    val_if_large = jnp.minimum(val_if_large, nb - 1)
    return ret + jnp.where(is_small, n, val_if_large)


def init_params(key):
    def nrm(k, shape, scale=0.02):
        return jax.random.normal(k, shape, jnp.float32) * scale

    keys = iter(jax.random.split(key, 128))
    p = {
        "word_emb": nrm(next(keys), (VOCAB, H)),
        "pos_emb": nrm(next(keys), (MAX_POS, H)),
        "x_emb": nrm(next(keys), (MAX_2D, COORD)),
        "y_emb": nrm(next(keys), (MAX_2D, COORD)),
        "h_emb": nrm(next(keys), (MAX_2D, COORD)),
        "w_emb": nrm(next(keys), (MAX_2D, COORD)),
        "tok_emb": nrm(next(keys), (2, H)),
        "emb_ln_g": jnp.ones((1, H)), "emb_ln_b": jnp.zeros((1, H)),
        "vis_proj_w": nrm(next(keys), (IMG_C, H)),
        "vis_proj_b": jnp.zeros((1, H)),
        "vis_ln_g": jnp.ones((1, H)), "vis_ln_b": jnp.zeros((1, H)),
        "rel_pos_tbl": nrm(next(keys), (REL_POS_BINS, NH)),
        "rel_x_tbl": nrm(next(keys), (REL_2D_BINS, NH)),
        "rel_y_tbl": nrm(next(keys), (REL_2D_BINS, NH)),
        "pool_w": nrm(next(keys), (H, H)),
        "pool_b": jnp.zeros((1, H)),
    }
    layers = []
    for _ in range(NUM_LAYERS):
        layers.append((
            nrm(next(keys), (H, H)), jnp.zeros((1, H)),          # Wq, bq
            nrm(next(keys), (H, H)), jnp.zeros((1, H)),          # Wk, bk
            nrm(next(keys), (H, H)), jnp.zeros((1, H)),          # Wv, bv
            nrm(next(keys), (H, H)), jnp.zeros((1, H)),          # Wo, bo
            jnp.ones((1, H)), jnp.zeros((1, H)),                 # LN1
            nrm(next(keys), (H, INTER)), jnp.zeros((1, INTER)),  # FFN in
            nrm(next(keys), (INTER, H)), jnp.zeros((1, H)),      # FFN out
            jnp.ones((1, H)), jnp.zeros((1, H)),                 # LN2
        ))
    p["layers"] = layers
    return p


# ------------------------- weight padding / packing --------------------------
def _pad2(a, r, c):
    return jnp.pad(a, ((0, r - a.shape[0]), (0, c - a.shape[1])))


def _pack_head_cols(w):
    """(H,H) projection, output heads packed into 32-wide lane slots."""
    w = w.reshape(H, NH, HD)
    w = jnp.pad(w, ((0, H_PAD - H), (0, 0), (0, HD_PAD - HD)))
    return w.reshape(H_PAD, H_PAD)


def _pack_head_cols_bias(b):
    b = b.reshape(1, NH, HD)
    b = jnp.pad(b, ((0, 0), (0, 0), (0, HD_PAD - HD)))
    return b.reshape(1, H_PAD)


def _pack_head_rows(w):
    """(H,H) output projection, rows rearranged to the 32-wide head slots."""
    w = w.reshape(NH, HD, H)
    w = jnp.pad(w, ((0, 0), (0, HD_PAD - HD), (0, H_PAD - H)))
    return w.reshape(H_PAD, H_PAD)


def prepare_params(p):
    """Zero-pad / stack weights once; matmul operands cast to bf16."""
    kp = dict(p)

    # per-row gamma/beta for the fused embeddings LayerNorm (text rows use the
    # text LN params, visual rows the visual LN params), tiled over the batch.
    eg = _pad2(p["emb_ln_g"], 1, H_PAD)[0]
    eb = _pad2(p["emb_ln_b"], 1, H_PAD)[0]
    vg = _pad2(p["vis_ln_g"], 1, H_PAD)[0]
    vb = _pad2(p["vis_ln_b"], 1, H_PAD)[0]
    ln0_g = jnp.zeros((S_PAD, H_PAD), jnp.float32).at[:L_TEXT].set(eg).at[L_TEXT:S].set(vg)
    ln0_b = jnp.zeros((S_PAD, H_PAD), jnp.float32).at[:L_TEXT].set(eb).at[L_TEXT:S].set(vb)
    kp["ln0_g"] = jnp.tile(ln0_g, (B, 1))          # (B*S_PAD, H_PAD)
    kp["ln0_b"] = jnp.tile(ln0_b, (B, 1))

    # batch-invariant relative 1-D position bias (positions are fixed);
    # folded into the per-forward bias tensor on the host (no separate input).
    pos_full = jnp.concatenate([jnp.arange(L_TEXT), jnp.arange(V)])
    rel_mat = pos_full[None, :] - pos_full[:, None]
    rel_pos = p["rel_pos_tbl"][rel_bucket(rel_mat, REL_POS_BINS, MAX_REL_POS)]
    kp["rel1d"] = jnp.transpose(rel_pos, (2, 0, 1))                 # (NH, S, S)

    # stacked, zero-padded per-layer weights (layer axis first); bf16 operands
    stk = {k: [] for k in ("wqkv", "bqkv", "wo", "bo", "ln1_g", "ln1_b",
                           "w1", "fb1", "w2", "fb2", "ln2_g", "ln2_b")}
    for (wq, bq, wk, bk, wv, bv, wo, bo,
         g1, be1, w1, b1, w2, b2, g2, be2) in p["layers"]:
        stk["wqkv"].append(jnp.concatenate(
            [_pack_head_cols(wq), _pack_head_cols(wk), _pack_head_cols(wv)], axis=1))
        stk["bqkv"].append(jnp.concatenate(
            [_pack_head_cols_bias(bq), _pack_head_cols_bias(bk),
             _pack_head_cols_bias(bv)], axis=1))
        stk["wo"].append(_pack_head_rows(wo))
        stk["bo"].append(_pad2(bo, 1, H_PAD))
        stk["ln1_g"].append(_pad2(g1, 1, H_PAD))
        stk["ln1_b"].append(_pad2(be1, 1, H_PAD))
        stk["w1"].append(_pad2(w1, H_PAD, I_PAD))
        stk["fb1"].append(_pad2(b1, 1, I_PAD))
        stk["w2"].append(_pad2(w2, I_PAD, H_PAD))
        stk["fb2"].append(_pad2(b2, 1, H_PAD))
        stk["ln2_g"].append(_pad2(g2, 1, H_PAD))
        stk["ln2_b"].append(_pad2(be2, 1, H_PAD))
    for name, lst in stk.items():
        kp[name] = jnp.stack(lst, axis=0)
    for name in ("wqkv", "wo", "w1", "w2"):
        kp[name] = kp[name].astype(jnp.bfloat16)

    kp["pool_w"] = _pad2(p["pool_w"], H_PAD, H_PAD).astype(jnp.bfloat16)
    kp["pool_b"] = _pad2(p["pool_b"], 1, H_PAD)
    return kp


def layoutlmv2_forward(pp, input_ids, positions, attention_mask, image):
    """Returns (pooler_output (B,H), last_hidden_state (B,S,H))."""

    def spatial_emb(bbox):
        x0, y0, x1, y1 = bbox[..., 0], bbox[..., 1], bbox[..., 2], bbox[..., 3]
        return jnp.concatenate([
            pp["x_emb"][x0], pp["y_emb"][y0],
            pp["x_emb"][x1], pp["y_emb"][y1],
            pp["h_emb"][y1 - y0], pp["w_emb"][x1 - x0]], axis=-1)

    # ----- text embeddings (word + 1D pos + 2D spatial + token type) -----
    pos_ids_text = jnp.arange(L_TEXT)
    text_emb = (pp["word_emb"][input_ids]
                + pp["pos_emb"][pos_ids_text][None]
                + spatial_emb(positions)
                + pp["tok_emb"][0][None, None])

    # ----- visual embeddings -----
    # TODO(synk): pretrained ResNeXt101-FPN visual backbone replaced by a
    # deterministic GHxGW average pool + linear projection.
    feat = image.reshape(B, IMG_C, GH, IMG_HW // GH, GW, IMG_HW // GW).mean(axis=(3, 5))
    feat = feat.transpose(0, 2, 3, 1).reshape(B, V, IMG_C)            # (B, V, C)
    vis = feat @ pp["vis_proj_w"] + pp["vis_proj_b"]                  # (B, V, H)

    vx = (jnp.arange(GW + 1) * 1000) // GW
    vy = (jnp.arange(GH + 1) * 1000) // GH
    vis_bbox = jnp.stack([jnp.tile(vx[:-1], GH), jnp.repeat(vy[:-1], GW),
                          jnp.tile(vx[1:], GH), jnp.repeat(vy[1:], GW)],
                         axis=-1).astype(jnp.int32)                   # (V, 4)
    vis_bbox_b = jnp.broadcast_to(vis_bbox[None], (B, V, 4))

    vis_emb = vis + pp["pos_emb"][jnp.arange(V)][None] + spatial_emb(vis_bbox_b)

    # pre-LayerNorm embeddings, zero-padded & flattened to (B*S_PAD, H_PAD)
    emb = jnp.concatenate([text_emb, vis_emb], axis=1)                # (B, S, H)
    emb_flat = jnp.pad(emb, ((0, 0), (0, S_PAD - S), (0, H_PAD - H))
                       ).reshape(BS, H_PAD)

    # ----- attention bias: rel-1D + rel-2D spatial + attention mask, -----
    # ----- assembled block-diagonally over the batch (cross-batch = -1e4) ---
    full_bbox = jnp.concatenate([positions, vis_bbox_b], axis=1)      # (B, S, 4)
    full_mask = jnp.concatenate(
        [attention_mask.astype(jnp.float32), jnp.ones((B, V), jnp.float32)], axis=1)
    mask_pad = jnp.pad(full_mask, ((0, 0), (0, S_PAD - S)))           # pad tokens masked
    ext_mask = (1.0 - mask_pad) * -10000.0                            # (B, S_PAD)

    cx, cy = full_bbox[:, :, 0], full_bbox[:, :, 3]
    bias_x = pp["rel_x_tbl"][rel_bucket(cx[:, None, :] - cx[:, :, None],
                                        REL_2D_BINS, MAX_REL_2D)]
    bias_y = pp["rel_y_tbl"][rel_bucket(cy[:, None, :] - cy[:, :, None],
                                        REL_2D_BINS, MAX_REL_2D)]
    rel_2d = jnp.transpose(bias_x + bias_y, (0, 3, 1, 2))             # (B, NH, S, S)
    bias_b = pp["rel1d"][None] + rel_2d                               # (B, NH, S, S)
    bias_b = (jnp.pad(bias_b, ((0, 0), (0, 0), (0, S_PAD - S), (0, S_PAD - S)))
              + ext_mask[:, None, None, :]).astype(jnp.float32)       # (B, NH, S_PAD, S_PAD)

    bias_bd = jnp.full((NH, BS, BS), -10000.0, jnp.float32)
    for b in range(B):
        bias_bd = bias_bd.at[:, b * S_PAD:(b + 1) * S_PAD,
                             b * S_PAD:(b + 1) * S_PAD].set(bias_b[b])

    # ----- fused encoder (embeddings-LN + all layers + pooler) -----
    hid_flat, pooled_pad = fused_encoder(emb_flat, bias_bd, pp)
    last_hidden = hid_flat.reshape(B, S_PAD, H_PAD)[:, :S, :H]
    pooled = pooled_pad.reshape(B, 8, H_PAD)[:, 0, :H]
    return pooled, last_hidden


# ----------------------------------- main -----------------------------------
if __name__ == "__main__":
    key = jax.random.PRNGKey(0)
    pk, ik, bk1, bk2, bk3, bk4, imk = jax.random.split(key, 7)
    params = init_params(pk)
    packed = prepare_params(params)

    input_ids = jax.random.randint(ik, (B, L_TEXT), 0, VOCAB, dtype=jnp.int32)
    x0 = jax.random.randint(bk1, (B, L_TEXT), 0, 500, dtype=jnp.int32)
    y0 = jax.random.randint(bk2, (B, L_TEXT), 0, 500, dtype=jnp.int32)
    bw = jax.random.randint(bk3, (B, L_TEXT), 1, 400, dtype=jnp.int32)
    bh = jax.random.randint(bk4, (B, L_TEXT), 1, 400, dtype=jnp.int32)
    positions = jnp.stack([x0, y0, x0 + bw, y0 + bh], axis=-1)        # (B, L, 4)
    attention_mask = jnp.ones((B, L_TEXT), jnp.int32).at[1, -1].set(0)
    image = jax.random.normal(imk, (B, IMG_C, IMG_HW, IMG_HW), jnp.float32)  # NCHW

    fwd = jax.jit(layoutlmv2_forward)
    pooler_output, last_hidden_state = fwd(packed, input_ids, positions,
                                           attention_mask, image)
    jax.block_until_ready((pooler_output, last_hidden_state))

    assert pooler_output.shape == (B, H)
    assert last_hidden_state.shape == (B, S, H)
    assert bool(jnp.all(jnp.isfinite(pooler_output)))
    assert bool(jnp.all(jnp.isfinite(last_hidden_state)))
    print("KERNEL_OK")
</pallas_src>

<mosaic_0001>
module attributes {stable_mosaic.version = 11 : i64} {
  func.func @encoder_kernel(%arg0: i32, %arg1: memref<64x128xf32, #tpu.memory_space<vmem>>, %arg2: memref<64x128xf32, #tpu.memory_space<vmem>>, %arg3: memref<64x128xf32, #tpu.memory_space<vmem>>, %arg4: memref<4x64x64xf32, #tpu.memory_space<vmem>>, %arg5: memref<1x128x384xbf16, #tpu.memory_space<vmem>>, %arg6: memref<1x1x384xf32, #tpu.memory_space<vmem>>, %arg7: memref<1x128x128xbf16, #tpu.memory_space<vmem>>, %arg8: memref<1x1x128xf32, #tpu.memory_space<vmem>>, %arg9: memref<1x1x128xf32, #tpu.memory_space<vmem>>, %arg10: memref<1x1x128xf32, #tpu.memory_space<vmem>>, %arg11: memref<1x128x128xbf16, #tpu.memory_space<vmem>>, %arg12: memref<1x1x128xf32, #tpu.memory_space<vmem>>, %arg13: memref<1x128x128xbf16, #tpu.memory_space<vmem>>, %arg14: memref<1x1x128xf32, #tpu.memory_space<vmem>>, %arg15: memref<1x1x128xf32, #tpu.memory_space<vmem>>, %arg16: memref<1x1x128xf32, #tpu.memory_space<vmem>>, %arg17: memref<128x128xbf16, #tpu.memory_space<vmem>>, %arg18: memref<1x128xf32, #tpu.memory_space<vmem>>, %arg19: memref<64x128xf32, #tpu.memory_space<vmem>>, %arg20: memref<16x128xf32, #tpu.memory_space<vmem>>) attributes {dimension_semantics = [#tpu.dimension_semantics<arbitrary>], iteration_bounds = array<i64: 2>, scalar_prefetch = 0 : i64, scratch_operands = 0 : i64, tpu.core_type = #tpu.core_type<tc>, window_params = [{pipeline_mode = #tpu.pipeline_mode<synchronous>, transform_indices = @transform_0, window_bounds = array<i64: 64, 128>}, {pipeline_mode = #tpu.pipeline_mode<synchronous>, transform_indices = @transform_1, window_bounds = array<i64: 64, 128>}, {pipeline_mode = #tpu.pipeline_mode<synchronous>, transform_indices = @transform_2, window_bounds = array<i64: 64, 128>}, {pipeline_mode = #tpu.pipeline_mode<synchronous>, transform_indices = @transform_3, window_bounds = array<i64: 4, 64, 64>}, {transform_indices = @transform_4, window_bounds = array<i64: 1, 128, 384>}, {transform_indices = @transform_5, window_bounds = array<i64: 1, 1, 384>}, {transform_indices = @transform_6, window_bounds = array<i64: 1, 128, 128>}, {transform_indices = @transform_7, window_bounds = array<i64: 1, 1, 128>}, {transform_indices = @transform_8, window_bounds = array<i64: 1, 1, 128>}, {transform_indices = @transform_9, window_bounds = array<i64: 1, 1, 128>}, {transform_indices = @transform_10, window_bounds = array<i64: 1, 128, 128>}, {transform_indices = @transform_11, window_bounds = array<i64: 1, 1, 128>}, {transform_indices = @transform_12, window_bounds = array<i64: 1, 128, 128>}, {transform_indices = @transform_13, window_bounds = array<i64: 1, 1, 128>}, {transform_indices = @transform_14, window_bounds = array<i64: 1, 1, 128>}, {transform_indices = @transform_15, window_bounds = array<i64: 1, 1, 128>}, {pipeline_mode = #tpu.pipeline_mode<synchronous>, transform_indices = @transform_16, window_bounds = array<i64: 128, 128>}, {pipeline_mode = #tpu.pipeline_mode<synchronous>, transform_indices = @transform_17, window_bounds = array<i64: 1, 128>}, {pipeline_mode = #tpu.pipeline_mode<synchronous>, transform_indices = @transform_18, window_bounds = array<i64: 64, 128>}, {pipeline_mode = #tpu.pipeline_mode<synchronous>, transform_indices = @transform_19, window_bounds = array<i64: 16, 128>}]} {
    %0 = tpu.iota {dimensions = array<i32: 1>} : vector<1x128xi32>
    %c48_i32 = arith.constant 48 : i32
    %1 = vector.broadcast %c48_i32 : i32 to vector<1x128xi32>
    %2 = arith.cmpi slt, %0, %1 : vector<1x128xi32>
    %3 = arith.extui %2 : vector<1x128xi1> to vector<1x128xi32>
    %4 = arith.sitofp %3 : vector<1x128xi32> to vector<1x128xf32>
    %c0_i32 = arith.constant 0 : i32
    %5 = arith.cmpi eq, %arg0, %c0_i32 : i32
    %6 = arith.extui %5 : i1 to i32
    %c0_i32_0 = arith.constant 0 : i32
    %7 = arith.cmpi ne, %6, %c0_i32_0 : i32
    %8 = scf.if %7 -> (vector<64x128xf32>) {
      %c0_83 = arith.constant 0 : index
      %c0_84 = arith.constant 0 : index
      %231 = vector.load %arg1[%c0_83, %c0_84] : memref<64x128xf32, #tpu.memory_space<vmem>>, vector<64x128xf32>
      %c0_85 = arith.constant 0 : index
      %c0_86 = arith.constant 0 : index
      %232 = vector.load %arg2[%c0_85, %c0_86] : memref<64x128xf32, #tpu.memory_space<vmem>>, vector<64x128xf32>
      %c0_87 = arith.constant 0 : index
      %c0_88 = arith.constant 0 : index
      %233 = vector.load %arg3[%c0_87, %c0_88] : memref<64x128xf32, #tpu.memory_space<vmem>>, vector<64x128xf32>
      %234 = vector.broadcast %4 : vector<1x128xf32> to vector<64x128xf32>
      %235 = arith.mulf %231, %234 : vector<64x128xf32>
      %cst_89 = arith.constant dense<0.000000e+00> : vector<64xf32>
      %236 = vector.multi_reduction <add>, %235, %cst_89 [1] : vector<64x128xf32> to vector<64xf32>
      %237 = vector.shape_cast %236 : vector<64xf32> to vector<64x1xf32>
      %cst_90 = arith.constant 0.020833334 : f32
      %238 = vector.broadcast %cst_90 : f32 to vector<64x1xf32>
      %239 = arith.mulf %237, %238 : vector<64x1xf32>
      %240 = vector.broadcast %239 : vector<64x1xf32> to vector<64x128xf32>
      %241 = arith.subf %231, %240 : vector<64x128xf32>
      %242 = vector.broadcast %4 : vector<1x128xf32> to vector<64x128xf32>
      %243 = arith.mulf %241, %242 : vector<64x128xf32>
      %244 = arith.mulf %243, %243 : vector<64x128xf32>
      %cst_91 = arith.constant dense<0.000000e+00> : vector<64xf32>
      %245 = vector.multi_reduction <add>, %244, %cst_91 [1] : vector<64x128xf32> to vector<64xf32>
      %246 = vector.shape_cast %245 : vector<64xf32> to vector<64x1xf32>
      %cst_92 = arith.constant 0.020833334 : f32
      %247 = vector.broadcast %cst_92 : f32 to vector<64x1xf32>
      %248 = arith.mulf %246, %247 : vector<64x1xf32>
      %cst_93 = arith.constant 9.99999996E-13 : f32
      %249 = vector.broadcast %cst_93 : f32 to vector<64x1xf32>
      %250 = arith.addf %248, %249 : vector<64x1xf32>
      %251 = math.rsqrt %250 : vector<64x1xf32>
      %252 = vector.broadcast %251 : vector<64x1xf32> to vector<64x128xf32>
      %253 = arith.mulf %243, %252 : vector<64x128xf32>
      %254 = arith.mulf %253, %232 : vector<64x128xf32>
      %255 = arith.addf %254, %233 : vector<64x128xf32>
      scf.yield %255 : vector<64x128xf32>
    } else {
      %c0_83 = arith.constant 0 : index
      %c0_84 = arith.constant 0 : index
      %231 = vector.load %arg19[%c0_83, %c0_84] : memref<64x128xf32, #tpu.memory_space<vmem>>, vector<64x128xf32>
      scf.yield %231 : vector<64x128xf32>
    }
    %9 = arith.truncf %8 : vector<64x128xf32> to vector<64x128xbf16>
    %c0 = arith.constant 0 : index
    %c0_1 = arith.constant 0 : index
    %c0_2 = arith.constant 0 : index
    %10 = vector.load %arg5[%c0, %c0_1, %c0_2] : memref<1x128x384xbf16, #tpu.memory_space<vmem>>, vector<1x128x384xbf16>
    %11 = vector.shape_cast %10 : vector<1x128x384xbf16> to vector<128x384xbf16>
    %cst = arith.constant dense<0.000000e+00> : vector<64x384xf32>
    %12 = tpu.matmul %9, %11, %cst {dimension_numbers = #tpu.dot_dimension_numbers<[1], [0], [0], [1], [0, 0, 1, 1], [], []>} : vector<64x128xbf16>, vector<128x384xbf16>, vector<64x384xf32> -> vector<64x384xf32>
    %c0_3 = arith.constant 0 : index
    %c0_4 = arith.constant 0 : index
    %c0_5 = arith.constant 0 : index
    %13 = vector.load %arg6[%c0_3, %c0_4, %c0_5] : memref<1x1x384xf32, #tpu.memory_space<vmem>>, vector<1x1x384xf32>
    %14 = vector.shape_cast %13 : vector<1x1x384xf32> to vector<1x384xf32>
    %15 = vector.broadcast %14 : vector<1x384xf32> to vector<64x384xf32>
    %16 = arith.addf %12, %15 : vector<64x384xf32>
    %17 = vector.extract_strided_slice %16 {offsets = [0, 0], sizes = [64, 128], strides = [1, 1]} : vector<64x384xf32> to vector<64x128xf32>
    %18 = vector.extract_strided_slice %16 {offsets = [0, 128], sizes = [64, 128], strides = [1, 1]} : vector<64x384xf32> to vector<64x128xf32>
    %19 = vector.extract_strided_slice %16 {offsets = [0, 256], sizes = [64, 128], strides = [1, 1]} : vector<64x384xf32> to vector<64x128xf32>
    %c0_6 = arith.constant 0 : index
    %c0_7 = arith.constant 0 : index
    %c0_8 = arith.constant 0 : index
    %20 = vector.load %arg4[%c0_6, %c0_7, %c0_8] : memref<4x64x64xf32, #tpu.memory_space<vmem>>, vector<4x64x64xf32>
    %c0_9 = arith.constant 0 : index
    %c0_10 = arith.constant 0 : index
    %c0_11 = arith.constant 0 : index
    %21 = vector.load %arg7[%c0_9, %c0_10, %c0_11] : memref<1x128x128xbf16, #tpu.memory_space<vmem>>, vector<1x128x128xbf16>
    %22 = vector.shape_cast %21 : vector<1x128x128xbf16> to vector<128x128xbf16>
    %cst_12 = arith.constant 0.000000e+00 : f32
    %23 = vector.broadcast %cst_12 : f32 to vector<64x128xf32>
    %24 = vector.extract_strided_slice %17 {offsets = [0, 0], sizes = [64, 32], strides = [1, 1]} : vector<64x128xf32> to vector<64x32xf32>
    %25 = arith.truncf %24 : vector<64x32xf32> to vector<64x32xbf16>
    %26 = vector.extract_strided_slice %18 {offsets = [0, 0], sizes = [64, 32], strides = [1, 1]} : vector<64x128xf32> to vector<64x32xf32>
    %27 = arith.truncf %26 : vector<64x32xf32> to vector<64x32xbf16>
    %28 = vector.extract_strided_slice %19 {offsets = [0, 0], sizes = [64, 32], strides = [1, 1]} : vector<64x128xf32> to vector<64x32xf32>
    %29 = arith.truncf %28 : vector<64x32xf32> to vector<64x32xbf16>
    %cst_13 = arith.constant dense<0.000000e+00> : vector<64x64xf32>
    %30 = tpu.matmul %25, %27, %cst_13 {dimension_numbers = #tpu.dot_dimension_numbers<[1], [1], [0], [0], [0, 0, 1, 0], [], []>} : vector<64x32xbf16>, vector<64x32xbf16>, vector<64x64xf32> -> vector<64x64xf32>
    %cst_14 = arith.constant 0.288675129 : f32
    %31 = vector.broadcast %cst_14 : f32 to vector<64x64xf32>
    %32 = arith.mulf %30, %31 : vector<64x64xf32>
    %33 = vector.extract_strided_slice %20 {offsets = [0, 0, 0], sizes = [1, 64, 64], strides = [1, 1, 1]} : vector<4x64x64xf32> to vector<1x64x64xf32>
    %34 = vector.shape_cast %33 : vector<1x64x64xf32> to vector<64x64xf32>
    %35 = arith.addf %32, %34 : vector<64x64xf32>
    %cst_15 = arith.constant dense<0xFF800000> : vector<64xf32>
    %36 = vector.multi_reduction <maximumf>, %35, %cst_15 [1] : vector<64x64xf32> to vector<64xf32>
    %37 = vector.shape_cast %36 : vector<64xf32> to vector<64x1xf32>
    %38 = vector.broadcast %37 : vector<64x1xf32> to vector<64x64xf32>
    %39 = arith.subf %35, %38 : vector<64x64xf32>
    %40 = math.exp %39 : vector<64x64xf32>
    %cst_16 = arith.constant dense<0.000000e+00> : vector<64xf32>
    %41 = vector.multi_reduction <add>, %40, %cst_16 [1] : vector<64x64xf32> to vector<64xf32>
    %42 = vector.shape_cast %41 : vector<64xf32> to vector<64x1xf32>
    %43 = tpu.reciprocal %42 {approx = true} : vector<64x1xf32> -> vector<64x1xf32>
    %44 = vector.broadcast %43 : vector<64x1xf32> to vector<64x64xf32>
    %45 = arith.mulf %40, %44 : vector<64x64xf32>
    %46 = arith.truncf %45 : vector<64x64xf32> to vector<64x64xbf16>
    %cst_17 = arith.constant dense<0.000000e+00> : vector<64x32xf32>
    %47 = tpu.matmul %46, %29, %cst_17 {dimension_numbers = #tpu.dot_dimension_numbers<[1], [0], [0], [1], [0, 0, 1, 1], [], []>} : vector<64x64xbf16>, vector<64x32xbf16>, vector<64x32xf32> -> vector<64x32xf32>
    %48 = arith.truncf %47 : vector<64x32xf32> to vector<64x32xbf16>
    %49 = vector.extract_strided_slice %22 {offsets = [0, 0], sizes = [32, 128], strides = [1, 1]} : vector<128x128xbf16> to vector<32x128xbf16>
    %cst_18 = arith.constant dense<0.000000e+00> : vector<64x128xf32>
    %50 = tpu.matmul %48, %49, %cst_18 {dimension_numbers = #tpu.dot_dimension_numbers<[1], [0], [0], [1], [0, 0, 1, 1], [], []>} : vector<64x32xbf16>, vector<32x128xbf16>, vector<64x128xf32> -> vector<64x128xf32>
    %51 = arith.addf %23, %50 : vector<64x128xf32>
    %52 = vector.extract_strided_slice %17 {offsets = [0, 32], sizes = [64, 32], strides = [1, 1]} : vector<64x128xf32> to vector<64x32xf32>
    %53 = arith.truncf %52 : vector<64x32xf32> to vector<64x32xbf16>
    %54 = vector.extract_strided_slice %18 {offsets = [0, 32], sizes = [64, 32], strides = [1, 1]} : vector<64x128xf32> to vector<64x32xf32>
    %55 = arith.truncf %54 : vector<64x32xf32> to vector<64x32xbf16>
    %56 = vector.extract_strided_slice %19 {offsets = [0, 32], sizes = [64, 32], strides = [1, 1]} : vector<64x128xf32> to vector<64x32xf32>
    %57 = arith.truncf %56 : vector<64x32xf32> to vector<64x32xbf16>
    %cst_19 = arith.constant dense<0.000000e+00> : vector<64x64xf32>
    %58 = tpu.matmul %53, %55, %cst_19 {dimension_numbers = #tpu.dot_dimension_numbers<[1], [1], [0], [0], [0, 0, 1, 0], [], []>} : vector<64x32xbf16>, vector<64x32xbf16>, vector<64x64xf32> -> vector<64x64xf32>
    %cst_20 = arith.constant 0.288675129 : f32
    %59 = vector.broadcast %cst_20 : f32 to vector<64x64xf32>
    %60 = arith.mulf %58, %59 : vector<64x64xf32>
    %61 = vector.extract_strided_slice %20 {offsets = [1, 0, 0], sizes = [1, 64, 64], strides = [1, 1, 1]} : vector<4x64x64xf32> to vector<1x64x64xf32>
    %62 = vector.shape_cast %61 : vector<1x64x64xf32> to vector<64x64xf32>
    %63 = arith.addf %60, %62 : vector<64x64xf32>
    %cst_21 = arith.constant dense<0xFF800000> : vector<64xf32>
    %64 = vector.multi_reduction <maximumf>, %63, %cst_21 [1] : vector<64x64xf32> to vector<64xf32>
    %65 = vector.shape_cast %64 : vector<64xf32> to vector<64x1xf32>
    %66 = vector.broadcast %65 : vector<64x1xf32> to vector<64x64xf32>
    %67 = arith.subf %63, %66 : vector<64x64xf32>
    %68 = math.exp %67 : vector<64x64xf32>
    %cst_22 = arith.constant dense<0.000000e+00> : vector<64xf32>
    %69 = vector.multi_reduction <add>, %68, %cst_22 [1] : vector<64x64xf32> to vector<64xf32>
    %70 = vector.shape_cast %69 : vector<64xf32> to vector<64x1xf32>
    %71 = tpu.reciprocal %70 {approx = true} : vector<64x1xf32> -> vector<64x1xf32>
    %72 = vector.broadcast %71 : vector<64x1xf32> to vector<64x64xf32>
    %73 = arith.mulf %68, %72 : vector<64x64xf32>
    %74 = arith.truncf %73 : vector<64x64xf32> to vector<64x64xbf16>
    %cst_23 = arith.constant dense<0.000000e+00> : vector<64x32xf32>
    %75 = tpu.matmul %74, %57, %cst_23 {dimension_numbers = #tpu.dot_dimension_numbers<[1], [0], [0], [1], [0, 0, 1, 1], [], []>} : vector<64x64xbf16>, vector<64x32xbf16>, vector<64x32xf32> -> vector<64x32xf32>
    %76 = arith.truncf %75 : vector<64x32xf32> to vector<64x32xbf16>
    %77 = vector.extract_strided_slice %22 {offsets = [32, 0], sizes = [32, 128], strides = [1, 1]} : vector<128x128xbf16> to vector<32x128xbf16>
    %cst_24 = arith.constant dense<0.000000e+00> : vector<64x128xf32>
    %78 = tpu.matmul %76, %77, %cst_24 {dimension_numbers = #tpu.dot_dimension_numbers<[1], [0], [0], [1], [0, 0, 1, 1], [], []>} : vector<64x32xbf16>, vector<32x128xbf16>, vector<64x128xf32> -> vector<64x128xf32>
    %79 = arith.addf %51, %78 : vector<64x128xf32>
    %80 = vector.extract_strided_slice %17 {offsets = [0, 64], sizes = [64, 32], strides = [1, 1]} : vector<64x128xf32> to vector<64x32xf32>
    %81 = arith.truncf %80 : vector<64x32xf32> to vector<64x32xbf16>
    %82 = vector.extract_strided_slice %18 {offsets = [0, 64], sizes = [64, 32], strides = [1, 1]} : vector<64x128xf32> to vector<64x32xf32>
    %83 = arith.truncf %82 : vector<64x32xf32> to vector<64x32xbf16>
    %84 = vector.extract_strided_slice %19 {offsets = [0, 64], sizes = [64, 32], strides = [1, 1]} : vector<64x128xf32> to vector<64x32xf32>
    %85 = arith.truncf %84 : vector<64x32xf32> to vector<64x32xbf16>
    %cst_25 = arith.constant dense<0.000000e+00> : vector<64x64xf32>
    %86 = tpu.matmul %81, %83, %cst_25 {dimension_numbers = #tpu.dot_dimension_numbers<[1], [1], [0], [0], [0, 0, 1, 0], [], []>} : vector<64x32xbf16>, vector<64x32xbf16>, vector<64x64xf32> -> vector<64x64xf32>
    %cst_26 = arith.constant 0.288675129 : f32
    %87 = vector.broadcast %cst_26 : f32 to vector<64x64xf32>
    %88 = arith.mulf %86, %87 : vector<64x64xf32>
    %89 = vector.extract_strided_slice %20 {offsets = [2, 0, 0], sizes = [1, 64, 64], strides = [1, 1, 1]} : vector<4x64x64xf32> to vector<1x64x64xf32>
    %90 = vector.shape_cast %89 : vector<1x64x64xf32> to vector<64x64xf32>
    %91 = arith.addf %88, %90 : vector<64x64xf32>
    %cst_27 = arith.constant dense<0xFF800000> : vector<64xf32>
    %92 = vector.multi_reduction <maximumf>, %91, %cst_27 [1] : vector<64x64xf32> to vector<64xf32>
    %93 = vector.shape_cast %92 : vector<64xf32> to vector<64x1xf32>
    %94 = vector.broadcast %93 : vector<64x1xf32> to vector<64x64xf32>
    %95 = arith.subf %91, %94 : vector<64x64xf32>
    %96 = math.exp %95 : vector<64x64xf32>
    %cst_28 = arith.constant dense<0.000000e+00> : vector<64xf32>
    %97 = vector.multi_reduction <add>, %96, %cst_28 [1] : vector<64x64xf32> to vector<64xf32>
    %98 = vector.shape_cast %97 : vector<64xf32> to vector<64x1xf32>
    %99 = tpu.reciprocal %98 {approx = true} : vector<64x1xf32> -> vector<64x1xf32>
    %100 = vector.broadcast %99 : vector<64x1xf32> to vector<64x64xf32>
    %101 = arith.mulf %96, %100 : vector<64x64xf32>
    %102 = arith.truncf %101 : vector<64x64xf32> to vector<64x64xbf16>
    %cst_29 = arith.constant dense<0.000000e+00> : vector<64x32xf32>
    %103 = tpu.matmul %102, %85, %cst_29 {dimension_numbers = #tpu.dot_dimension_numbers<[1], [0], [0], [1], [0, 0, 1, 1], [], []>} : vector<64x64xbf16>, vector<64x32xbf16>, vector<64x32xf32> -> vector<64x32xf32>
    %104 = arith.truncf %103 : vector<64x32xf32> to vector<64x32xbf16>
    %105 = vector.extract_strided_slice %22 {offsets = [64, 0], sizes = [32, 128], strides = [1, 1]} : vector<128x128xbf16> to vector<32x128xbf16>
    %cst_30 = arith.constant dense<0.000000e+00> : vector<64x128xf32>
    %106 = tpu.matmul %104, %105, %cst_30 {dimension_numbers = #tpu.dot_dimension_numbers<[1], [0], [0], [1], [0, 0, 1, 1], [], []>} : vector<64x32xbf16>, vector<32x128xbf16>, vector<64x128xf32> -> vector<64x128xf32>
    %107 = arith.addf %79, %106 : vector<64x128xf32>
    %108 = vector.extract_strided_slice %17 {offsets = [0, 96], sizes = [64, 32], strides = [1, 1]} : vector<64x128xf32> to vector<64x32xf32>
    %109 = arith.truncf %108 : vector<64x32xf32> to vector<64x32xbf16>
    %110 = vector.extract_strided_slice %18 {offsets = [0, 96], sizes = [64, 32], strides = [1, 1]} : vector<64x128xf32> to vector<64x32xf32>
    %111 = arith.truncf %110 : vector<64x32xf32> to vector<64x32xbf16>
    %112 = vector.extract_strided_slice %19 {offsets = [0, 96], sizes = [64, 32], strides = [1, 1]} : vector<64x128xf32> to vector<64x32xf32>
    %113 = arith.truncf %112 : vector<64x32xf32> to vector<64x32xbf16>
    %cst_31 = arith.constant dense<0.000000e+00> : vector<64x64xf32>
    %114 = tpu.matmul %109, %111, %cst_31 {dimension_numbers = #tpu.dot_dimension_numbers<[1], [1], [0], [0], [0, 0, 1, 0], [], []>} : vector<64x32xbf16>, vector<64x32xbf16>, vector<64x64xf32> -> vector<64x64xf32>
    %cst_32 = arith.constant 0.288675129 : f32
    %115 = vector.broadcast %cst_32 : f32 to vector<64x64xf32>
    %116 = arith.mulf %114, %115 : vector<64x64xf32>
    %117 = vector.extract_strided_slice %20 {offsets = [3, 0, 0], sizes = [1, 64, 64], strides = [1, 1, 1]} : vector<4x64x64xf32> to vector<1x64x64xf32>
    %118 = vector.shape_cast %117 : vector<1x64x64xf32> to vector<64x64xf32>
    %119 = arith.addf %116, %118 : vector<64x64xf32>
    %cst_33 = arith.constant dense<0xFF800000> : vector<64xf32>
    %120 = vector.multi_reduction <maximumf>, %119, %cst_33 [1] : vector<64x64xf32> to vector<64xf32>
    %121 = vector.shape_cast %120 : vector<64xf32> to vector<64x1xf32>
    %122 = vector.broadcast %121 : vector<64x1xf32> to vector<64x64xf32>
    %123 = arith.subf %119, %122 : vector<64x64xf32>
    %124 = math.exp %123 : vector<64x64xf32>
    %cst_34 = arith.constant dense<0.000000e+00> : vector<64xf32>
    %125 = vector.multi_reduction <add>, %124, %cst_34 [1] : vector<64x64xf32> to vector<64xf32>
    %126 = vector.shape_cast %125 : vector<64xf32> to vector<64x1xf32>
    %127 = tpu.reciprocal %126 {approx = true} : vector<64x1xf32> -> vector<64x1xf32>
    %128 = vector.broadcast %127 : vector<64x1xf32> to vector<64x64xf32>
    %129 = arith.mulf %124, %128 : vector<64x64xf32>
    %130 = arith.truncf %129 : vector<64x64xf32> to vector<64x64xbf16>
    %cst_35 = arith.constant dense<0.000000e+00> : vector<64x32xf32>
    %131 = tpu.matmul %130, %113, %cst_35 {dimension_numbers = #tpu.dot_dimension_numbers<[1], [0], [0], [1], [0, 0, 1, 1], [], []>} : vector<64x64xbf16>, vector<64x32xbf16>, vector<64x32xf32> -> vector<64x32xf32>
    %132 = arith.truncf %131 : vector<64x32xf32> to vector<64x32xbf16>
    %133 = vector.extract_strided_slice %22 {offsets = [96, 0], sizes = [32, 128], strides = [1, 1]} : vector<128x128xbf16> to vector<32x128xbf16>
    %cst_36 = arith.constant dense<0.000000e+00> : vector<64x128xf32>
    %134 = tpu.matmul %132, %133, %cst_36 {dimension_numbers = #tpu.dot_dimension_numbers<[1], [0], [0], [1], [0, 0, 1, 1], [], []>} : vector<64x32xbf16>, vector<32x128xbf16>, vector<64x128xf32> -> vector<64x128xf32>
    %135 = arith.addf %107, %134 : vector<64x128xf32>
    %c0_37 = arith.constant 0 : index
    %c0_38 = arith.constant 0 : index
    %c0_39 = arith.constant 0 : index
    %136 = vector.load %arg8[%c0_37, %c0_38, %c0_39] : memref<1x1x128xf32, #tpu.memory_space<vmem>>, vector<1x1x128xf32>
    %137 = vector.shape_cast %136 : vector<1x1x128xf32> to vector<1x128xf32>
    %138 = vector.broadcast %137 : vector<1x128xf32> to vector<64x128xf32>
    %139 = arith.addf %135, %138 : vector<64x128xf32>
    %140 = arith.addf %139, %8 : vector<64x128xf32>
    %c0_40 = arith.constant 0 : index
    %c0_41 = arith.constant 0 : index
    %c0_42 = arith.constant 0 : index
    %141 = vector.load %arg9[%c0_40, %c0_41, %c0_42] : memref<1x1x128xf32, #tpu.memory_space<vmem>>, vector<1x1x128xf32>
    %142 = vector.shape_cast %141 : vector<1x1x128xf32> to vector<1x128xf32>
    %c0_43 = arith.constant 0 : index
    %c0_44 = arith.constant 0 : index
    %c0_45 = arith.constant 0 : index
    %143 = vector.load %arg10[%c0_43, %c0_44, %c0_45] : memref<1x1x128xf32, #tpu.memory_space<vmem>>, vector<1x1x128xf32>
    %144 = vector.shape_cast %143 : vector<1x1x128xf32> to vector<1x128xf32>
    %145 = vector.broadcast %4 : vector<1x128xf32> to vector<64x128xf32>
    %146 = arith.mulf %140, %145 : vector<64x128xf32>
    %cst_46 = arith.constant dense<0.000000e+00> : vector<64xf32>
    %147 = vector.multi_reduction <add>, %146, %cst_46 [1] : vector<64x128xf32> to vector<64xf32>
    %148 = vector.shape_cast %147 : vector<64xf32> to vector<64x1xf32>
    %cst_47 = arith.constant 0.020833334 : f32
    %149 = vector.broadcast %cst_47 : f32 to vector<64x1xf32>
    %150 = arith.mulf %148, %149 : vector<64x1xf32>
    %151 = vector.broadcast %150 : vector<64x1xf32> to vector<64x128xf32>
    %152 = arith.subf %140, %151 : vector<64x128xf32>
    %153 = vector.broadcast %4 : vector<1x128xf32> to vector<64x128xf32>
    %154 = arith.mulf %152, %153 : vector<64x128xf32>
    %155 = arith.mulf %154, %154 : vector<64x128xf32>
    %cst_48 = arith.constant dense<0.000000e+00> : vector<64xf32>
    %156 = vector.multi_reduction <add>, %155, %cst_48 [1] : vector<64x128xf32> to vector<64xf32>
    %157 = vector.shape_cast %156 : vector<64xf32> to vector<64x1xf32>
    %cst_49 = arith.constant 0.020833334 : f32
    %158 = vector.broadcast %cst_49 : f32 to vector<64x1xf32>
    %159 = arith.mulf %157, %158 : vector<64x1xf32>
    %cst_50 = arith.constant 9.99999996E-13 : f32
    %160 = vector.broadcast %cst_50 : f32 to vector<64x1xf32>
    %161 = arith.addf %159, %160 : vector<64x1xf32>
    %162 = math.rsqrt %161 : vector<64x1xf32>
    %163 = vector.broadcast %162 : vector<64x1xf32> to vector<64x128xf32>
    %164 = arith.mulf %154, %163 : vector<64x128xf32>
    %165 = vector.broadcast %142 : vector<1x128xf32> to vector<64x128xf32>
    %166 = arith.mulf %164, %165 : vector<64x128xf32>
    %167 = vector.broadcast %144 : vector<1x128xf32> to vector<64x128xf32>
    %168 = arith.addf %166, %167 : vector<64x128xf32>
    %169 = arith.truncf %168 : vector<64x128xf32> to vector<64x128xbf16>
    %c0_51 = arith.constant 0 : index
    %c0_52 = arith.constant 0 : index
    %c0_53 = arith.constant 0 : index
    %170 = vector.load %arg11[%c0_51, %c0_52, %c0_53] : memref<1x128x128xbf16, #tpu.memory_space<vmem>>, vector<1x128x128xbf16>
    %171 = vector.shape_cast %170 : vector<1x128x128xbf16> to vector<128x128xbf16>
    %cst_54 = arith.constant dense<0.000000e+00> : vector<64x128xf32>
    %172 = tpu.matmul %169, %171, %cst_54 {dimension_numbers = #tpu.dot_dimension_numbers<[1], [0], [0], [1], [0, 0, 1, 1], [], []>} : vector<64x128xbf16>, vector<128x128xbf16>, vector<64x128xf32> -> vector<64x128xf32>
    %c0_55 = arith.constant 0 : index
    %c0_56 = arith.constant 0 : index
    %c0_57 = arith.constant 0 : index
    %173 = vector.load %arg12[%c0_55, %c0_56, %c0_57] : memref<1x1x128xf32, #tpu.memory_space<vmem>>, vector<1x1x128xf32>
    %174 = vector.shape_cast %173 : vector<1x1x128xf32> to vector<1x128xf32>
    %175 = vector.broadcast %174 : vector<1x128xf32> to vector<64x128xf32>
    %176 = arith.addf %172, %175 : vector<64x128xf32>
    %cst_58 = arith.constant 5.000000e-01 : f32
    %177 = vector.broadcast %cst_58 : f32 to vector<64x128xf32>
    %178 = arith.mulf %177, %176 : vector<64x128xf32>
    %cst_59 = arith.constant 4.471500e-02 : f32
    %179 = vector.broadcast %cst_59 : f32 to vector<64x128xf32>
    %180 = arith.mulf %179, %176 : vector<64x128xf32>
    %181 = arith.mulf %180, %176 : vector<64x128xf32>
    %182 = arith.mulf %181, %176 : vector<64x128xf32>
    %183 = arith.addf %176, %182 : vector<64x128xf32>
    %cst_60 = arith.constant 0.797884583 : f32
    %184 = vector.broadcast %cst_60 : f32 to vector<64x128xf32>
    %185 = arith.mulf %184, %183 : vector<64x128xf32>
    %186 = math.tanh %185 : vector<64x128xf32>
    %cst_61 = arith.constant 1.000000e+00 : f32
    %187 = vector.broadcast %cst_61 : f32 to vector<64x128xf32>
    %188 = arith.addf %187, %186 : vector<64x128xf32>
    %189 = arith.mulf %178, %188 : vector<64x128xf32>
    %190 = arith.truncf %189 : vector<64x128xf32> to vector<64x128xbf16>
    %c0_62 = arith.constant 0 : index
    %c0_63 = arith.constant 0 : index
    %c0_64 = arith.constant 0 : index
    %191 = vector.load %arg13[%c0_62, %c0_63, %c0_64] : memref<1x128x128xbf16, #tpu.memory_space<vmem>>, vector<1x128x128xbf16>
    %192 = vector.shape_cast %191 : vector<1x128x128xbf16> to vector<128x128xbf16>
    %cst_65 = arith.constant dense<0.000000e+00> : vector<64x128xf32>
    %193 = tpu.matmul %190, %192, %cst_65 {dimension_numbers = #tpu.dot_dimension_numbers<[1], [0], [0], [1], [0, 0, 1, 1], [], []>} : vector<64x128xbf16>, vector<128x128xbf16>, vector<64x128xf32> -> vector<64x128xf32>
    %c0_66 = arith.constant 0 : index
    %c0_67 = arith.constant 0 : index
    %c0_68 = arith.constant 0 : index
    %194 = vector.load %arg14[%c0_66, %c0_67, %c0_68] : memref<1x1x128xf32, #tpu.memory_space<vmem>>, vector<1x1x128xf32>
    %195 = vector.shape_cast %194 : vector<1x1x128xf32> to vector<1x128xf32>
    %196 = vector.broadcast %195 : vector<1x128xf32> to vector<64x128xf32>
    %197 = arith.addf %193, %196 : vector<64x128xf32>
    %198 = arith.addf %197, %168 : vector<64x128xf32>
    %c0_69 = arith.constant 0 : index
    %c0_70 = arith.constant 0 : index
    %c0_71 = arith.constant 0 : index
    %199 = vector.load %arg15[%c0_69, %c0_70, %c0_71] : memref<1x1x128xf32, #tpu.memory_space<vmem>>, vector<1x1x128xf32>
    %200 = vector.shape_cast %199 : vector<1x1x128xf32> to vector<1x128xf32>
    %c0_72 = arith.constant 0 : index
    %c0_73 = arith.constant 0 : index
    %c0_74 = arith.constant 0 : index
    %201 = vector.load %arg16[%c0_72, %c0_73, %c0_74] : memref<1x1x128xf32, #tpu.memory_space<vmem>>, vector<1x1x128xf32>
    %202 = vector.shape_cast %201 : vector<1x1x128xf32> to vector<1x128xf32>
    %203 = vector.broadcast %4 : vector<1x128xf32> to vector<64x128xf32>
    %204 = arith.mulf %198, %203 : vector<64x128xf32>
    %cst_75 = arith.constant dense<0.000000e+00> : vector<64xf32>
    %205 = vector.multi_reduction <add>, %204, %cst_75 [1] : vector<64x128xf32> to vector<64xf32>
    %206 = vector.shape_cast %205 : vector<64xf32> to vector<64x1xf32>
    %cst_76 = arith.constant 0.020833334 : f32
    %207 = vector.broadcast %cst_76 : f32 to vector<64x1xf32>
    %208 = arith.mulf %206, %207 : vector<64x1xf32>
    %209 = vector.broadcast %208 : vector<64x1xf32> to vector<64x128xf32>
    %210 = arith.subf %198, %209 : vector<64x128xf32>
    %211 = vector.broadcast %4 : vector<1x128xf32> to vector<64x128xf32>
    %212 = arith.mulf %210, %211 : vector<64x128xf32>
    %213 = arith.mulf %212, %212 : vector<64x128xf32>
    %cst_77 = arith.constant dense<0.000000e+00> : vector<64xf32>
    %214 = vector.multi_reduction <add>, %213, %cst_77 [1] : vector<64x128xf32> to vector<64xf32>
    %215 = vector.shape_cast %214 : vector<64xf32> to vector<64x1xf32>
    %cst_78 = arith.constant 0.020833334 : f32
    %216 = vector.broadcast %cst_78 : f32 to vector<64x1xf32>
    %217 = arith.mulf %215, %216 : vector<64x1xf32>
    %cst_79 = arith.constant 9.99999996E-13 : f32
    %218 = vector.broadcast %cst_79 : f32 to vector<64x1xf32>
    %219 = arith.addf %217, %218 : vector<64x1xf32>
    %220 = math.rsqrt %219 : vector<64x1xf32>
    %221 = vector.broadcast %220 : vector<64x1xf32> to vector<64x128xf32>
    %222 = arith.mulf %212, %221 : vector<64x128xf32>
    %223 = vector.broadcast %200 : vector<1x128xf32> to vector<64x128xf32>
    %224 = arith.mulf %222, %223 : vector<64x128xf32>
    %225 = vector.broadcast %202 : vector<1x128xf32> to vector<64x128xf32>
    %226 = arith.addf %224, %225 : vector<64x128xf32>
    %c0_80 = arith.constant 0 : index
    %c0_81 = arith.constant 0 : index
    %227 = vector.load %arg19[%c0_80, %c0_81] : memref<64x128xf32, #tpu.memory_space<vmem>>, vector<64x128xf32>
    tpu.vector_store %arg19[%c0_80, %c0_81], %226 {strides = array<i32>} : memref<64x128xf32, #tpu.memory_space<vmem>>, vector<64x128xf32>,
    %c1_i32 = arith.constant 1 : i32
    %228 = arith.cmpi eq, %arg0, %c1_i32 : i32
    %229 = arith.extui %228 : i1 to i32
    %c0_i32_82 = arith.constant 0 : i32
    %230 = arith.cmpi ne, %229, %c0_i32_82 : i32
    scf.if %230 {
      %231 = vector.extract_strided_slice %226 {offsets = [0, 0], sizes = [8, 128], strides = [1, 1]} : vector<64x128xf32> to vector<8x128xf32>
      %232 = vector.extract_strided_slice %226 {offsets = [32, 0], sizes = [8, 128], strides = [1, 1]} : vector<64x128xf32> to vector<8x128xf32>
      %233 = tpu.concatenate %231, %232 in 0 : vector<8x128xf32>, vector<8x128xf32> -> vector<16x128xf32>
      %234 = arith.truncf %233 : vector<16x128xf32> to vector<16x128xbf16>
      %c0_83 = arith.constant 0 : index
      %c0_84 = arith.constant 0 : index
      %235 = vector.load %arg17[%c0_83, %c0_84] : memref<128x128xbf16, #tpu.memory_space<vmem>>, vector<128x128xbf16>
      %cst_85 = arith.constant dense<0.000000e+00> : vector<16x128xf32>
      %236 = tpu.matmul %234, %235, %cst_85 {dimension_numbers = #tpu.dot_dimension_numbers<[1], [0], [0], [1], [0, 0, 1, 1], [], []>} : vector<16x128xbf16>, vector<128x128xbf16>, vector<16x128xf32> -> vector<16x128xf32>
      %c0_86 = arith.constant 0 : index
      %c0_87 = arith.constant 0 : index
      %237 = vector.load %arg18[%c0_86, %c0_87] : memref<1x128xf32, #tpu.memory_space<vmem>>, vector<1x128xf32>
      %238 = vector.broadcast %237 : vector<1x128xf32> to vector<16x128xf32>
      %239 = arith.addf %236, %238 : vector<16x128xf32>
      %240 = math.tanh %239 : vector<16x128xf32>
      %c0_88 = arith.constant 0 : index
      %c0_89 = arith.constant 0 : index
      %241 = vector.load %arg20[%c0_88, %c0_89] : memref<16x128xf32, #tpu.memory_space<vmem>>, vector<16x128xf32>
      tpu.vector_store %arg20[%c0_88, %c0_89], %240 {strides = array<i32>} : memref<16x128xf32, #tpu.memory_space<vmem>>, vector<16x128xf32>,
    } else {
    }
    return
  }
  func.func @transform_0(%arg0: i32) -> (i32, i32) {
    %c0_i32 = arith.constant 0 : i32
    %c0_i32_0 = arith.constant 0 : i32
    %c0_i32_1 = arith.constant 0 : i32
    return %c0_i32, %c0_i32_0 : i32, i32
  }
  func.func @transform_1(%arg0: i32) -> (i32, i32) {
    %c0_i32 = arith.constant 0 : i32
    %c0_i32_0 = arith.constant 0 : i32
    %c0_i32_1 = arith.constant 0 : i32
    return %c0_i32, %c0_i32_0 : i32, i32
  }
  func.func @transform_2(%arg0: i32) -> (i32, i32) {
    %c0_i32 = arith.constant 0 : i32
    %c0_i32_0 = arith.constant 0 : i32
    %c0_i32_1 = arith.constant 0 : i32
    return %c0_i32, %c0_i32_0 : i32, i32
  }
  func.func @transform_3(%arg0: i32) -> (i32, i32, i32) {
    %c0_i32 = arith.constant 0 : i32
    %c0_i32_0 = arith.constant 0 : i32
    %c0_i32_1 = arith.constant 0 : i32
    %c0_i32_2 = arith.constant 0 : i32
    return %c0_i32, %c0_i32_0, %c0_i32_1 : i32, i32, i32
  }
  func.func @transform_4(%arg0: i32) -> (i32, i32, i32) {
    %c0_i32 = arith.constant 0 : i32
    %c0_i32_0 = arith.constant 0 : i32
    %c0_i32_1 = arith.constant 0 : i32
    return %arg0, %c0_i32, %c0_i32_0 : i32, i32, i32
  }
  func.func @transform_5(%arg0: i32) -> (i32, i32, i32) {
    %c0_i32 = arith.constant 0 : i32
    %c0_i32_0 = arith.constant 0 : i32
    %c0_i32_1 = arith.constant 0 : i32
    return %arg0, %c0_i32, %c0_i32_0 : i32, i32, i32
  }
  func.func @transform_6(%arg0: i32) -> (i32, i32, i32) {
    %c0_i32 = arith.constant 0 : i32
    %c0_i32_0 = arith.constant 0 : i32
    %c0_i32_1 = arith.constant 0 : i32
    return %arg0, %c0_i32, %c0_i32_0 : i32, i32, i32
  }
  func.func @transform_7(%arg0: i32) -> (i32, i32, i32) {
    %c0_i32 = arith.constant 0 : i32
    %c0_i32_0 = arith.constant 0 : i32
    %c0_i32_1 = arith.constant 0 : i32
    return %arg0, %c0_i32, %c0_i32_0 : i32, i32, i32
  }
  func.func @transform_8(%arg0: i32) -> (i32, i32, i32) {
    %c0_i32 = arith.constant 0 : i32
    %c0_i32_0 = arith.constant 0 : i32
    %c0_i32_1 = arith.constant 0 : i32
    return %arg0, %c0_i32, %c0_i32_0 : i32, i32, i32
  }
  func.func @transform_9(%arg0: i32) -> (i32, i32, i32) {
    %c0_i32 = arith.constant 0 : i32
    %c0_i32_0 = arith.constant 0 : i32
    %c0_i32_1 = arith.constant 0 : i32
    return %arg0, %c0_i32, %c0_i32_0 : i32, i32, i32
  }
  func.func @transform_10(%arg0: i32) -> (i32, i32, i32) {
    %c0_i32 = arith.constant 0 : i32
    %c0_i32_0 = arith.constant 0 : i32
    %c0_i32_1 = arith.constant 0 : i32
    return %arg0, %c0_i32, %c0_i32_0 : i32, i32, i32
  }
  func.func @transform_11(%arg0: i32) -> (i32, i32, i32) {
    %c0_i32 = arith.constant 0 : i32
    %c0_i32_0 = arith.constant 0 : i32
    %c0_i32_1 = arith.constant 0 : i32
    return %arg0, %c0_i32, %c0_i32_0 : i32, i32, i32
  }
  func.func @transform_12(%arg0: i32) -> (i32, i32, i32) {
    %c0_i32 = arith.constant 0 : i32
    %c0_i32_0 = arith.constant 0 : i32
    %c0_i32_1 = arith.constant 0 : i32
    return %arg0, %c0_i32, %c0_i32_0 : i32, i32, i32
  }
  func.func @transform_13(%arg0: i32) -> (i32, i32, i32) {
    %c0_i32 = arith.constant 0 : i32
    %c0_i32_0 = arith.constant 0 : i32
    %c0_i32_1 = arith.constant 0 : i32
    return %arg0, %c0_i32, %c0_i32_0 : i32, i32, i32
  }
  func.func @transform_14(%arg0: i32) -> (i32, i32, i32) {
    %c0_i32 = arith.constant 0 : i32
    %c0_i32_0 = arith.constant 0 : i32
    %c0_i32_1 = arith.constant 0 : i32
    return %arg0, %c0_i32, %c0_i32_0 : i32, i32, i32
  }
  func.func @transform_15(%arg0: i32) -> (i32, i32, i32) {
    %c0_i32 = arith.constant 0 : i32
    %c0_i32_0 = arith.constant 0 : i32
    %c0_i32_1 = arith.constant 0 : i32
    return %arg0, %c0_i32, %c0_i32_0 : i32, i32, i32
  }
  func.func @transform_16(%arg0: i32) -> (i32, i32) {
    %c0_i32 = arith.constant 0 : i32
    %c0_i32_0 = arith.constant 0 : i32
    %c0_i32_1 = arith.constant 0 : i32
    return %c0_i32, %c0_i32_0 : i32, i32
  }
  func.func @transform_17(%arg0: i32) -> (i32, i32) {
    %c0_i32 = arith.constant 0 : i32
    %c0_i32_0 = arith.constant 0 : i32
    %c0_i32_1 = arith.constant 0 : i32
    return %c0_i32, %c0_i32_0 : i32, i32
  }
  func.func @transform_18(%arg0: i32) -> (i32, i32) {
    %c0_i32 = arith.constant 0 : i32
    %c0_i32_0 = arith.constant 0 : i32
    %c0_i32_1 = arith.constant 0 : i32
    return %c0_i32, %c0_i32_0 : i32, i32
  }
  func.func @transform_19(%arg0: i32) -> (i32, i32) {
    %c0_i32 = arith.constant 0 : i32
    %c0_i32_0 = arith.constant 0 : i32
    %c0_i32_1 = arith.constant 0 : i32
    return %c0_i32, %c0_i32_0 : i32, i32
  }
}

</mosaic_0001>

<llo_original>
// kernel: tile.17
$region0: #{tile.17}
  #allocation0 [shape = 's32[1]{0}', space=sflag, size = 0x4, scoped, tag = 'scoped memory for tile.17']
  %s0 = inlined_call_operand.vmem [shape: s32[4], index: 0, kind: input, shape index: {}]
  %s1 = inlined_call_operand.vmem [shape: s32[4,4], index: 1, kind: output, shape index: {}]
  // Predicated region
  $region2: #{tile.17} parent=0 // pred_check
    _
  $region3: #{tile.17} parent=0 // pred_check_branch
    %3 = sbr.rel (0) target = $region5
  $region4: #{tile.17} parent=0 // pred_region
    _
  $region5: #{tile.17} parent=0 // pred_fallthru
    _
  %v4 = vld [vmem:[%s0] ss:$0 sm:$0xff]
  %5 = vst [vmem:[%s1] sm:$0xf] %v4

// kernel: layoutlmv2_forward.1
$region0: #{layoutlmv2_forward.1}
  #allocation0 [shape = 'u32[]', space=smem, size = 0x4, offset = 0x4, fixed_abs, tag = 'smem constant byte address 0x4 - core index']
  #allocation1 [shape = 'u32[144,128]{1,0:T(1,128)}', space=vmem, size = 0x12000, scoped, tag = 'internal scratch']
  %s0 = inlined_call_operand.vmem [shape: f32[64,128], index: 0, kind: input, shape index: {}]
  %s1 = inlined_call_operand.vmem [shape: f32[64,128], index: 1, kind: input, shape index: {}]
  %s2 = inlined_call_operand.vmem [shape: f32[64,128], index: 2, kind: input, shape index: {}]
  %s3 = inlined_call_operand.vmem [shape: f32[4,64,64], index: 3, kind: input, shape index: {}]
  %s4 = inlined_call_operand.vmem [shape: bf16[2,128,384], index: 4, kind: input, shape index: {}]
  %s5 = inlined_call_operand.vmem [shape: f32[2,1,384], index: 5, kind: input, shape index: {}]
  %s6 = inlined_call_operand.vmem [shape: bf16[2,128,128], index: 6, kind: input, shape index: {}]
  %s7 = inlined_call_operand.vmem [shape: f32[2,1,128], index: 7, kind: input, shape index: {}]
  %s8 = inlined_call_operand.vmem [shape: f32[2,1,128], index: 8, kind: input, shape index: {}]
  %s9 = inlined_call_operand.vmem [shape: f32[2,1,128], index: 9, kind: input, shape index: {}]
  %s10 = inlined_call_operand.vmem [shape: bf16[2,128,128], index: 10, kind: input, shape index: {}]
  %s11 = inlined_call_operand.vmem [shape: f32[2,1,128], index: 11, kind: input, shape index: {}]
  %s12 = inlined_call_operand.vmem [shape: bf16[2,128,128], index: 12, kind: input, shape index: {}]
  %s13 = inlined_call_operand.vmem [shape: f32[2,1,128], index: 13, kind: input, shape index: {}]
  %s14 = inlined_call_operand.vmem [shape: f32[2,1,128], index: 14, kind: input, shape index: {}]
  %s15 = inlined_call_operand.vmem [shape: f32[2,1,128], index: 15, kind: input, shape index: {}]
  %s16 = inlined_call_operand.vmem [shape: bf16[128,128], index: 16, kind: input, shape index: {}]
  %s17 = inlined_call_operand.vmem [shape: f32[1,128], index: 17, kind: input, shape index: {}]
  %s18 = inlined_call_operand.vmem [shape: f32[64,128], index: 18, kind: output, shape index: {0}]
  %s19 = inlined_call_operand.vmem [shape: f32[16,128], index: 19, kind: output, shape index: {1}]
  %20 = xla_tuple %s18, %s19
  %s21 = sld [smem:[#allocation0]]
  $region125: #{layoutlmv2_forward.1} parent=0
    _
  %s23 = ssub.s32 1, %s21
  %s24 = scalar_select 0, %s23, %s21
  loop: start=0, step=1, limit=4
  $region2: #{layoutlmv2_forward.1} parent=0 // loop_pre_header
    _
  $region3: #{layoutlmv2_forward.1} parent=0 // loop_header
    %s26 = sphi 0, %s30
    %p27 = scmp.ge.s32.totalorder %s26, 4
    %s34 = sphi 0, %s34
    %s36 = sphi 0, %s34
    %s37 = sphi 0, %s36
    %s51 = sphi 0, %s37
    %s55 = sphi 0, %s55
    %s57 = sphi 0, %s55
    %s58 = sphi 0, %s57
    %s72 = sphi 0, %s58
    %s76 = sphi 0, %s76
    %s78 = sphi 0, %s76
    %s79 = sphi 0, %s78
    %s93 = sphi 0, %s79
    %s97 = sphi 0, %s97
    %s99 = sphi 0, %s97
    %s100 = sphi 0, %s99
    %s114 = sphi 0, %s100
    %s120 = sphi 0, %s122
    %s123 = sphi 0, %s120
    %s124 = sphi 0, %s123
    %s140 = sphi 0, %s124
    %s146 = sphi 0, %s148
    %s149 = sphi 0, %s146
    %s150 = sphi 0, %s149
    %s166 = sphi 0, %s150
    %s172 = sphi 0, %s174
    %s175 = sphi 0, %s172
    %s176 = sphi 0, %s175
    %s192 = sphi 0, %s176
    %s198 = sphi 0, %s200
    %s201 = sphi 0, %s198
    %s202 = sphi 0, %s201
    %s218 = sphi 0, %s202
    %s224 = sphi 0, %s226
    %s227 = sphi 0, %s224
    %s228 = sphi 0, %s227
    %s244 = sphi 0, %s228
    %s250 = sphi 0, %s252
    %s253 = sphi 0, %s250
    %s254 = sphi 0, %s253
    %s270 = sphi 0, %s254
    %s276 = sphi 0, %s278
    %s279 = sphi 0, %s276
    %s280 = sphi 0, %s279
    %s296 = sphi 0, %s280
    %s302 = sphi 0, %s304
    %s305 = sphi 0, %s302
    %s306 = sphi 0, %s305
    %s322 = sphi 0, %s306
    %s328 = sphi 0, %s330
    %s331 = sphi 0, %s328
    %s332 = sphi 0, %s331
    %s348 = sphi 0, %s332
    %s354 = sphi 0, %s356
    %s357 = sphi 0, %s354
    %s358 = sphi 0, %s357
    %s374 = sphi 0, %s358
    %s380 = sphi 0, %s382
    %s383 = sphi 0, %s380
    %s384 = sphi 0, %s383
    %s400 = sphi 0, %s384
    %s406 = sphi 0, %s408
    %s409 = sphi 0, %s406
    %s410 = sphi 0, %s409
    %s426 = sphi 0, %s410
    %s430 = sphi 0, %s430
    %s432 = sphi 0, %s430
    %s433 = sphi 0, %s432
    %s447 = sphi 0, %s433
    %s451 = sphi 0, %s451
    %s453 = sphi 0, %s451
    %s454 = sphi 0, %s453
    %s468 = sphi 0, %s454
    %s472 = sphi 0, %s472
    %s474 = sphi 0, %s472
    %s475 = sphi 0, %s474
    %s489 = sphi 0, %s475
    %s493 = sphi 0, %s493
    %s495 = sphi 0, %s493
    %s496 = sphi 0, %s495
    %s510 = sphi 0, %s496
  $region4: #{layoutlmv2_forward.1} parent=0 // loop_header_branch
    %29 = sbr.rel (%p27) target = $region8
  $region5: #{layoutlmv2_forward.1} parent=0 // loop_body
    %s31 = ssub.s32 %s26, 1
    %s32 = ssub.s32 %s26, 2
    %s33 = sadd.s32 %s26, 1
    %s35 = sadd.s32 %s34, 1
    %p38 = scmp.eq.s32.totalorder %s26, 1
    %p39 = scmp.ne.s32.totalorder %s34, %s36
    %p40 = scmp.eq.s32.totalorder %s26, 0
    %p41 = por %p39, %p40
    %p42 = scmp.ne.s32.totalorder %s34, %s36
    %p43 = scmp.eq.s32.totalorder %s31, 1
    %p44 = por %p42, %p43
    %p45 = scmp.ne.s32.totalorder %s36, %s37
    %p46 = scmp.eq.s32.totalorder %s31, 0
    %p47 = por %p45, %p46
    %p48 = scmp.ne.s32.totalorder %s36, %s37
    %p49 = scmp.eq.s32.totalorder %s32, 1
    %p50 = por %p48, %p49
    %p52 = scmp.ne.s32.totalorder %s37, %s51
    %p53 = scmp.eq.s32.totalorder %s32, 0
    %p54 = por %p52, %p53
    %s56 = sadd.s32 %s55, 1
    %p59 = scmp.eq.s32.totalorder %s26, 1
    %p60 = scmp.ne.s32.totalorder %s55, %s57
    %p61 = scmp.eq.s32.totalorder %s26, 0
    %p62 = por %p60, %p61
    %p63 = scmp.ne.s32.totalorder %s55, %s57
    %p64 = scmp.eq.s32.totalorder %s31, 1
    %p65 = por %p63, %p64
    %p66 = scmp.ne.s32.totalorder %s57, %s58
    %p67 = scmp.eq.s32.totalorder %s31, 0
    %p68 = por %p66, %p67
    %p69 = scmp.ne.s32.totalorder %s57, %s58
    %p70 = scmp.eq.s32.totalorder %s32, 1
    %p71 = por %p69, %p70
    %p73 = scmp.ne.s32.totalorder %s58, %s72
    %p74 = scmp.eq.s32.totalorder %s32, 0
    %p75 = por %p73, %p74
    %s77 = sadd.s32 %s76, 1
    %p80 = scmp.eq.s32.totalorder %s26, 1
    %p81 = scmp.ne.s32.totalorder %s76, %s78
    %p82 = scmp.eq.s32.totalorder %s26, 0
    %p83 = por %p81, %p82
    %p84 = scmp.ne.s32.totalorder %s76, %s78
    %p85 = scmp.eq.s32.totalorder %s31, 1
    %p86 = por %p84, %p85
    %p87 = scmp.ne.s32.totalorder %s78, %s79
    %p88 = scmp.eq.s32.totalorder %s31, 0
    %p89 = por %p87, %p88
    %p90 = scmp.ne.s32.totalorder %s78, %s79
    %p91 = scmp.eq.s32.totalorder %s32, 1
    %p92 = por %p90, %p91
    %p94 = scmp.ne.s32.totalorder %s79, %s93
    %p95 = scmp.eq.s32.totalorder %s32, 0
    %p96 = por %p94, %p95
    %s98 = sadd.s32 %s97, 1
    %p101 = scmp.eq.s32.totalorder %s26, 1
    %p102 = scmp.ne.s32.totalorder %s97, %s99
    %p103 = scmp.eq.s32.totalorder %s26, 0
    %p104 = por %p102, %p103
    %p105 = scmp.ne.s32.totalorder %s97, %s99
    %p106 = scmp.eq.s32.totalorder %s31, 1
    %p107 = por %p105, %p106
    %p108 = scmp.ne.s32.totalorder %s99, %s100
    %p109 = scmp.eq.s32.totalorder %s31, 0
    %p110 = por %p108, %p109
    %p111 = scmp.ne.s32.totalorder %s99, %s100
    %p112 = scmp.eq.s32.totalorder %s32, 1
    %p113 = por %p111, %p112
    %p115 = scmp.ne.s32.totalorder %s100, %s114
    %p116 = scmp.eq.s32.totalorder %s32, 0
    %p117 = por %p115, %p116
    %s118 = ssub.s32 %s26, %s33
    %p119 = scmp.eq.s32.totalorder %s118, 0
    %s121 = sadd.s32 %s120, 1
    %s122 = scalar_select %p119, %s120, %s121
    %p125 = pneg %p119
    %p126 = scmp.eq.s32.totalorder %s26, 1
    %p127 = por %p125, %p126
    %p128 = scmp.ne.s32.totalorder %s120, %s123
    %p129 = scmp.eq.s32.totalorder %s26, 0
    %p130 = por %p128, %p129
    %p131 = scmp.ne.s32.totalorder %s120, %s123
    %p132 = scmp.eq.s32.totalorder %s31, 1
    %p133 = por %p131, %p132
    %p134 = scmp.ne.s32.totalorder %s123, %s124
    %p135 = scmp.eq.s32.totalorder %s31, 0
    %p136 = por %p134, %p135
    %p137 = scmp.ne.s32.totalorder %s123, %s124
    %p138 = scmp.eq.s32.totalorder %s32, 1
    %p139 = por %p137, %p138
    %p141 = scmp.ne.s32.totalorder %s124, %s140
    %p142 = scmp.eq.s32.totalorder %s32, 0
    %p143 = por %p141, %p142
    %s144 = ssub.s32 %s26, %s33
    %p145 = scmp.eq.s32.totalorder %s144, 0
    %s147 = sadd.s32 %s146, 1
    %s148 = scalar_select %p145, %s146, %s147
    %p151 = pneg %p145
    %p152 = scmp.eq.s32.totalorder %s26, 1
    %p153 = por %p151, %p152
    %p154 = scmp.ne.s32.totalorder %s146, %s149
    %p155 = scmp.eq.s32.totalorder %s26, 0
    %p156 = por %p154, %p155
    %p157 = scmp.ne.s32.totalorder %s146, %s149
    %p158 = scmp.eq.s32.totalorder %s31, 1
    %p159 = por %p157, %p158
    %p160 = scmp.ne.s32.totalorder %s149, %s150
    %p161 = scmp.eq.s32.totalorder %s31, 0
    %p162 = por %p160, %p161
    %p163 = scmp.ne.s32.totalorder %s149, %s150
    %p164 = scmp.eq.s32.totalorder %s32, 1
    %p165 = por %p163, %p164
    %p167 = scmp.ne.s32.totalorder %s150, %s166
    %p168 = scmp.eq.s32.totalorder %s32, 0
    %p169 = por %p167, %p168
    %s170 = ssub.s32 %s26, %s33
    %p171 = scmp.eq.s32.totalorder %s170, 0
    %s173 = sadd.s32 %s172, 1
    %s174 = scalar_select %p171, %s172, %s173
    %p177 = pneg %p171
    %p178 = scmp.eq.s32.totalorder %s26, 1
    %p179 = por %p177, %p178
    %p180 = scmp.ne.s32.totalorder %s172, %s175
    %p181 = scmp.eq.s32.totalorder %s26, 0
    %p182 = por %p180, %p181
    %p183 = scmp.ne.s32.totalorder %s172, %s175
    %p184 = scmp.eq.s32.totalorder %s31, 1
    %p185 = por %p183, %p184
    %p186 = scmp.ne.s32.totalorder %s175, %s176
    %p187 = scmp.eq.s32.totalorder %s31, 0
    %p188 = por %p186, %p187
    %p189 = scmp.ne.s32.totalorder %s175, %s176
    %p190 = scmp.eq.s32.totalorder %s32, 1
    %p191 = por %p189, %p190
    %p193 = scmp.ne.s32.totalorder %s176, %s192
    %p194 = scmp.eq.s32.totalorder %s32, 0
    %p195 = por %p193, %p194
    %s196 = ssub.s32 %s26, %s33
    %p197 = scmp.eq.s32.totalorder %s196, 0
    %s199 = sadd.s32 %s198, 1
    %s200 = scalar_select %p197, %s198, %s199
    %p203 = pneg %p197
    %p204 = scmp.eq.s32.totalorder %s26, 1
    %p205 = por %p203, %p204
    %p206 = scmp.ne.s32.totalorder %s198, %s201
    %p207 = scmp.eq.s32.totalorder %s26, 0
    %p208 = por %p206, %p207
    %p209 = scmp.ne.s32.totalorder %s198, %s201
    %p210 = scmp.eq.s32.totalorder %s31, 1
    %p211 = por %p209, %p210
    %p212 = scmp.ne.s32.totalorder %s201, %s202
    %p213 = scmp.eq.s32.totalorder %s31, 0
    %p214 = por %p212, %p213
    %p215 = scmp.ne.s32.totalorder %s201, %s202
    %p216 = scmp.eq.s32.totalorder %s32, 1
    %p217 = por %p215, %p216
    %p219 = scmp.ne.s32.totalorder %s202, %s218
    %p220 = scmp.eq.s32.totalorder %s32, 0
    %p221 = por %p219, %p220
    %s222 = ssub.s32 %s26, %s33
    %p223 = scmp.eq.s32.totalorder %s222, 0
    %s225 = sadd.s32 %s224, 1
    %s226 = scalar_select %p223, %s224, %s225
    %p229 = pneg %p223
    %p230 = scmp.eq.s32.totalorder %s26, 1
    %p231 = por %p229, %p230
    %p232 = scmp.ne.s32.totalorder %s224, %s227
    %p233 = scmp.eq.s32.totalorder %s26, 0
    %p234 = por %p232, %p233
    %p235 = scmp.ne.s32.totalorder %s224, %s227
    %p236 = scmp.eq.s32.totalorder %s31, 1
    %p237 = por %p235, %p236
    %p238 = scmp.ne.s32.totalorder %s227, %s228
    %p239 = scmp.eq.s32.totalorder %s31, 0
    %p240 = por %p238, %p239
    %p241 = scmp.ne.s32.totalorder %s227, %s228
    %p242 = scmp.eq.s32.totalorder %s32, 1
    %p243 = por %p241, %p242
    %p245 = scmp.ne.s32.totalorder %s228, %s244
    %p246 = scmp.eq.s32.totalorder %s32, 0
    %p247 = por %p245, %p246
    %s248 = ssub.s32 %s26, %s33
    %p249 = scmp.eq.s32.totalorder %s248, 0
    %s251 = sadd.s32 %s250, 1
    %s252 = scalar_select %p249, %s250, %s251
    %p255 = pneg %p249
    %p256 = scmp.eq.s32.totalorder %s26, 1
    %p257 = por %p255, %p256
    %p258 = scmp.ne.s32.totalorder %s250, %s253
    %p259 = scmp.eq.s32.totalorder %s26, 0
    %p260 = por %p258, %p259
    %p261 = scmp.ne.s32.totalorder %s250, %s253
    %p262 = scmp.eq.s32.totalorder %s31, 1
    %p263 = por %p261, %p262
    %p264 = scmp.ne.s32.totalorder %s253, %s254
    %p265 = scmp.eq.s32.totalorder %s31, 0
    %p266 = por %p264, %p265
    %p267 = scmp.ne.s32.totalorder %s253, %s254
    %p268 = scmp.eq.s32.totalorder %s32, 1
    %p269 = por %p267, %p268
    %p271 = scmp.ne.s32.totalorder %s254, %s270
    %p272 = scmp.eq.s32.totalorder %s32, 0
    %p273 = por %p271, %p272
    %s274 = ssub.s32 %s26, %s33
    %p275 = scmp.eq.s32.totalorder %s274, 0
    %s277 = sadd.s32 %s276, 1
    %s278 = scalar_select %p275, %s276, %s277
    %p281 = pneg %p275
    %p282 = scmp.eq.s32.totalorder %s26, 1
    %p283 = por %p281, %p282
    %p284 = scmp.ne.s32.totalorder %s276, %s279
    %p285 = scmp.eq.s32.totalorder %s26, 0
    %p286 = por %p284, %p285
    %p287 = scmp.ne.s32.totalorder %s276, %s279
    %p288 = scmp.eq.s32.totalorder %s31, 1
    %p289 = por %p287, %p288
    %p290 = scmp.ne.s32.totalorder %s279, %s280
    %p291 = scmp.eq.s32.totalorder %s31, 0
    %p292 = por %p290, %p291
    %p293 = scmp.ne.s32.totalorder %s279, %s280
    %p294 = scmp.eq.s32.totalorder %s32, 1
    %p295 = por %p293, %p294
    %p297 = scmp.ne.s32.totalorder %s280, %s296
    %p298 = scmp.eq.s32.totalorder %s32, 0
    %p299 = por %p297, %p298
    %s300 = ssub.s32 %s26, %s33
    %p301 = scmp.eq.s32.totalorder %s300, 0
    %s303 = sadd.s32 %s302, 1
    %s304 = scalar_select %p301, %s302, %s303
    %p307 = pneg %p301
    %p308 = scmp.eq.s32.totalorder %s26, 1
    %p309 = por %p307, %p308
    %p310 = scmp.ne.s32.totalorder %s302, %s305
    %p311 = scmp.eq.s32.totalorder %s26, 0
    %p312 = por %p310, %p311
    %p313 = scmp.ne.s32.totalorder %s302, %s305
    %p314 = scmp.eq.s32.totalorder %s31, 1
    %p315 = por %p313, %p314
    %p316 = scmp.ne.s32.totalorder %s305, %s306
    %p317 = scmp.eq.s32.totalorder %s31, 0
    %p318 = por %p316, %p317
    %p319 = scmp.ne.s32.totalorder %s305, %s306
    %p320 = scmp.eq.s32.totalorder %s32, 1
    %p321 = por %p319, %p320
    %p323 = scmp.ne.s32.totalorder %s306, %s322
    %p324 = scmp.eq.s32.totalorder %s32, 0
    %p325 = por %p323, %p324
    %s326 = ssub.s32 %s26, %s33
    %p327 = scmp.eq.s32.totalorder %s326, 0
    %s329 = sadd.s32 %s328, 1
    %s330 = scalar_select %p327, %s328, %s329
    %p333 = pneg %p327
    %p334 = scmp.eq.s32.totalorder %s26, 1
    %p335 = por %p333, %p334
    %p336 = scmp.ne.s32.totalorder %s328, %s331
    %p337 = scmp.eq.s32.totalorder %s26, 0
    %p338 = por %p336, %p337
    %p339 = scmp.ne.s32.totalorder %s328, %s331
    %p340 = scmp.eq.s32.totalorder %s31, 1
    %p341 = por %p339, %p340
    %p342 = scmp.ne.s32.totalorder %s331, %s332
    %p343 = scmp.eq.s32.totalorder %s31, 0
    %p344 = por %p342, %p343
    %p345 = scmp.ne.s32.totalorder %s331, %s332
    %p346 = scmp.eq.s32.totalorder %s32, 1
    %p347 = por %p345, %p346
    %p349 = scmp.ne.s32.totalorder %s332, %s348
    %p350 = scmp.eq.s32.totalorder %s32, 0
    %p351 = por %p349, %p350
    %s352 = ssub.s32 %s26, %s33
    %p353 = scmp.eq.s32.totalorder %s352, 0
    %s355 = sadd.s32 %s354, 1
    %s356 = scalar_select %p353, %s354, %s355
    %p359 = pneg %p353
    %p360 = scmp.eq.s32.totalorder %s26, 1
    %p361 = por %p359, %p360
    %p362 = scmp.ne.s32.totalorder %s354, %s357
    %p363 = scmp.eq.s32.totalorder %s26, 0
    %p364 = por %p362, %p363
    %p365 = scmp.ne.s32.totalorder %s354, %s357
    %p366 = scmp.eq.s32.totalorder %s31, 1
    %p367 = por %p365, %p366
    %p368 = scmp.ne.s32.totalorder %s357, %s358
    %p369 = scmp.eq.s32.totalorder %s31, 0
    %p370 = por %p368, %p369
    %p371 = scmp.ne.s32.totalorder %s357, %s358
    %p372 = scmp.eq.s32.totalorder %s32, 1
    %p373 = por %p371, %p372
    %p375 = scmp.ne.s32.totalorder %s358, %s374
    %p376 = scmp.eq.s32.totalorder %s32, 0
    %p377 = por %p375, %p376
    %s378 = ssub.s32 %s26, %s33
    %p379 = scmp.eq.s32.totalorder %s378, 0
    %s381 = sadd.s32 %s380, 1
    %s382 = scalar_select %p379, %s380, %s381
    %p385 = pneg %p379
    %p386 = scmp.eq.s32.totalorder %s26, 1
    %p387 = por %p385, %p386
    %p388 = scmp.ne.s32.totalorder %s380, %s383
    %p389 = scmp.eq.s32.totalorder %s26, 0
    %p390 = por %p388, %p389
    %p391 = scmp.ne.s32.totalorder %s380, %s383
    %p392 = scmp.eq.s32.totalorder %s31, 1
    %p393 = por %p391, %p392
    %p394 = scmp.ne.s32.totalorder %s383, %s384
    %p395 = scmp.eq.s32.totalorder %s31, 0
    %p396 = por %p394, %p395
    %p397 = scmp.ne.s32.totalorder %s383, %s384
    %p398 = scmp.eq.s32.totalorder %s32, 1
    %p399 = por %p397, %p398
    %p401 = scmp.ne.s32.totalorder %s384, %s400
    %p402 = scmp.eq.s32.totalorder %s32, 0
    %p403 = por %p401, %p402
    %s404 = ssub.s32 %s26, %s33
    %p405 = scmp.eq.s32.totalorder %s404, 0
    %s407 = sadd.s32 %s406, 1
    %s408 = scalar_select %p405, %s406, %s407
    %p411 = pneg %p405
    %p412 = scmp.eq.s32.totalorder %s26, 1
    %p413 = por %p411, %p412
    %p414 = scmp.ne.s32.totalorder %s406, %s409
    %p415 = scmp.eq.s32.totalorder %s26, 0
    %p416 = por %p414, %p415
    %p417 = scmp.ne.s32.totalorder %s406, %s409
    %p418 = scmp.eq.s32.totalorder %s31, 1
    %p419 = por %p417, %p418
    %p420 = scmp.ne.s32.totalorder %s409, %s410
    %p421 = scmp.eq.s32.totalorder %s31, 0
    %p422 = por %p420, %p421
    %p423 = scmp.ne.s32.totalorder %s409, %s410
    %p424 = scmp.eq.s32.totalorder %s32, 1
    %p425 = por %p423, %p424
    %p427 = scmp.ne.s32.totalorder %s410, %s426
    %p428 = scmp.eq.s32.totalorder %s32, 0
    %p429 = por %p427, %p428
    %s431 = sadd.s32 %s430, 1
    %p434 = scmp.eq.s32.totalorder %s26, 1
    %p435 = scmp.ne.s32.totalorder %s430, %s432
    %p436 = scmp.eq.s32.totalorder %s26, 0
    %p437 = por %p435, %p436
    %p438 = scmp.ne.s32.totalorder %s430, %s432
    %p439 = scmp.eq.s32.totalorder %s31, 1
    %p440 = por %p438, %p439
    %p441 = scmp.ne.s32.totalorder %s432, %s433
    %p442 = scmp.eq.s32.totalorder %s31, 0
    %p443 = por %p441, %p442
    %p444 = scmp.ne.s32.totalorder %s432, %s433
    %p445 = scmp.eq.s32.totalorder %s32, 1
    %p446 = por %p444, %p445
    %p448 = scmp.ne.s32.totalorder %s433, %s447
    %p449 = scmp.eq.s32.totalorder %s32, 0
    %p450 = por %p448, %p449
    %s452 = sadd.s32 %s451, 1
    %p455 = scmp.eq.s32.totalorder %s26, 1
    %p456 = scmp.ne.s32.totalorder %s451, %s453
    %p457 = scmp.eq.s32.totalorder %s26, 0
    %p458 = por %p456, %p457
    %p459 = scmp.ne.s32.totalorder %s451, %s453
    %p460 = scmp.eq.s32.totalorder %s31, 1
    %p461 = por %p459, %p460
    %p462 = scmp.ne.s32.totalorder %s453, %s454
    %p463 = scmp.eq.s32.totalorder %s31, 0
    %p464 = por %p462, %p463
    %p465 = scmp.ne.s32.totalorder %s453, %s454
    %p466 = scmp.eq.s32.totalorder %s32, 1
    %p467 = por %p465, %p466
    %p469 = scmp.ne.s32.totalorder %s454, %s468
    %p470 = scmp.eq.s32.totalorder %s32, 0
    %p471 = por %p469, %p470
    %s473 = sadd.s32 %s472, 1
    %p476 = scmp.eq.s32.totalorder %s26, 1
    %p477 = scmp.ne.s32.totalorder %s472, %s474
    %p478 = scmp.eq.s32.totalorder %s26, 0
    %p479 = por %p477, %p478
    %p480 = scmp.ne.s32.totalorder %s472, %s474
    %p481 = scmp.eq.s32.totalorder %s31, 1
    %p482 = por %p480, %p481
    %p483 = scmp.ne.s32.totalorder %s474, %s475
    %p484 = scmp.eq.s32.totalorder %s31, 0
    %p485 = por %p483, %p484
    %p486 = scmp.ne.s32.totalorder %s474, %s475
    %p487 = scmp.eq.s32.totalorder %s32, 1
    %p488 = por %p486, %p487
    %p490 = scmp.ne.s32.totalorder %s475, %s489
    %p491 = scmp.eq.s32.totalorder %s32, 0
    %p492 = por %p490, %p491
    %s494 = sadd.s32 %s493, 1
    %p497 = scmp.eq.s32.totalorder %s26, 1
    %p498 = scmp.ne.s32.totalorder %s493, %s495
    %p499 = scmp.eq.s32.totalorder %s26, 0
    %p500 = por %p498, %p499
    %p501 = scmp.ne.s32.totalorder %s493, %s495
    %p502 = scmp.eq.s32.totalorder %s31, 1
    %p503 = por %p501, %p502
    %p504 = scmp.ne.s32.totalorder %s495, %s496
    %p505 = scmp.eq.s32.totalorder %s31, 0
    %p506 = por %p504, %p505
    %p507 = scmp.ne.s32.totalorder %s495, %s496
    %p508 = scmp.eq.s32.totalorder %s32, 1
    %p509 = por %p507, %p508
    %p511 = scmp.ne.s32.totalorder %s496, %s510
    %p512 = scmp.eq.s32.totalorder %s32, 0
    %p513 = por %p511, %p512
    %p514 = scmp.le.s32.totalorder 1, %s26
    %p515 = scmp.lt.s32.totalorder %s26, 3
    %p516 = pnand %p514, %p515
    %p517 = pneg %p516
    // Predicated region
    $region9: #{layoutlmv2_forward.1} parent=5 // pred_check
      _
    $region10: #{layoutlmv2_forward.1} parent=5 // pred_check_branch
      %519 = sbr.rel (%p516) target = $region12
    $region11: #{layoutlmv2_forward.1} parent=5 // pred_region
      %s520 = ssub.s32 %s26, 1
      // Predicated region
      $region13: #{layoutlmv2_forward.1} parent=11 // pred_check
        %p521 = pneg %p47
      $region14: #{layoutlmv2_forward.1} parent=11 // pred_check_branch
        %523 = sbr.rel (%p521) target = $region16
      $region15: #{layoutlmv2_forward.1} parent=11 // pred_region
        _
      $region16: #{layoutlmv2_forward.1} parent=11 // pred_fallthru
        _
      // Predicated region
      $region17: #{layoutlmv2_forward.1} parent=11 // pred_check
        %p524 = pneg %p68
      $region18: #{layoutlmv2_forward.1} parent=11 // pred_check_branch
        %526 = sbr.rel (%p524) target = $region20
      $region19: #{layoutlmv2_forward.1} parent=11 // pred_region
        _
      $region20: #{layoutlmv2_forward.1} parent=11 // pred_fallthru
        _
      // Predicated region
      $region21: #{layoutlmv2_forward.1} parent=11 // pred_check
        %p527 = pneg %p89
      $region22: #{layoutlmv2_forward.1} parent=11 // pred_check_branch
        %529 = sbr.rel (%p527) target = $region24
      $region23: #{layoutlmv2_forward.1} parent=11 // pred_region
        _
      $region24: #{layoutlmv2_forward.1} parent=11 // pred_fallthru
        _
      // Predicated region
      $region25: #{layoutlmv2_forward.1} parent=11 // pred_check
        %p530 = pneg %p110
      $region26: #{layoutlmv2_forward.1} parent=11 // pred_check_branch
        %532 = sbr.rel (%p530) target = $region28
      $region27: #{layoutlmv2_forward.1} parent=11 // pred_region
        _
      $region28: #{layoutlmv2_forward.1} parent=11 // pred_fallthru
        _
      // Predicated region
      $region29: #{layoutlmv2_forward.1} parent=11 // pred_check
        %p533 = pneg %p443
      $region30: #{layoutlmv2_forward.1} parent=11 // pred_check_branch
        %535 = sbr.rel (%p533) target = $region32
      $region31: #{layoutlmv2_forward.1} parent=11 // pred_region
        _
      $region32: #{layoutlmv2_forward.1} parent=11 // pred_fallthru
        _
      // Predicated region
      $region33: #{layoutlmv2_forward.1} parent=11 // pred_check
        %p536 = pneg %p464
      $region34: #{layoutlmv2_forward.1} parent=11 // pred_check_branch
        %538 = sbr.rel (%p536) target = $region36
      $region35: #{layoutlmv2_forward.1} parent=11 // pred_region
        _
      $region36: #{layoutlmv2_forward.1} parent=11 // pred_fallthru
        _
    $region12: #{layoutlmv2_forward.1} parent=5 // pred_fallthru
      _
    %p539 = scmp.lt.s32.totalorder %s26, 2
    // Predicated region
    $region37: #{layoutlmv2_forward.1} parent=5 // pred_check
      %p540 = pneg %p539
    $region38: #{layoutlmv2_forward.1} parent=5 // pred_check_branch
      %542 = sbr.rel (%p540) target = $region40
    $region39: #{layoutlmv2_forward.1} parent=5 // pred_region
      // Predicated region
      $region41: #{layoutlmv2_forward.1} parent=39 // pred_check
        %p543 = pneg %p130
      $region42: #{layoutlmv2_forward.1} parent=39 // pred_check_branch
        %545 = sbr.rel (%p543) target = $region44
      $region43: #{layoutlmv2_forward.1} parent=39 // pred_region
        %p546 = scmp.lt.s32.totalorder %s26, 1
        %s547 = scalar_select %p546, %s26, 1
        %s548 = smul.addr %s547, 48
        %s549 = smul.addr %s548, 4
        %s550 = scalar_lea.vmem %s4, %s549
      $region44: #{layoutlmv2_forward.1} parent=39 // pred_fallthru
        _
      // Predicated region
      $region45: #{layoutlmv2_forward.1} parent=39 // pred_check
        %p551 = pneg %p156
      $region46: #{layoutlmv2_forward.1} parent=39 // pred_check_branch
        %553 = sbr.rel (%p551) target = $region48
      $region47: #{layoutlmv2_forward.1} parent=39 // pred_region
        %p554 = scmp.lt.s32.totalorder %s26, 1
        %s555 = scalar_select %p554, %s26, 1
        %s556 = smul.addr %s555, 3
        %s557 = scalar_lea.vmem %s5, %s556
      $region48: #{layoutlmv2_forward.1} parent=39 // pred_fallthru
        _
      // Predicated region
      $region49: #{layoutlmv2_forward.1} parent=39 // pred_check
        %p558 = pneg %p182
      $region50: #{layoutlmv2_forward.1} parent=39 // pred_check_branch
        %560 = sbr.rel (%p558) target = $region52
      $region51: #{layoutlmv2_forward.1} parent=39 // pred_region
        %p561 = scmp.lt.s32.totalorder %s26, 1
        %s562 = scalar_select %p561, %s26, 1
        %s563 = smul.addr %s562, 16
        %s564 = smul.addr %s563, 4
        %s565 = scalar_lea.vmem %s6, %s564
      $region52: #{layoutlmv2_forward.1} parent=39 // pred_fallthru
        _
      // Predicated region
      $region53: #{layoutlmv2_forward.1} parent=39 // pred_check
        %p566 = pneg %p208
      $region54: #{layoutlmv2_forward.1} parent=39 // pred_check_branch
        %568 = sbr.rel (%p566) target = $region56
      $region55: #{layoutlmv2_forward.1} parent=39 // pred_region
        %p569 = scmp.lt.s32.totalorder %s26, 1
        %s570 = scalar_select %p569, %s26, 1
        %s571 = scalar_lea.vmem %s7, %s570
      $region56: #{layoutlmv2_forward.1} parent=39 // pred_fallthru
        _
      // Predicated region
      $region57: #{layoutlmv2_forward.1} parent=39 // pred_check
        %p572 = pneg %p234
      $region58: #{layoutlmv2_forward.1} parent=39 // pred_check_branch
        %574 = sbr.rel (%p572) target = $region60
      $region59: #{layoutlmv2_forward.1} parent=39 // pred_region
        %p575 = scmp.lt.s32.totalorder %s26, 1
        %s576 = scalar_select %p575, %s26, 1
        %s577 = scalar_lea.vmem %s8, %s576
      $region60: #{layoutlmv2_forward.1} parent=39 // pred_fallthru
        _
      // Predicated region
      $region61: #{layoutlmv2_forward.1} parent=39 // pred_check
        %p578 = pneg %p260
      $region62: #{layoutlmv2_forward.1} parent=39 // pred_check_branch
        %580 = sbr.rel (%p578) target = $region64
      $region63: #{layoutlmv2_forward.1} parent=39 // pred_region
        %p581 = scmp.lt.s32.totalorder %s26, 1
        %s582 = scalar_select %p581, %s26, 1
        %s583 = scalar_lea.vmem %s9, %s582
      $region64: #{layoutlmv2_forward.1} parent=39 // pred_fallthru
        _
      // Predicated region
      $region65: #{layoutlmv2_forward.1} parent=39 // pred_check
        %p584 = pneg %p286
      $region66: #{layoutlmv2_forward.1} parent=39 // pred_check_branch
        %586 = sbr.rel (%p584) target = $region68
      $region67: #{layoutlmv2_forward.1} parent=39 // pred_region
        %p587 = scmp.lt.s32.totalorder %s26, 1
        %s588 = scalar_select %p587, %s26, 1
        %s589 = smul.addr %s588, 16
        %s590 = smul.addr %s589, 4
        %s591 = scalar_lea.vmem %s10, %s590
      $region68: #{layoutlmv2_forward.1} parent=39 // pred_fallthru
        _
      // Predicated region
      $region69: #{layoutlmv2_forward.1} parent=39 // pred_check
        %p592 = pneg %p312
      $region70: #{layoutlmv2_forward.1} parent=39 // pred_check_branch
        %594 = sbr.rel (%p592) target = $region72
      $region71: #{layoutlmv2_forward.1} parent=39 // pred_region
        %p595 = scmp.lt.s32.totalorder %s26, 1
        %s596 = scalar_select %p595, %s26, 1
        %s597 = scalar_lea.vmem %s11, %s596
      $region72: #{layoutlmv2_forward.1} parent=39 // pred_fallthru
        _
      // Predicated region
      $region73: #{layoutlmv2_forward.1} parent=39 // pred_check
        %p598 = pneg %p338
      $region74: #{layoutlmv2_forward.1} parent=39 // pred_check_branch
        %600 = sbr.rel (%p598) target = $region76
      $region75: #{layoutlmv2_forward.1} parent=39 // pred_region
        %p601 = scmp.lt.s32.totalorder %s26, 1
        %s602 = scalar_select %p601, %s26, 1
        %s603 = smul.addr %s602, 16
        %s604 = smul.addr %s603, 4
        %s605 = scalar_lea.vmem %s12, %s604
      $region76: #{layoutlmv2_forward.1} parent=39 // pred_fallthru
        _
      // Predicated region
      $region77: #{layoutlmv2_forward.1} parent=39 // pred_check
        %p606 = pneg %p364
      $region78: #{layoutlmv2_forward.1} parent=39 // pred_check_branch
        %608 = sbr.rel (%p606) target = $region80
      $region79: #{layoutlmv2_forward.1} parent=39 // pred_region
        %p609 = scmp.lt.s32.totalorder %s26, 1
        %s610 = scalar_select %p609, %s26, 1
        %s611 = scalar_lea.vmem %s13, %s610
      $region80: #{layoutlmv2_forward.1} parent=39 // pred_fallthru
        _
      // Predicated region
      $region81: #{layoutlmv2_forward.1} parent=39 // pred_check
        %p612 = pneg %p390
      $region82: #{layoutlmv2_forward.1} parent=39 // pred_check_branch
        %614 = sbr.rel (%p612) target = $region84
      $region83: #{layoutlmv2_forward.1} parent=39 // pred_region
        %p615 = scmp.lt.s32.totalorder %s26, 1
        %s616 = scalar_select %p615, %s26, 1
        %s617 = scalar_lea.vmem %s14, %s616
      $region84: #{layoutlmv2_forward.1} parent=39 // pred_fallthru
        _
      // Predicated region
      $region85: #{layoutlmv2_forward.1} parent=39 // pred_check
        %p618 = pneg %p416
      $region86: #{layoutlmv2_forward.1} parent=39 // pred_check_branch
        %620 = sbr.rel (%p618) target = $region88
      $region87: #{layoutlmv2_forward.1} parent=39 // pred_region
        %p621 = scmp.lt.s32.totalorder %s26, 1
        %s622 = scalar_select %p621, %s26, 1
        %s623 = scalar_lea.vmem %s15, %s622
      $region88: #{layoutlmv2_forward.1} parent=39 // pred_fallthru
        _
    $region40: #{layoutlmv2_forward.1} parent=5 // pred_fallthru
      _
    %p624 = scmp.le.s32.totalorder 1, %s26
    %p625 = scmp.lt.s32.totalorder %s26, 3
    %p626 = pnand %p624, %p625
    %p627 = pneg %p626
    // Predicated region
    $region89: #{layoutlmv2_forward.1} parent=5 // pred_check
      _
    $region90: #{layoutlmv2_forward.1} parent=5 // pred_check_branch
      %629 = sbr.rel (%p626) target = $region92
    $region91: #{layoutlmv2_forward.1} parent=5 // pred_region
      %s630 = ssub.s32 %s26, 1
      %p631 = pneg %p47
      %p632 = pneg %p44
      %p633 = pneg %p68
      %p634 = pneg %p65
      %p635 = pneg %p89
      %p636 = pneg %p86
      %p637 = pneg %p110
      %p638 = pneg %p107
      %p639 = scmp.lt.s32.totalorder %s31, 1
      %s640 = scalar_select %p639, %s31, 1
      %s641 = smul.addr %s640, 48
      %s642 = smul.addr %s641, 4
      %s643 = scalar_lea.vmem %s4, %s642
      %p644 = pneg %p136
      %p645 = pneg %p133
      %p646 = scmp.lt.s32.totalorder %s31, 1
      %s647 = scalar_select %p646, %s31, 1
      %s648 = smul.addr %s647, 3
      %s649 = scalar_lea.vmem %s5, %s648
      %p650 = pneg %p162
      %p651 = pneg %p159
      %p652 = scmp.lt.s32.totalorder %s31, 1
      %s653 = scalar_select %p652, %s31, 1
      %s654 = smul.addr %s653, 16
      %s655 = smul.addr %s654, 4
      %s656 = scalar_lea.vmem %s6, %s655
      %p657 = pneg %p188
      %p658 = pneg %p185
      %p659 = scmp.lt.s32.totalorder %s31, 1
      %s660 = scalar_select %p659, %s31, 1
      %s661 = scalar_lea.vmem %s7, %s660
      %p662 = pneg %p214
      %p663 = pneg %p211
      %p664 = scmp.lt.s32.totalorder %s31, 1
      %s665 = scalar_select %p664, %s31, 1
      %s666 = scalar_lea.vmem %s8, %s665
      %p667 = pneg %p240
      %p668 = pneg %p237
      %p669 = scmp.lt.s32.totalorder %s31, 1
      %s670 = scalar_select %p669, %s31, 1
      %s671 = scalar_lea.vmem %s9, %s670
      %p672 = pneg %p266
      %p673 = pneg %p263
      %p674 = scmp.lt.s32.totalorder %s31, 1
      %s675 = scalar_select %p674, %s31, 1
      %s676 = smul.addr %s675, 16
      %s677 = smul.addr %s676, 4
      %s678 = scalar_lea.vmem %s10, %s677
      %p679 = pneg %p292
      %p680 = pneg %p289
      %p681 = scmp.lt.s32.totalorder %s31, 1
      %s682 = scalar_select %p681, %s31, 1
      %s683 = scalar_lea.vmem %s11, %s682
      %p684 = pneg %p318
      %p685 = pneg %p315
      %p686 = scmp.lt.s32.totalorder %s31, 1
      %s687 = scalar_select %p686, %s31, 1
      %s688 = smul.addr %s687, 16
      %s689 = smul.addr %s688, 4
      %s690 = scalar_lea.vmem %s12, %s689
      %p691 = pneg %p344
      %p692 = pneg %p341
      %p693 = scmp.lt.s32.totalorder %s31, 1
      %s694 = scalar_select %p693, %s31, 1
      %s695 = scalar_lea.vmem %s13, %s694
      %p696 = pneg %p370
      %p697 = pneg %p367
      %p698 = scmp.lt.s32.totalorder %s31, 1
      %s699 = scalar_select %p698, %s31, 1
      %s700 = scalar_lea.vmem %s14, %s699
      %p701 = pneg %p396
      %p702 = pneg %p393
      %p703 = scmp.lt.s32.totalorder %s31, 1
      %s704 = scalar_select %p703, %s31, 1
      %s705 = scalar_lea.vmem %s15, %s704
      %p706 = pneg %p422
      %p707 = pneg %p419
      %p708 = pneg %p443
      %p709 = pneg %p440
      %p710 = pneg %p464
      %p711 = pneg %p461
      %p712 = pneg %p485
      %p713 = pneg %p482
      %p714 = pneg %p506
      %p715 = pneg %p503
      %p716 = scmp.lt.s32.totalorder %s31, 1
      %s717 = scalar_select %p716, %s31, 1
      %s718 = smul.addr %s717, 48
      %s719 = smul.addr %s718, 4
      %s720 = scalar_lea.vmem %s4, %s719
      %p721 = scmp.lt.s32.totalorder %s31, 1
      %s722 = scalar_select %p721, %s31, 1
      %s723 = smul.addr %s722, 3
      %s724 = scalar_lea.vmem %s5, %s723
      %p725 = scmp.lt.s32.totalorder %s31, 1
      %s726 = scalar_select %p725, %s31, 1
      %s727 = smul.addr %s726, 16
      %s728 = smul.addr %s727, 4
      %s729 = scalar_lea.vmem %s6, %s728
      %p730 = scmp.lt.s32.totalorder %s31, 1
      %s731 = scalar_select %p730, %s31, 1
      %s732 = scalar_lea.vmem %s7, %s731
      %p733 = scmp.lt.s32.totalorder %s31, 1
      %s734 = scalar_select %p733, %s31, 1
      %s735 = scalar_lea.vmem %s8, %s734
      %p736 = scmp.lt.s32.totalorder %s31, 1
      %s737 = scalar_select %p736, %s31, 1
      %s738 = scalar_lea.vmem %s9, %s737
      %p739 = scmp.lt.s32.totalorder %s31, 1
      %s740 = scalar_select %p739, %s31, 1
      %s741 = smul.addr %s740, 16
      %s742 = smul.addr %s741, 4
      %s743 = scalar_lea.vmem %s10, %s742
      %p744 = scmp.lt.s32.totalorder %s31, 1
      %s745 = scalar_select %p744, %s31, 1
      %s746 = scalar_lea.vmem %s11, %s745
      %p747 = scmp.lt.s32.totalorder %s31, 1
      %s748 = scalar_select %p747, %s31, 1
      %s749 = smul.addr %s748, 16
      %s750 = smul.addr %s749, 4
      %s751 = scalar_lea.vmem %s12, %s750
      %p752 = scmp.lt.s32.totalorder %s31, 1
      %s753 = scalar_select %p752, %s31, 1
      %s754 = scalar_lea.vmem %s13, %s753
      %p755 = scmp.lt.s32.totalorder %s31, 1
      %s756 = scalar_select %p755, %s31, 1
      %s757 = scalar_lea.vmem %s14, %s756
      %p758 = scmp.lt.s32.totalorder %s31, 1
      %s759 = scalar_select %p758, %s31, 1
      %s760 = scalar_lea.vmem %s15, %s759
      %v762 = vlaneseq
      %v763 = vand.u32 %v762, 127
      %vm764 = vcmp.lt.s32.totalorder %v763, 48
      %v765 = vsel %vm764, 1, 0
      %v766 = vcvt.s32.f32 %v765
      %p767 = scmp.eq.s32.totalorder %s31, 0
      // Predicated region
      $region93: #{layoutlmv2_forward.1} parent=91 // pred_check
        %p768 = pneg %p767
      $region94: #{layoutlmv2_forward.1} parent=91 // pred_check_branch
        %770 = sbr.rel (%p768) target = $region96
      $region95: #{layoutlmv2_forward.1} parent=91 // pred_region
        %v771 = vld [vmem:[%s0] sm:$0xff]
        %v772 = vld [vmem:[%s0 + $0x8] sm:$0xff]
        %v773 = vld [vmem:[%s0 + $0x10] sm:$0xff]
        %v774 = vld [vmem:[%s0 + $0x18] sm:$0xff]
        %v775 = vld [vmem:[%s0 + $0x20] sm:$0xff]
        %v776 = vld [vmem:[%s0 + $0x28] sm:$0xff]
        %v777 = vld [vmem:[%s0 + $0x30] sm:$0xff]
        %v778 = vld [vmem:[%s0 + $0x38] sm:$0xff]
        %v779 = vld [vmem:[%s1] sm:$0xff]
        %v780 = vld [vmem:[%s1 + $0x8] sm:$0xff]
        %v781 = vld [vmem:[%s1 + $0x10] sm:$0xff]
        %v782 = vld [vmem:[%s1 + $0x18] sm:$0xff]
        %v783 = vld [vmem:[%s1 + $0x20] sm:$0xff]
        %v784 = vld [vmem:[%s1 + $0x28] sm:$0xff]
        %v785 = vld [vmem:[%s1 + $0x30] sm:$0xff]
        %v786 = vld [vmem:[%s1 + $0x38] sm:$0xff]
        %v787 = vld [vmem:[%s2] sm:$0xff]
        %v788 = vld [vmem:[%s2 + $0x8] sm:$0xff]
        %v789 = vld [vmem:[%s2 + $0x10] sm:$0xff]
        %v790 = vld [vmem:[%s2 + $0x18] sm:$0xff]
        %v791 = vld [vmem:[%s2 + $0x20] sm:$0xff]
        %v792 = vld [vmem:[%s2 + $0x28] sm:$0xff]
        %v793 = vld [vmem:[%s2 + $0x30] sm:$0xff]
        %v794 = vld [vmem:[%s2 + $0x38] sm:$0xff]
        %v795 = vmul.f32 %v771, %v766
        %v796 = vmul.f32 %v772, %v766
        %v797 = vmul.f32 %v773, %v766
        %v798 = vmul.f32 %v774, %v766
        %v799 = vmul.f32 %v775, %v766
        %v800 = vmul.f32 %v776, %v766
        %v801 = vmul.f32 %v777, %v766
        %v802 = vmul.f32 %v778, %v766
        %803 = vadd.xlane.f32.xlu0 %v795
        %v804 = vpop.xlane.xlu0 %803
        %805 = vadd.xlane.f32.xlu0 %v796
        %v806 = vpop.xlane.xlu0 %805
        %807 = vadd.xlane.f32.xlu0 %v797
        %v808 = vpop.xlane.xlu0 %807
        %809 = vadd.xlane.f32.xlu0 %v798
        %v810 = vpop.xlane.xlu0 %809
        %811 = vadd.xlane.f32.xlu0 %v799
        %v812 = vpop.xlane.xlu0 %811
        %813 = vadd.xlane.f32.xlu0 %v800
        %v814 = vpop.xlane.xlu0 %813
        %815 = vadd.xlane.f32.xlu0 %v801
        %v816 = vpop.xlane.xlu0 %815
        %817 = vadd.xlane.f32.xlu0 %v802
        %v818 = vpop.xlane.xlu0 %817
        %v819 = vmul.f32 %v804, 0.020833334
        %v820 = vmul.f32 %v806, 0.020833334
        %v821 = vmul.f32 %v808, 0.020833334
        %v822 = vmul.f32 %v810, 0.020833334
        %v823 = vmul.f32 %v812, 0.020833334
        %v824 = vmul.f32 %v814, 0.020833334
        %v825 = vmul.f32 %v816, 0.020833334
        %v826 = vmul.f32 %v818, 0.020833334
        %v827 = vsub.f32 %v771, %v819
        %v828 = vsub.f32 %v772, %v820
        %v829 = vsub.f32 %v773, %v821
        %v830 = vsub.f32 %v774, %v822
        %v831 = vsub.f32 %v775, %v823
        %v832 = vsub.f32 %v776, %v824
        %v833 = vsub.f32 %v777, %v825
        %v834 = vsub.f32 %v778, %v826
        %v835 = vmul.f32 %v827, %v766
        %v836 = vmul.f32 %v828, %v766
        %v837 = vmul.f32 %v829, %v766
        %v838 = vmul.f32 %v830, %v766
        %v839 = vmul.f32 %v831, %v766
        %v840 = vmul.f32 %v832, %v766
        %v841 = vmul.f32 %v833, %v766
        %v842 = vmul.f32 %v834, %v766
        %v843 = vmul.f32 %v835, %v835
        %v844 = vmul.f32 %v836, %v836
        %v845 = vmul.f32 %v837, %v837
        %v846 = vmul.f32 %v838, %v838
        %v847 = vmul.f32 %v839, %v839
        %v848 = vmul.f32 %v840, %v840
        %v849 = vmul.f32 %v841, %v841
        %v850 = vmul.f32 %v842, %v842
        %851 = vadd.xlane.f32.xlu0 %v843
        %v852 = vpop.xlane.xlu0 %851
        %853 = vadd.xlane.f32.xlu0 %v844
        %v854 = vpop.xlane.xlu0 %853
        %855 = vadd.xlane.f32.xlu0 %v845
        %v856 = vpop.xlane.xlu0 %855
        %857 = vadd.xlane.f32.xlu0 %v846
        %v858 = vpop.xlane.xlu0 %857
        %859 = vadd.xlane.f32.xlu0 %v847
        %v860 = vpop.xlane.xlu0 %859
        %861 = vadd.xlane.f32.xlu0 %v848
        %v862 = vpop.xlane.xlu0 %861
        %863 = vadd.xlane.f32.xlu0 %v849
        %v864 = vpop.xlane.xlu0 %863
        %865 = vadd.xlane.f32.xlu0 %v850
        %v866 = vpop.xlane.xlu0 %865
        %v867 = vmul.f32 %v852, 0.020833334
        %v868 = vmul.f32 %v854, 0.020833334
        %v869 = vmul.f32 %v856, 0.020833334
        %v870 = vmul.f32 %v858, 0.020833334
        %v871 = vmul.f32 %v860, 0.020833334
        %v872 = vmul.f32 %v862, 0.020833334
        %v873 = vmul.f32 %v864, 0.020833334
        %v874 = vmul.f32 %v866, 0.020833334
        %v875 = vadd.f32 %v867, 1e-12
        %v876 = vadd.f32 %v868, 1e-12
        %v877 = vadd.f32 %v869, 1e-12
        %v878 = vadd.f32 %v870, 1e-12
        %v879 = vadd.f32 %v871, 1e-12
        %v880 = vadd.f32 %v872, 1e-12
        %v881 = vadd.f32 %v873, 1e-12
        %v882 = vadd.f32 %v874, 1e-12
        %v883 = vrsqrt.pop %v875
        %v884 = vrsqrt.pop %v876
        %v885 = vrsqrt.pop %v877
        %v886 = vrsqrt.pop %v878
        %v887 = vrsqrt.pop %v879
        %v888 = vrsqrt.pop %v880
        %v889 = vrsqrt.pop %v881
        %v890 = vrsqrt.pop %v882
        %v891 = vmul.f32 %v835, %v883
        %v892 = vmul.f32 %v836, %v884
        %v893 = vmul.f32 %v837, %v885
        %v894 = vmul.f32 %v838, %v886
        %v895 = vmul.f32 %v839, %v887
        %v896 = vmul.f32 %v840, %v888
        %v897 = vmul.f32 %v841, %v889
        %v898 = vmul.f32 %v842, %v890
        %v899 = vmul.f32 %v891, %v779
        %v900 = vmul.f32 %v892, %v780
        %v901 = vmul.f32 %v893, %v781
        %v902 = vmul.f32 %v894, %v782
        %v903 = vmul.f32 %v895, %v783
        %v904 = vmul.f32 %v896, %v784
        %v905 = vmul.f32 %v897, %v785
        %v906 = vmul.f32 %v898, %v786
        %v907 = vadd.f32 %v899, %v787
        %v908 = vadd.f32 %v900, %v788
        %v909 = vadd.f32 %v901, %v789
        %v910 = vadd.f32 %v902, %v790
        %v911 = vadd.f32 %v903, %v791
        %v912 = vadd.f32 %v904, %v792
        %v913 = vadd.f32 %v905, %v793
        %v914 = vadd.f32 %v906, %v794
      $region96: #{layoutlmv2_forward.1} parent=91 // pred_fallthru
        %v915 = vphi 0, %v907
        %v916 = vphi 0, %v908
        %v917 = vphi 0, %v909
        %v918 = vphi 0, %v910
        %v919 = vphi 0, %v911
        %v920 = vphi 0, %v912
        %v921 = vphi 0, %v913
        %v922 = vphi 0, %v914
      %p923 = pneg %p767
      // Predicated region
      $region97: #{layoutlmv2_forward.1} parent=91 // pred_check
        _
      $region98: #{layoutlmv2_forward.1} parent=91 // pred_check_branch
        %925 = sbr.rel (%p767) target = $region100
      $region99: #{layoutlmv2_forward.1} parent=91 // pred_region
        %v926 = vld [vmem:[%s18] sm:$0xff]
        %v927 = vld [vmem:[%s18 + $0x8] sm:$0xff]
        %v928 = vld [vmem:[%s18 + $0x10] sm:$0xff]
        %v929 = vld [vmem:[%s18 + $0x18] sm:$0xff]
        %v930 = vld [vmem:[%s18 + $0x20] sm:$0xff]
        %v931 = vld [vmem:[%s18 + $0x28] sm:$0xff]
        %v932 = vld [vmem:[%s18 + $0x30] sm:$0xff]
        %v933 = vld [vmem:[%s18 + $0x38] sm:$0xff]
      $region100: #{layoutlmv2_forward.1} parent=91 // pred_fallthru
        %v934 = vphi %v915, %v926
        %v935 = vphi %v916, %v927
        %v936 = vphi %v917, %v928
        %v937 = vphi %v918, %v929
        %v938 = vphi %v919, %v930
        %v939 = vphi %v920, %v931
        %v940 = vphi %v921, %v932
        %v941 = vphi %v922, %v933
      %v942 = vpack.c.bf16 %v935, %v934
      %v943 = vpack.c.bf16 %v937, %v936
      %v944 = vpack.c.bf16 %v939, %v938
      %v945 = vpack.c.bf16 %v941, %v940
      %v946 = vld [vmem:[%s720] sm:$0xff]
      %v947 = vld [vmem:[%s720 + $0x8] sm:$0xf]
      %v948 = vld [vmem:[%s720 + $0xc] sm:$0xff]
      %v949 = vld [vmem:[%s720 + $0x14] sm:$0xf]
      %v950 = vld [vmem:[%s720 + $0x18] sm:$0xff]
      %v951 = vld [vmem:[%s720 + $0x20] sm:$0xf]
      %v952 = vld [vmem:[%s720 + $0x24] sm:$0xff]
      %v953 = vld [vmem:[%s720 + $0x2c] sm:$0xf]
      %v954 = vld [vmem:[%s720 + $0x30] sm:$0xff]
      %v955 = vld [vmem:[%s720 + $0x38] sm:$0xf]
      %v956 = vld [vmem:[%s720 + $0x3c] sm:$0xff]
      %v957 = vld [vmem:[%s720 + $0x44] sm:$0xf]
      %v958 = vld [vmem:[%s720 + $0x48] sm:$0xff]
      %v959 = vld [vmem:[%s720 + $0x50] sm:$0xf]
      %v960 = vld [vmem:[%s720 + $0x54] sm:$0xff]
      %v961 = vld [vmem:[%s720 + $0x5c] sm:$0xf]
      %v962 = vld [vmem:[%s720 + $0x60] sm:$0xff]
      %v963 = vld [vmem:[%s720 + $0x68] sm:$0xf]
      %v964 = vld [vmem:[%s720 + $0x6c] sm:$0xff]
      %v965 = vld [vmem:[%s720 + $0x74] sm:$0xf]
      %v966 = vld [vmem:[%s720 + $0x78] sm:$0xff]
      %v967 = vld [vmem:[%s720 + $0x80] sm:$0xf]
      %v968 = vld [vmem:[%s720 + $0x84] sm:$0xff]
      %v969 = vld [vmem:[%s720 + $0x8c] sm:$0xf]
      %v970 = vld [vmem:[%s720 + $0x90] sm:$0xff]
      %v971 = vld [vmem:[%s720 + $0x98] sm:$0xf]
      %v972 = vld [vmem:[%s720 + $0x9c] sm:$0xff]
      %v973 = vld [vmem:[%s720 + $0xa4] sm:$0xf]
      %v974 = vld [vmem:[%s720 + $0xa8] sm:$0xff]
      %v975 = vld [vmem:[%s720 + $0xb0] sm:$0xf]
      %v976 = vld [vmem:[%s720 + $0xb4] sm:$0xff]
      %v977 = vld [vmem:[%s720 + $0xbc] sm:$0xf]
      %v978 = vld [vmem:[%s724] sm:$0x7]
      %v980 = vlaneseq
      %v981 = vshrl.u32 %v980, 7
      %v982 = vsub.s32 0, %v981
      %v983 = vrot.slane %v978, %v982
      %v984 = vlaneseq
      %v985 = vshrl.u32 %v984, 7
      %v986 = vsub.s32 1, %v985
      %v987 = vrot.slane %v978, %v986
      %v988 = vlaneseq
      %v989 = vshrl.u32 %v988, 7
      %v990 = vsub.s32 2, %v989
      %v991 = vrot.slane %v978, %v990
      %v1027 = vunpack.c.l.b16 %v946
      %v1028 = vunpack.c.h.b16 %v946
      %v1029 = vunpack.c.l.b16 %v947
      %v1030 = vunpack.c.l.b16 %v948
      %v1031 = vunpack.c.h.b16 %v948
      %v1032 = vunpack.c.l.b16 %v949
      %v1033 = vunpack.c.l.b16 %v950
      %v1034 = vunpack.c.h.b16 %v950
      %v1035 = vunpack.c.l.b16 %v951
      %v1036 = vunpack.c.l.b16 %v952
      %v1037 = vunpack.c.h.b16 %v952
      %v1038 = vunpack.c.l.b16 %v953
      %v1039 = vunpack.c.l.b16 %v954
      %v1040 = vunpack.c.h.b16 %v954
      %v1041 = vunpack.c.l.b16 %v955
      %v1042 = vunpack.c.l.b16 %v956
      %v1043 = vunpack.c.h.b16 %v956
      %v1044 = vunpack.c.l.b16 %v957
      %v1045 = vunpack.c.l.b16 %v958
      %v1046 = vunpack.c.h.b16 %v958
      %v1047 = vunpack.c.l.b16 %v959
      %v1048 = vunpack.c.l.b16 %v960
      %v1049 = vunpack.c.h.b16 %v960
      %v1050 = vunpack.c.l.b16 %v961
      %v1051 = vunpack.c.l.b16 %v962
      %v1052 = vunpack.c.h.b16 %v962
      %v1053 = vunpack.c.l.b16 %v963
      %v1054 = vunpack.c.l.b16 %v964
      %v1055 = vunpack.c.h.b16 %v964
      %v1056 = vunpack.c.l.b16 %v965
      %v1057 = vunpack.c.l.b16 %v966
      %v1058 = vunpack.c.h.b16 %v966
      %v1059 = vunpack.c.l.b16 %v967
      %v1060 = vunpack.c.l.b16 %v968
      %v1061 = vunpack.c.h.b16 %v968
      %v1062 = vunpack.c.l.b16 %v969
      %v1063 = vunpack.c.l.b16 %v970
      %v1064 = vunpack.c.h.b16 %v970
      %v1065 = vunpack.c.l.b16 %v971
      %v1066 = vunpack.c.l.b16 %v972
      %v1067 = vunpack.c.h.b16 %v972
      %v1068 = vunpack.c.l.b16 %v973
      %v1069 = vunpack.c.l.b16 %v974
      %v1070 = vunpack.c.h.b16 %v974
      %v1071 = vunpack.c.l.b16 %v975
      %v1072 = vunpack.c.l.b16 %v976
      %v1073 = vunpack.c.h.b16 %v976
      %v1074 = vunpack.c.l.b16 %v977
      %v1075 = vpack.c.b16 %v1030, %v1027
      %v1076 = vpack.c.b16 %v1031, %v1028
      %v1077 = vpack.c.b16 %v1032, %v1029
      %v1078 = vpack.c.b16 %v1036, %v1033
      %v1079 = vpack.c.b16 %v1037, %v1034
      %v1080 = vpack.c.b16 %v1038, %v1035
      %v1081 = vpack.c.b16 %v1042, %v1039
      %v1082 = vpack.c.b16 %v1043, %v1040
      %v1083 = vpack.c.b16 %v1044, %v1041
      %v1084 = vpack.c.b16 %v1048, %v1045
      %v1085 = vpack.c.b16 %v1049, %v1046
      %v1086 = vpack.c.b16 %v1050, %v1047
      %v1087 = vpack.c.b16 %v1054, %v1051
      %v1088 = vpack.c.b16 %v1055, %v1052
      %v1089 = vpack.c.b16 %v1056, %v1053
      %v1090 = vpack.c.b16 %v1060, %v1057
      %v1091 = vpack.c.b16 %v1061, %v1058
      %v1092 = vpack.c.b16 %v1062, %v1059
      %v1093 = vpack.c.b16 %v1066, %v1063
      %v1094 = vpack.c.b16 %v1067, %v1064
      %v1095 = vpack.c.b16 %v1068, %v1065
      %v1096 = vpack.c.b16 %v1072, %v1069
      %v1097 = vpack.c.b16 %v1073, %v1070
      %v1098 = vpack.c.b16 %v1074, %v1071
      %1123 = vmatprep.subr.bf16.mxu0 %v1097
      %1124 = vmatpush1.bf16.msra.mxu0 %v1096
      %1125 = vmatprep.subr.bf16.mxu0 %v1094
      %1126 = vmatpush1.bf16.msra.mxu0 %v1093
      %1127 = vmatprep.subr.bf16.mxu0 %v1091
      %1128 = vmatpush1.bf16.msra.mxu0 %v1090
      %1129 = vmatprep.subr.bf16.mxu0 %v1088
      %1130 = vmatpush1.bf16.msra.mxu0 %v1087
      %1131 = vmatprep.subr.bf16.mxu0 %v1085
      %1132 = vmatpush1.bf16.msra.mxu0 %v1084
      %1133 = vmatprep.subr.bf16.mxu0 %v1082
      %1134 = vmatpush1.bf16.msra.mxu0 %v1081
      %1135 = vmatprep.subr.bf16.mxu0 %v1079
      %1136 = vmatpush1.bf16.msra.mxu0 %v1078
      %1137 = vmatprep.subr.bf16.mxu0 %v1076
      %1138 = vmatpush1.bf16.msra.mxu0 %v1075
      %1139 = vmatprep.subr.bf16.mxu0 0
      %1140 = vmatpush2.bf16.msra.mxu0 0
      %1141 = vmatprep.subr.bf16.mxu0 0
      %1142 = vmatpush2.bf16.msra.mxu0 0
      %1143 = vmatprep.subr.bf16.mxu0 0
      %1144 = vmatpush2.bf16.msra.mxu0 0
      %1145 = vmatprep.subr.bf16.mxu0 0
      %1146 = vmatpush2.bf16.msra.mxu0 0
      %1147 = vmatprep.subr.bf16.mxu0 0
      %1148 = vmatpush2.bf16.msra.mxu0 0
      %1149 = vmatprep.subr.bf16.mxu0 0
      %1150 = vmatpush2.bf16.msra.mxu0 0
      %1151 = vmatprep.subr.bf16.mxu0 0
      %1152 = vmatpush2.bf16.msra.mxu0 0
      %1153 = vmatprep.subr.bf16.mxu0 0
      %1154 = vmatpush2.bf16.msra.mxu0 0
      %1155 = vmatprep.mubr.bf16.mxu0 0
      %1156 = vmatmul.mubr.bf16.gmra.mxu0 %v942
      %v1157 = vpop.f32.mrf.mxu0
      %v1158 = vadd.f32 %v983, %v1157
      %v1159 = vpop.f32.mrf.mxu0
      %v1160 = vadd.f32 %v987, %v1159
      %v1161 = vpop.f32.mrf.mxu0
      %v1162 = vadd.f32 %v983, %v1161
      %v1163 = vpop.f32.mrf.mxu0
      %v1164 = vadd.f32 %v987, %v1163
      %1165 = vmatprep.mubr.bf16.mxu0 0
      %1166 = vmatmul.mubr.bf16.gmra.mxu0 %v943
      %v1167 = vpop.f32.mrf.mxu0
      %v1168 = vadd.f32 %v983, %v1167
      %v1169 = vpop.f32.mrf.mxu0
      %v1170 = vadd.f32 %v987, %v1169
      %v1171 = vpop.f32.mrf.mxu0
      %v1172 = vadd.f32 %v983, %v1171
      %v1173 = vpop.f32.mrf.mxu0
      %v1174 = vadd.f32 %v987, %v1173
      %1175 = vmatprep.mubr.bf16.mxu0 0
      %1176 = vmatmul.mubr.bf16.gmra.mxu0 %v944
      %v1177 = vpop.f32.mrf.mxu0
      %v1178 = vadd.f32 %v983, %v1177
      %v1179 = vpop.f32.mrf.mxu0
      %v1180 = vadd.f32 %v987, %v1179
      %v1181 = vpop.f32.mrf.mxu0
      %v1182 = vadd.f32 %v983, %v1181
      %v1183 = vpop.f32.mrf.mxu0
      %v1184 = vadd.f32 %v987, %v1183
      %1185 = vmatprep.mubr.bf16.mxu0 0
      %1186 = vmatmul.mubr.bf16.gmra.mxu0 %v945
      %v1187 = vpop.f32.mrf.mxu0
      %v1188 = vadd.f32 %v983, %v1187
      %v1189 = vpop.f32.mrf.mxu0
      %v1190 = vadd.f32 %v987, %v1189
      %v1191 = vpop.f32.mrf.mxu0
      %v1192 = vadd.f32 %v983, %v1191
      %v1193 = vpop.f32.mrf.mxu0
      %v1194 = vadd.f32 %v987, %v1193
      %1195 = vdwg.mxu0
      %1196 = vmatprep.subr.bf16.mxu0 0
      %1197 = vmatpush1.bf16.msra.mxu0 %v1098
      %1198 = vmatprep.subr.bf16.mxu0 0
      %1199 = vmatpush1.bf16.msra.mxu0 %v1095
      %1200 = vmatprep.subr.bf16.mxu0 0
      %1201 = vmatpush1.bf16.msra.mxu0 %v1092
      %1202 = vmatprep.subr.bf16.mxu0 0
      %1203 = vmatpush1.bf16.msra.mxu0 %v1089
      %1204 = vmatprep.subr.bf16.mxu0 0
      %1205 = vmatpush1.bf16.msra.mxu0 %v1086
      %1206 = vmatprep.subr.bf16.mxu0 0
      %1207 = vmatpush1.bf16.msra.mxu0 %v1083
      %1208 = vmatprep.subr.bf16.mxu0 0
      %1209 = vmatpush1.bf16.msra.mxu0 %v1080
      %1210 = vmatprep.subr.bf16.mxu0 0
      %1211 = vmatpush1.bf16.msra.mxu0 %v1077
      %1212 = vmatprep.subr.bf16.mxu0 0
      %1213 = vmatpush2.bf16.msra.mxu0 0
      %1214 = vmatprep.subr.bf16.mxu0 0
      %1215 = vmatpush2.bf16.msra.mxu0 0
      %1216 = vmatprep.subr.bf16.mxu0 0
      %1217 = vmatpush2.bf16.msra.mxu0 0
      %1218 = vmatprep.subr.bf16.mxu0 0
      %1219 = vmatpush2.bf16.msra.mxu0 0
      %1220 = vmatprep.subr.bf16.mxu0 0
      %1221 = vmatpush2.bf16.msra.mxu0 0
      %1222 = vmatprep.subr.bf16.mxu0 0
      %1223 = vmatpush2.bf16.msra.mxu0 0
      %1224 = vmatprep.subr.bf16.mxu0 0
      %1225 = vmatpush2.bf16.msra.mxu0 0
      %1226 = vmatprep.subr.bf16.mxu0 0
      %1227 = vmatpush2.bf16.msra.mxu0 0
      %1228 = vmatprep.mubr.bf16.mxu0 0
      %1229 = vmatmul.mubr.bf16.gmra.mxu0 %v942
      %v1230 = vpop.f32.mrf.mxu0
      %v1231 = vadd.f32 %v991, %v1230
      %v1232 = vpop.f32.mrf.mxu0
      %v1233 = vpop.f32.mrf.mxu0
      %v1234 = vadd.f32 %v991, %v1233
      %v1235 = vpop.f32.mrf.mxu0
      %1236 = vmatprep.mubr.bf16.mxu0 0
      %1237 = vmatmul.mubr.bf16.gmra.mxu0 %v943
      %v1238 = vpop.f32.mrf.mxu0
      %v1239 = vadd.f32 %v991, %v1238
      %v1240 = vpop.f32.mrf.mxu0
      %v1241 = vpop.f32.mrf.mxu0
      %v1242 = vadd.f32 %v991, %v1241
      %v1243 = vpop.f32.mrf.mxu0
      %1244 = vmatprep.mubr.bf16.mxu0 0
      %1245 = vmatmul.mubr.bf16.gmra.mxu0 %v944
      %v1246 = vpop.f32.mrf.mxu0
      %v1247 = vadd.f32 %v991, %v1246
      %v1248 = vpop.f32.mrf.mxu0
      %v1249 = vpop.f32.mrf.mxu0
      %v1250 = vadd.f32 %v991, %v1249
      %v1251 = vpop.f32.mrf.mxu0
      %1252 = vmatprep.mubr.bf16.mxu0 0
      %1253 = vmatmul.mubr.bf16.gmra.mxu0 %v945
      %v1254 = vpop.f32.mrf.mxu0
      %v1255 = vadd.f32 %v991, %v1254
      %v1256 = vpop.f32.mrf.mxu0
      %v1257 = vpop.f32.mrf.mxu0
      %v1258 = vadd.f32 %v991, %v1257
      %v1259 = vpop.f32.mrf.mxu0
      %1260 = vdwg.mxu0
      %v1261 = vld [vmem:[%s3] sm:$0xff]
      %v1262 = vld [vmem:[%s3 + $0x8] sm:$0xff]
      %v1263 = vld [vmem:[%s3 + $0x10] sm:$0xff]
      %v1264 = vld [vmem:[%s3 + $0x18] sm:$0xff]
      %v1265 = vld [vmem:[%s3 + $0x20] sm:$0xff]
      %v1266 = vld [vmem:[%s3 + $0x28] sm:$0xff]
      %v1267 = vld [vmem:[%s3 + $0x30] sm:$0xff]
      %v1268 = vld [vmem:[%s3 + $0x38] sm:$0xff]
      %v1269 = vld [vmem:[%s3 + $0x40] sm:$0xff]
      %v1270 = vld [vmem:[%s3 + $0x48] sm:$0xff]
      %v1271 = vld [vmem:[%s3 + $0x50] sm:$0xff]
      %v1272 = vld [vmem:[%s3 + $0x58] sm:$0xff]
      %v1273 = vld [vmem:[%s3 + $0x60] sm:$0xff]
      %v1274 = vld [vmem:[%s3 + $0x68] sm:$0xff]
      %v1275 = vld [vmem:[%s3 + $0x70] sm:$0xff]
      %v1276 = vld [vmem:[%s3 + $0x78] sm:$0xff]
      %v1277 = vld [vmem:[%s3 + $0x80] sm:$0xff]
      %v1278 = vld [vmem:[%s3 + $0x88] sm:$0xff]
      %v1279 = vld [vmem:[%s3 + $0x90] sm:$0xff]
      %v1280 = vld [vmem:[%s3 + $0x98] sm:$0xff]
      %v1281 = vld [vmem:[%s3 + $0xa0] sm:$0xff]
      %v1282 = vld [vmem:[%s3 + $0xa8] sm:$0xff]
      %v1283 = vld [vmem:[%s3 + $0xb0] sm:$0xff]
      %v1284 = vld [vmem:[%s3 + $0xb8] sm:$0xff]
      %v1285 = vld [vmem:[%s3 + $0xc0] sm:$0xff]
      %v1286 = vld [vmem:[%s3 + $0xc8] sm:$0xff]
      %v1287 = vld [vmem:[%s3 + $0xd0] sm:$0xff]
      %v1288 = vld [vmem:[%s3 + $0xd8] sm:$0xff]
      %v1289 = vld [vmem:[%s3 + $0xe0] sm:$0xff]
      %v1290 = vld [vmem:[%s3 + $0xe8] sm:$0xff]
      %v1291 = vld [vmem:[%s3 + $0xf0] sm:$0xff]
      %v1292 = vld [vmem:[%s3 + $0xf8] sm:$0xff]
      %v1293 = vld [vmem:[%s729] sm:$0xf]
      %v1294 = vld [vmem:[%s729 + $0x4] sm:$0xf]
      %v1295 = vld [vmem:[%s729 + $0x8] sm:$0xf]
      %v1296 = vld [vmem:[%s729 + $0xc] sm:$0xf]
      %v1297 = vld [vmem:[%s729 + $0x10] sm:$0xf]
      %v1298 = vld [vmem:[%s729 + $0x14] sm:$0xf]
      %v1299 = vld [vmem:[%s729 + $0x18] sm:$0xf]
      %v1300 = vld [vmem:[%s729 + $0x1c] sm:$0xf]
      %v1301 = vld [vmem:[%s729 + $0x20] sm:$0xf]
      %v1302 = vld [vmem:[%s729 + $0x24] sm:$0xf]
      %v1303 = vld [vmem:[%s729 + $0x28] sm:$0xf]
      %v1304 = vld [vmem:[%s729 + $0x2c] sm:$0xf]
      %v1305 = vld [vmem:[%s729 + $0x30] sm:$0xf]
      %v1306 = vld [vmem:[%s729 + $0x34] sm:$0xf]
      %v1307 = vld [vmem:[%s729 + $0x38] sm:$0xf]
      %v1308 = vld [vmem:[%s729 + $0x3c] sm:$0xf]
      %v1309 = vpack.c.bf16 %v1162, %v1158
      %v1310 = vpack.c.bf16 %v1172, %v1168
      %v1311 = vpack.c.bf16 %v1182, %v1178
      %v1312 = vpack.c.bf16 %v1192, %v1188
      %v1313 = vpack.c.bf16 %v1164, %v1160
      %v1314 = vpack.c.bf16 %v1174, %v1170
      %v1315 = vpack.c.bf16 %v1184, %v1180
      %v1316 = vpack.c.bf16 %v1194, %v1190
      %v1317 = vpack.c.bf16 %v1234, %v1231
      %v1318 = vpack.c.bf16 %v1242, %v1239
      %v1319 = vpack.c.bf16 %v1250, %v1247
      %v1320 = vpack.c.bf16 %v1258, %v1255
      %vm1321 = vcmask 261120
      %v1323 = vsel %vm1321, %v1309, 0
      %v1326 = vsel %vm1321, %v1310, 0
      %v1329 = vsel %vm1321, %v1311, 0
      %v1332 = vsel %vm1321, %v1312, 0
      %v1335 = vsel %vm1321, %v1313, 0
      %v1338 = vsel %vm1321, %v1314, 0
      %v1341 = vsel %vm1321, %v1315, 0
      %v1344 = vsel %vm1321, %v1316, 0
      %1346 = vmatprep.subr.bf16.mxu0 0
      %1347 = vmatpush1.bf16.xpose.msra.mxu0 0
      %1348 = vmatprep.subr.bf16.mxu0 0
      %1349 = vmatpush1.bf16.xpose.msra.mxu0 0
      %1350 = vmatprep.subr.bf16.mxu0 0
      %1351 = vmatpush1.bf16.xpose.msra.mxu0 0
      %1352 = vmatprep.subr.bf16.mxu0 0
      %1353 = vmatpush1.bf16.xpose.msra.mxu0 0
      %1354 = vmatprep.subr.bf16.mxu0 0
      %1355 = vmatpush1.bf16.xpose.msra.mxu0 %v1344
      %1356 = vmatprep.subr.bf16.mxu0 0
      %1357 = vmatpush1.bf16.xpose.msra.mxu0 %v1341
      %1358 = vmatprep.subr.bf16.mxu0 0
      %1359 = vmatpush1.bf16.xpose.msra.mxu0 %v1338
      %1360 = vmatprep.subr.bf16.mxu0 0
      %1361 = vmatpush1.bf16.xpose.msra.mxu0 %v1335
      %1362 = vmatprep.subr.bf16.mxu0 0
      %1363 = vmatpush2.bf16.xpose.msra.mxu0 0
      %1364 = vmatprep.subr.bf16.mxu0 0
      %1365 = vmatpush2.bf16.xpose.msra.mxu0 0
      %1366 = vmatprep.subr.bf16.mxu0 0
      %1367 = vmatpush2.bf16.xpose.msra.mxu0 0
      %1368 = vmatprep.subr.bf16.mxu0 0
      %1369 = vmatpush2.bf16.xpose.msra.mxu0 0
      %1370 = vmatprep.subr.bf16.mxu0 0
      %1371 = vmatpush2.bf16.xpose.msra.mxu0 0
      %1372 = vmatprep.subr.bf16.mxu0 0
      %1373 = vmatpush2.bf16.xpose.msra.mxu0 0
      %1374 = vmatprep.subr.bf16.mxu0 0
      %1375 = vmatpush2.bf16.xpose.msra.mxu0 0
      %1376 = vmatprep.subr.bf16.mxu0 0
      %1377 = vmatpush2.bf16.xpose.msra.mxu0 0
      %1378 = vmatprep.mubr.bf16.mxu0 0
      %1379 = vmatmul.mubr.bf16.gmra.mxu0 %v1323
      %v1380 = vpop.f32.mrf.mxu0
      %v1381 = vadd.f32 0.0, %v1380
      %v1382 = vpop.f32.mrf.mxu0
      %v1383 = vpop.f32.mrf.mxu0
      %v1384 = vadd.f32 0.0, %v1383
      %v1385 = vpop.f32.mrf.mxu0
      %1386 = vmatprep.mubr.bf16.mxu0 0
      %1387 = vmatmul.mubr.bf16.gmra.mxu0 %v1326
      %v1388 = vpop.f32.mrf.mxu0
      %v1389 = vadd.f32 0.0, %v1388
      %v1390 = vpop.f32.mrf.mxu0
      %v1391 = vpop.f32.mrf.mxu0
      %v1392 = vadd.f32 0.0, %v1391
      %v1393 = vpop.f32.mrf.mxu0
      %1394 = vmatprep.mubr.bf16.mxu0 0
      %1395 = vmatmul.mubr.bf16.gmra.mxu0 %v1329
      %v1396 = vpop.f32.mrf.mxu0
      %v1397 = vadd.f32 0.0, %v1396
      %v1398 = vpop.f32.mrf.mxu0
      %v1399 = vpop.f32.mrf.mxu0
      %v1400 = vadd.f32 0.0, %v1399
      %v1401 = vpop.f32.mrf.mxu0
      %1402 = vmatprep.mubr.bf16.mxu0 0
      %1403 = vmatmul.mubr.bf16.gmra.mxu0 %v1332
      %v1404 = vpop.f32.mrf.mxu0
      %v1405 = vadd.f32 0.0, %v1404
      %v1406 = vpop.f32.mrf.mxu0
      %v1407 = vpop.f32.mrf.mxu0
      %v1408 = vadd.f32 0.0, %v1407
      %v1409 = vpop.f32.mrf.mxu0
      %1410 = vdwg.mxu0
      %v1411 = vmul.f32 %v1381, 0.28867513
      %v1412 = vmul.f32 %v1384, 0.28867513
      %v1413 = vmul.f32 %v1389, 0.28867513
      %v1414 = vmul.f32 %v1392, 0.28867513
      %v1415 = vmul.f32 %v1397, 0.28867513
      %v1416 = vmul.f32 %v1400, 0.28867513
      %v1417 = vmul.f32 %v1405, 0.28867513
      %v1418 = vmul.f32 %v1408, 0.28867513
      %v1419 = vadd.f32 %v1411, %v1261
      %v1420 = vadd.f32 %v1412, %v1262
      %v1421 = vadd.f32 %v1413, %v1263
      %v1422 = vadd.f32 %v1414, %v1264
      %v1423 = vadd.f32 %v1415, %v1265
      %v1424 = vadd.f32 %v1416, %v1266
      %v1425 = vadd.f32 %v1417, %v1267
      %v1426 = vadd.f32 %v1418, %v1268
      %vm1427 = vcmask 523264
      %v1428 = vsel %vm1427, %v1419, -inf
      %1429 = vmax.xlane.f32.xlu0 %v1428
      %v1430 = vpop.xlane.xlu0 %1429
      %v1431 = vsel %vm1427, %v1420, -inf
      %1432 = vmax.xlane.f32.xlu0 %v1431
      %v1433 = vpop.xlane.xlu0 %1432
      %v1434 = vsel %vm1427, %v1421, -inf
      %1435 = vmax.xlane.f32.xlu0 %v1434
      %v1436 = vpop.xlane.xlu0 %1435
      %v1437 = vsel %vm1427, %v1422, -inf
      %1438 = vmax.xlane.f32.xlu0 %v1437
      %v1439 = vpop.xlane.xlu0 %1438
      %v1440 = vsel %vm1427, %v1423, -inf
      %1441 = vmax.xlane.f32.xlu0 %v1440
      %v1442 = vpop.xlane.xlu0 %1441
      %v1443 = vsel %vm1427, %v1424, -inf
      %1444 = vmax.xlane.f32.xlu0 %v1443
      %v1445 = vpop.xlane.xlu0 %1444
      %v1446 = vsel %vm1427, %v1425, -inf
      %1447 = vmax.xlane.f32.xlu0 %v1446
      %v1448 = vpop.xlane.xlu0 %1447
      %v1449 = vsel %vm1427, %v1426, -inf
      %1450 = vmax.xlane.f32.xlu0 %v1449
      %v1451 = vpop.xlane.xlu0 %1450
      %v1452 = vsub.f32 %v1419, %v1430
      %v1453 = vsub.f32 %v1420, %v1433
      %v1454 = vsub.f32 %v1421, %v1436
      %v1455 = vsub.f32 %v1422, %v1439
      %v1456 = vsub.f32 %v1423, %v1442
      %v1457 = vsub.f32 %v1424, %v1445
      %v1458 = vsub.f32 %v1425, %v1448
      %v1459 = vsub.f32 %v1426, %v1451
      %v1460 = vmul.f32 %v1452, 1.442695
      %v1461 = vpow.pop %v1460
      %v1462 = vmul.f32 %v1453, 1.442695
      %v1463 = vpow.pop %v1462
      %v1464 = vmul.f32 %v1454, 1.442695
      %v1465 = vpow.pop %v1464
      %v1466 = vmul.f32 %v1455, 1.442695
      %v1467 = vpow.pop %v1466
      %v1468 = vmul.f32 %v1456, 1.442695
      %v1469 = vpow.pop %v1468
      %v1470 = vmul.f32 %v1457, 1.442695
      %v1471 = vpow.pop %v1470
      %v1472 = vmul.f32 %v1458, 1.442695
      %v1473 = vpow.pop %v1472
      %v1474 = vmul.f32 %v1459, 1.442695
      %v1475 = vpow.pop %v1474
      %v1476 = vsel %vm1427, %v1461, 0.0
      %1477 = vadd.xlane.f32.xlu0 %v1476
      %v1478 = vpop.xlane.xlu0 %1477
      %v1479 = vsel %vm1427, %v1463, 0.0
      %1480 = vadd.xlane.f32.xlu0 %v1479
      %v1481 = vpop.xlane.xlu0 %1480
      %v1482 = vsel %vm1427, %v1465, 0.0
      %1483 = vadd.xlane.f32.xlu0 %v1482
      %v1484 = vpop.xlane.xlu0 %1483
      %v1485 = vsel %vm1427, %v1467, 0.0
      %1486 = vadd.xlane.f32.xlu0 %v1485
      %v1487 = vpop.xlane.xlu0 %1486
      %v1488 = vsel %vm1427, %v1469, 0.0
      %1489 = vadd.xlane.f32.xlu0 %v1488
      %v1490 = vpop.xlane.xlu0 %1489
      %v1491 = vsel %vm1427, %v1471, 0.0
      %1492 = vadd.xlane.f32.xlu0 %v1491
      %v1493 = vpop.xlane.xlu0 %1492
      %v1494 = vsel %vm1427, %v1473, 0.0
      %1495 = vadd.xlane.f32.xlu0 %v1494
      %v1496 = vpop.xlane.xlu0 %1495
      %v1497 = vsel %vm1427, %v1475, 0.0
      %1498 = vadd.xlane.f32.xlu0 %v1497
      %v1499 = vpop.xlane.xlu0 %1498
      %v1500 = vrcp.pop %v1478
      %v1501 = vrcp.pop %v1481
      %v1502 = vrcp.pop %v1484
      %v1503 = vrcp.pop %v1487
      %v1504 = vrcp.pop %v1490
      %v1505 = vrcp.pop %v1493
      %v1506 = vrcp.pop %v1496
      %v1507 = vrcp.pop %v1499
      %v1508 = vmul.f32 %v1461, %v1500
      %v1509 = vmul.f32 %v1463, %v1501
      %v1510 = vmul.f32 %v1465, %v1502
      %v1511 = vmul.f32 %v1467, %v1503
      %v1512 = vmul.f32 %v1469, %v1504
      %v1513 = vmul.f32 %v1471, %v1505
      %v1514 = vmul.f32 %v1473, %v1506
      %v1515 = vmul.f32 %v1475, %v1507
      %v1516 = vpack.c.bf16 %v1509, %v1508
      %v1517 = vpack.c.bf16 %v1511, %v1510
      %v1518 = vpack.c.bf16 %v1513, %v1512
      %v1519 = vpack.c.bf16 %v1515, %v1514
      %v1521 = vsel %vm1427, %v1516, 0
      %v1524 = vsel %vm1427, %v1517, 0
      %v1527 = vsel %vm1427, %v1518, 0
      %v1530 = vsel %vm1427, %v1519, 0
      %1532 = vmatprep.subr.bf16.mxu0 0
      %1533 = vmatpush1.bf16.msra.mxu0 0
      %1534 = vmatprep.subr.bf16.mxu0 0
      %1535 = vmatpush1.bf16.msra.mxu0 0
      %1536 = vmatprep.subr.bf16.mxu0 0
      %1537 = vmatpush1.bf16.msra.mxu0 0
      %1538 = vmatprep.subr.bf16.mxu0 0
      %1539 = vmatpush1.bf16.msra.mxu0 0
      %1540 = vmatprep.subr.bf16.mxu0 0
      %1541 = vmatpush1.bf16.msra.mxu0 %v1320
      %1542 = vmatprep.subr.bf16.mxu0 0
      %1543 = vmatpush1.bf16.msra.mxu0 %v1319
      %1544 = vmatprep.subr.bf16.mxu0 0
      %1545 = vmatpush1.bf16.msra.mxu0 %v1318
      %1546 = vmatprep.subr.bf16.mxu0 0
      %1547 = vmatpush1.bf16.msra.mxu0 %v1317
      %1548 = vmatprep.subr.bf16.mxu0 0
      %1549 = vmatpush2.bf16.msra.mxu0 0
      %1550 = vmatprep.subr.bf16.mxu0 0
      %1551 = vmatpush2.bf16.msra.mxu0 0
      %1552 = vmatprep.subr.bf16.mxu0 0
      %1553 = vmatpush2.bf16.msra.mxu0 0
      %1554 = vmatprep.subr.bf16.mxu0 0
      %1555 = vmatpush2.bf16.msra.mxu0 0
      %1556 = vmatprep.subr.bf16.mxu0 0
      %1557 = vmatpush2.bf16.msra.mxu0 0
      %1558 = vmatprep.subr.bf16.mxu0 0
      %1559 = vmatpush2.bf16.msra.mxu0 0
      %1560 = vmatprep.subr.bf16.mxu0 0
      %1561 = vmatpush2.bf16.msra.mxu0 0
      %1562 = vmatprep.subr.bf16.mxu0 0
      %1563 = vmatpush2.bf16.msra.mxu0 0
      %1564 = vmatprep.mubr.bf16.mxu0 0
      %1565 = vmatmul.mubr.bf16.gmra.mxu0 %v1521
      %v1566 = vpop.f32.mrf.mxu0
      %v1567 = vadd.f32 0.0, %v1566
      %v1568 = vpop.f32.mrf.mxu0
      %v1569 = vpop.f32.mrf.mxu0
      %v1570 = vadd.f32 0.0, %v1569
      %v1571 = vpop.f32.mrf.mxu0
      %1572 = vmatprep.mubr.bf16.mxu0 0
      %1573 = vmatmul.mubr.bf16.gmra.mxu0 %v1524
      %v1574 = vpop.f32.mrf.mxu0
      %v1575 = vadd.f32 0.0, %v1574
      %v1576 = vpop.f32.mrf.mxu0
      %v1577 = vpop.f32.mrf.mxu0
      %v1578 = vadd.f32 0.0, %v1577
      %v1579 = vpop.f32.mrf.mxu0
      %1580 = vmatprep.mubr.bf16.mxu0 0
      %1581 = vmatmul.mubr.bf16.gmra.mxu0 %v1527
      %v1582 = vpop.f32.mrf.mxu0
      %v1583 = vadd.f32 0.0, %v1582
      %v1584 = vpop.f32.mrf.mxu0
      %v1585 = vpop.f32.mrf.mxu0
      %v1586 = vadd.f32 0.0, %v1585
      %v1587 = vpop.f32.mrf.mxu0
      %1588 = vmatprep.mubr.bf16.mxu0 0
      %1589 = vmatmul.mubr.bf16.gmra.mxu0 %v1530
      %v1590 = vpop.f32.mrf.mxu0
      %v1591 = vadd.f32 0.0, %v1590
      %v1592 = vpop.f32.mrf.mxu0
      %v1593 = vpop.f32.mrf.mxu0
      %v1594 = vadd.f32 0.0, %v1593
      %v1595 = vpop.f32.mrf.mxu0
      %1596 = vdwg.mxu0
      %v1597 = vpack.c.bf16 %v1570, %v1567
      %v1598 = vpack.c.bf16 %v1578, %v1575
      %v1599 = vpack.c.bf16 %v1586, %v1583
      %v1600 = vpack.c.bf16 %v1594, %v1591
      %1605 = vrot.lane.b32.xlu0 %v1309, 96
      %v1606 = vpop.permute.xlu0 %1605
      %1607 = vrot.lane.b32.xlu0 %v1310, 96
      %v1608 = vpop.permute.xlu0 %1607
      %1609 = vrot.lane.b32.xlu0 %v1311, 96
      %v1610 = vpop.permute.xlu0 %1609
      %1611 = vrot.lane.b32.xlu0 %v1312, 96
      %v1612 = vpop.permute.xlu0 %1611
      %1617 = vrot.lane.b32.xlu0 %v1313, 96
      %v1618 = vpop.permute.xlu0 %1617
      %1619 = vrot.lane.b32.xlu0 %v1314, 96
      %v1620 = vpop.permute.xlu0 %1619
      %1621 = vrot.lane.b32.xlu0 %v1315, 96
      %v1622 = vpop.permute.xlu0 %1621
      %1623 = vrot.lane.b32.xlu0 %v1316, 96
      %v1624 = vpop.permute.xlu0 %1623
      %v1626 = vsel %vm1321, %v1606, 0
      %v1629 = vsel %vm1321, %v1608, 0
      %v1632 = vsel %vm1321, %v1610, 0
      %v1635 = vsel %vm1321, %v1612, 0
      %v1638 = vsel %vm1321, %v1618, 0
      %v1641 = vsel %vm1321, %v1620, 0
      %v1644 = vsel %vm1321, %v1622, 0
      %v1647 = vsel %vm1321, %v1624, 0
      %1649 = vmatprep.subr.bf16.mxu0 0
      %1650 = vmatpush1.bf16.xpose.msra.mxu0 0
      %1651 = vmatprep.subr.bf16.mxu0 0
      %1652 = vmatpush1.bf16.xpose.msra.mxu0 0
      %1653 = vmatprep.subr.bf16.mxu0 0
      %1654 = vmatpush1.bf16.xpose.msra.mxu0 0
      %1655 = vmatprep.subr.bf16.mxu0 0
      %1656 = vmatpush1.bf16.xpose.msra.mxu0 0
      %1657 = vmatprep.subr.bf16.mxu0 0
      %1658 = vmatpush1.bf16.xpose.msra.mxu0 %v1647
      %1659 = vmatprep.subr.bf16.mxu0 0
      %1660 = vmatpush1.bf16.xpose.msra.mxu0 %v1644
      %1661 = vmatprep.subr.bf16.mxu0 0
      %1662 = vmatpush1.bf16.xpose.msra.mxu0 %v1641
      %1663 = vmatprep.subr.bf16.mxu0 0
      %1664 = vmatpush1.bf16.xpose.msra.mxu0 %v1638
      %1665 = vmatprep.subr.bf16.mxu0 0
      %1666 = vmatpush2.bf16.xpose.msra.mxu0 0
      %1667 = vmatprep.subr.bf16.mxu0 0
      %1668 = vmatpush2.bf16.xpose.msra.mxu0 0
      %1669 = vmatprep.subr.bf16.mxu0 0
      %1670 = vmatpush2.bf16.xpose.msra.mxu0 0
      %1671 = vmatprep.subr.bf16.mxu0 0
      %1672 = vmatpush2.bf16.xpose.msra.mxu0 0
      %1673 = vmatprep.subr.bf16.mxu0 0
      %1674 = vmatpush2.bf16.xpose.msra.mxu0 0
      %1675 = vmatprep.subr.bf16.mxu0 0
      %1676 = vmatpush2.bf16.xpose.msra.mxu0 0
      %1677 = vmatprep.subr.bf16.mxu0 0
      %1678 = vmatpush2.bf16.xpose.msra.mxu0 0
      %1679 = vmatprep.subr.bf16.mxu0 0
      %1680 = vmatpush2.bf16.xpose.msra.mxu0 0
      %1681 = vmatprep.mubr.bf16.mxu0 0
      %1682 = vmatmul.mubr.bf16.gmra.mxu0 %v1626
      %v1683 = vpop.f32.mrf.mxu0
      %v1684 = vadd.f32 0.0, %v1683
      %v1685 = vpop.f32.mrf.mxu0
      %v1686 = vpop.f32.mrf.mxu0
      %v1687 = vadd.f32 0.0, %v1686
      %v1688 = vpop.f32.mrf.mxu0
      %1689 = vmatprep.mubr.bf16.mxu0 0
      %1690 = vmatmul.mubr.bf16.gmra.mxu0 %v1629
      %v1691 = vpop.f32.mrf.mxu0
      %v1692 = vadd.f32 0.0, %v1691
      %v1693 = vpop.f32.mrf.mxu0
      %v1694 = vpop.f32.mrf.mxu0
      %v1695 = vadd.f32 0.0, %v1694
      %v1696 = vpop.f32.mrf.mxu0
      %1697 = vmatprep.mubr.bf16.mxu0 0
      %1698 = vmatmul.mubr.bf16.gmra.mxu0 %v1632
      %v1699 = vpop.f32.mrf.mxu0
      %v1700 = vadd.f32 0.0, %v1699
      %v1701 = vpop.f32.mrf.mxu0
      %v1702 = vpop.f32.mrf.mxu0
      %v1703 = vadd.f32 0.0, %v1702
      %v1704 = vpop.f32.mrf.mxu0
      %1705 = vmatprep.mubr.bf16.mxu0 0
      %1706 = vmatmul.mubr.bf16.gmra.mxu0 %v1635
      %v1707 = vpop.f32.mrf.mxu0
      %v1708 = vadd.f32 0.0, %v1707
      %v1709 = vpop.f32.mrf.mxu0
      %v1710 = vpop.f32.mrf.mxu0
      %v1711 = vadd.f32 0.0, %v1710
      %v1712 = vpop.f32.mrf.mxu0
      %1713 = vdwg.mxu0
      %v1714 = vmul.f32 %v1684, 0.28867513
      %v1715 = vmul.f32 %v1687, 0.28867513
      %v1716 = vmul.f32 %v1692, 0.28867513
      %v1717 = vmul.f32 %v1695, 0.28867513
      %v1718 = vmul.f32 %v1700, 0.28867513
      %v1719 = vmul.f32 %v1703, 0.28867513
      %v1720 = vmul.f32 %v1708, 0.28867513
      %v1721 = vmul.f32 %v1711, 0.28867513
      %v1722 = vadd.f32 %v1714, %v1269
      %v1723 = vadd.f32 %v1715, %v1270
      %v1724 = vadd.f32 %v1716, %v1271
      %v1725 = vadd.f32 %v1717, %v1272
      %v1726 = vadd.f32 %v1718, %v1273
      %v1727 = vadd.f32 %v1719, %v1274
      %v1728 = vadd.f32 %v1720, %v1275
      %v1729 = vadd.f32 %v1721, %v1276
      %v1730 = vsel %vm1427, %v1722, -inf
      %1731 = vmax.xlane.f32.xlu0 %v1730
      %v1732 = vpop.xlane.xlu0 %1731
      %v1733 = vsel %vm1427, %v1723, -inf
      %1734 = vmax.xlane.f32.xlu0 %v1733
      %v1735 = vpop.xlane.xlu0 %1734
      %v1736 = vsel %vm1427, %v1724, -inf
      %1737 = vmax.xlane.f32.xlu0 %v1736
      %v1738 = vpop.xlane.xlu0 %1737
      %v1739 = vsel %vm1427, %v1725, -inf
      %1740 = vmax.xlane.f32.xlu0 %v1739
      %v1741 = vpop.xlane.xlu0 %1740
      %v1742 = vsel %vm1427, %v1726, -inf
      %1743 = vmax.xlane.f32.xlu0 %v1742
      %v1744 = vpop.xlane.xlu0 %1743
      %v1745 = vsel %vm1427, %v1727, -inf
      %1746 = vmax.xlane.f32.xlu0 %v1745
      %v1747 = vpop.xlane.xlu0 %1746
      %v1748 = vsel %vm1427, %v1728, -inf
      %1749 = vmax.xlane.f32.xlu0 %v1748
      %v1750 = vpop.xlane.xlu0 %1749
      %v1751 = vsel %vm1427, %v1729, -inf
      %1752 = vmax.xlane.f32.xlu0 %v1751
      %v1753 = vpop.xlane.xlu0 %1752
      %v1754 = vsub.f32 %v1722, %v1732
      %v1755 = vsub.f32 %v1723, %v1735
      %v1756 = vsub.f32 %v1724, %v1738
      %v1757 = vsub.f32 %v1725, %v1741
      %v1758 = vsub.f32 %v1726, %v1744
      %v1759 = vsub.f32 %v1727, %v1747
      %v1760 = vsub.f32 %v1728, %v1750
      %v1761 = vsub.f32 %v1729, %v1753
      %v1762 = vmul.f32 %v1754, 1.442695
      %v1763 = vpow.pop %v1762
      %v1764 = vmul.f32 %v1755, 1.442695
      %v1765 = vpow.pop %v1764
      %v1766 = vmul.f32 %v1756, 1.442695
      %v1767 = vpow.pop %v1766
      %v1768 = vmul.f32 %v1757, 1.442695
      %v1769 = vpow.pop %v1768
      %v1770 = vmul.f32 %v1758, 1.442695
      %v1771 = vpow.pop %v1770
      %v1772 = vmul.f32 %v1759, 1.442695
      %v1773 = vpow.pop %v1772
      %v1774 = vmul.f32 %v1760, 1.442695
      %v1775 = vpow.pop %v1774
      %v1776 = vmul.f32 %v1761, 1.442695
      %v1777 = vpow.pop %v1776
      %v1778 = vsel %vm1427, %v1763, 0.0
      %1779 = vadd.xlane.f32.xlu0 %v1778
      %v1780 = vpop.xlane.xlu0 %1779
      %v1781 = vsel %vm1427, %v1765, 0.0
      %1782 = vadd.xlane.f32.xlu0 %v1781
      %v1783 = vpop.xlane.xlu0 %1782
      %v1784 = vsel %vm1427, %v1767, 0.0
      %1785 = vadd.xlane.f32.xlu0 %v1784
      %v1786 = vpop.xlane.xlu0 %1785
      %v1787 = vsel %vm1427, %v1769, 0.0
      %1788 = vadd.xlane.f32.xlu0 %v1787
      %v1789 = vpop.xlane.xlu0 %1788
      %v1790 = vsel %vm1427, %v1771, 0.0
      %1791 = vadd.xlane.f32.xlu0 %v1790
      %v1792 = vpop.xlane.xlu0 %1791
      %v1793 = vsel %vm1427, %v1773, 0.0
      %1794 = vadd.xlane.f32.xlu0 %v1793
      %v1795 = vpop.xlane.xlu0 %1794
      %v1796 = vsel %vm1427, %v1775, 0.0
      %1797 = vadd.xlane.f32.xlu0 %v1796
      %v1798 = vpop.xlane.xlu0 %1797
      %v1799 = vsel %vm1427, %v1777, 0.0
      %1800 = vadd.xlane.f32.xlu0 %v1799
      %v1801 = vpop.xlane.xlu0 %1800
      %v1802 = vrcp.pop %v1780
      %v1803 = vrcp.pop %v1783
      %v1804 = vrcp.pop %v1786
      %v1805 = vrcp.pop %v1789
      %v1806 = vrcp.pop %v1792
      %v1807 = vrcp.pop %v1795
      %v1808 = vrcp.pop %v1798
      %v1809 = vrcp.pop %v1801
      %v1810 = vmul.f32 %v1763, %v1802
      %v1811 = vmul.f32 %v1765, %v1803
      %v1812 = vmul.f32 %v1767, %v1804
      %v1813 = vmul.f32 %v1769, %v1805
      %v1814 = vmul.f32 %v1771, %v1806
      %v1815 = vmul.f32 %v1773, %v1807
      %v1816 = vmul.f32 %v1775, %v1808
      %v1817 = vmul.f32 %v1777, %v1809
      %v1818 = vpack.c.bf16 %v1811, %v1810
      %v1819 = vpack.c.bf16 %v1813, %v1812
      %v1820 = vpack.c.bf16 %v1815, %v1814
      %v1821 = vpack.c.bf16 %v1817, %v1816
      %1826 = vrot.lane.b32.xlu0 %v1317, 96
      %v1827 = vpop.permute.xlu0 %1826
      %1828 = vrot.lane.b32.xlu0 %v1318, 96
      %v1829 = vpop.permute.xlu0 %1828
      %1830 = vrot.lane.b32.xlu0 %v1319, 96
      %v1831 = vpop.permute.xlu0 %1830
      %1832 = vrot.lane.b32.xlu0 %v1320, 96
      %v1833 = vpop.permute.xlu0 %1832
      %v1839 = vsel %vm1427, %v1818, 0
      %v1842 = vsel %vm1427, %v1819, 0
      %v1845 = vsel %vm1427, %v1820, 0
      %v1848 = vsel %vm1427, %v1821, 0
      %1850 = vmatprep.subr.bf16.mxu0 0
      %1851 = vmatpush1.bf16.msra.mxu0 0
      %1852 = vmatprep.subr.bf16.mxu0 0
      %1853 = vmatpush1.bf16.msra.mxu0 0
      %1854 = vmatprep.subr.bf16.mxu0 0
      %1855 = vmatpush1.bf16.msra.mxu0 0
      %1856 = vmatprep.subr.bf16.mxu0 0
      %1857 = vmatpush1.bf16.msra.mxu0 0
      %1858 = vmatprep.subr.bf16.mxu0 0
      %1859 = vmatpush1.bf16.msra.mxu0 %v1833
      %1860 = vmatprep.subr.bf16.mxu0 0
      %1861 = vmatpush1.bf16.msra.mxu0 %v1831
      %1862 = vmatprep.subr.bf16.mxu0 0
      %1863 = vmatpush1.bf16.msra.mxu0 %v1829
      %1864 = vmatprep.subr.bf16.mxu0 0
      %1865 = vmatpush1.bf16.msra.mxu0 %v1827
      %1866 = vmatprep.subr.bf16.mxu0 0
      %1867 = vmatpush2.bf16.msra.mxu0 0
      %1868 = vmatprep.subr.bf16.mxu0 0
      %1869 = vmatpush2.bf16.msra.mxu0 0
      %1870 = vmatprep.subr.bf16.mxu0 0
      %1871 = vmatpush2.bf16.msra.mxu0 0
      %1872 = vmatprep.subr.bf16.mxu0 0
      %1873 = vmatpush2.bf16.msra.mxu0 0
      %1874 = vmatprep.subr.bf16.mxu0 0
      %1875 = vmatpush2.bf16.msra.mxu0 0
      %1876 = vmatprep.subr.bf16.mxu0 0
      %1877 = vmatpush2.bf16.msra.mxu0 0
      %1878 = vmatprep.subr.bf16.mxu0 0
      %1879 = vmatpush2.bf16.msra.mxu0 0
      %1880 = vmatprep.subr.bf16.mxu0 0
      %1881 = vmatpush2.bf16.msra.mxu0 0
      %1882 = vmatprep.mubr.bf16.mxu0 0
      %1883 = vmatmul.mubr.bf16.gmra.mxu0 %v1839
      %v1884 = vpop.f32.mrf.mxu0
      %v1885 = vadd.f32 0.0, %v1884
      %v1886 = vpop.f32.mrf.mxu0
      %v1887 = vpop.f32.mrf.mxu0
      %v1888 = vadd.f32 0.0, %v1887
      %v1889 = vpop.f32.mrf.mxu0
      %1890 = vmatprep.mubr.bf16.mxu0 0
      %1891 = vmatmul.mubr.bf16.gmra.mxu0 %v1842
      %v1892 = vpop.f32.mrf.mxu0
      %v1893 = vadd.f32 0.0, %v1892
      %v1894 = vpop.f32.mrf.mxu0
      %v1895 = vpop.f32.mrf.mxu0
      %v1896 = vadd.f32 0.0, %v1895
      %v1897 = vpop.f32.mrf.mxu0
      %1898 = vmatprep.mubr.bf16.mxu0 0
      %1899 = vmatmul.mubr.bf16.gmra.mxu0 %v1845
      %v1900 = vpop.f32.mrf.mxu0
      %v1901 = vadd.f32 0.0, %v1900
      %v1902 = vpop.f32.mrf.mxu0
      %v1903 = vpop.f32.mrf.mxu0
      %v1904 = vadd.f32 0.0, %v1903
      %v1905 = vpop.f32.mrf.mxu0
      %1906 = vmatprep.mubr.bf16.mxu0 0
      %1907 = vmatmul.mubr.bf16.gmra.mxu0 %v1848
      %v1908 = vpop.f32.mrf.mxu0
      %v1909 = vadd.f32 0.0, %v1908
      %v1910 = vpop.f32.mrf.mxu0
      %v1911 = vpop.f32.mrf.mxu0
      %v1912 = vadd.f32 0.0, %v1911
      %v1913 = vpop.f32.mrf.mxu0
      %1914 = vdwg.mxu0
      %v1915 = vpack.c.bf16 %v1888, %v1885
      %v1916 = vpack.c.bf16 %v1896, %v1893
      %v1917 = vpack.c.bf16 %v1904, %v1901
      %v1918 = vpack.c.bf16 %v1912, %v1909
      %v1923 = vunpack.c.l.b16 %v1297
      %v1924 = vunpack.c.l.b16 %v1298
      %v1925 = vunpack.c.l.b16 %v1299
      %v1926 = vunpack.c.l.b16 %v1300
      %v1927 = vpack.c.b16 %v1924, %v1923
      %v1928 = vpack.c.b16 %v1926, %v1925
      %v1932 = vsel %vm1321, %v1915, 0
      %v1935 = vsel %vm1321, %v1916, 0
      %v1938 = vsel %vm1321, %v1917, 0
      %v1941 = vsel %vm1321, %v1918, 0
      %1943 = vmatprep.subr.bf16.mxu0 0
      %1944 = vmatpush1.bf16.msra.mxu0 0
      %1945 = vmatprep.subr.bf16.mxu0 0
      %1946 = vmatpush1.bf16.msra.mxu0 0
      %1947 = vmatprep.subr.bf16.mxu0 0
      %1948 = vmatpush1.bf16.msra.mxu0 0
      %1949 = vmatprep.subr.bf16.mxu0 0
      %1950 = vmatpush1.bf16.msra.mxu0 0
      %1951 = vmatprep.subr.bf16.mxu0 0
      %1952 = vmatpush1.bf16.msra.mxu0 0
      %1953 = vmatprep.subr.bf16.mxu0 0
      %1954 = vmatpush1.bf16.msra.mxu0 0
      %1955 = vmatprep.subr.bf16.mxu0 0
      %1956 = vmatpush1.bf16.msra.mxu0 %v1928
      %1957 = vmatprep.subr.bf16.mxu0 0
      %1958 = vmatpush1.bf16.msra.mxu0 %v1927
      %1959 = vmatprep.subr.bf16.mxu0 0
      %1960 = vmatpush2.bf16.msra.mxu0 0
      %1961 = vmatprep.subr.bf16.mxu0 0
      %1962 = vmatpush2.bf16.msra.mxu0 0
      %1963 = vmatprep.subr.bf16.mxu0 0
      %1964 = vmatpush2.bf16.msra.mxu0 0
      %1965 = vmatprep.subr.bf16.mxu0 0
      %1966 = vmatpush2.bf16.msra.mxu0 0
      %1967 = vmatprep.subr.bf16.mxu0 0
      %1968 = vmatpush2.bf16.msra.mxu0 0
      %1969 = vmatprep.subr.bf16.mxu0 0
      %1970 = vmatpush2.bf16.msra.mxu0 0
      %1971 = vmatprep.subr.bf16.mxu0 0
      %1972 = vmatpush2.bf16.msra.mxu0 0
      %1973 = vmatprep.subr.bf16.mxu0 0
      %1974 = vmatpush2.bf16.msra.mxu0 0
      %1975 = vmatprep.mubr.bf16.mxu0 0
      %1976 = vmatmul.mubr.bf16.gmra.mxu0 %v1932
      %v1977 = vpop.f32.mrf.mxu0
      %v1978 = vadd.f32 0.0, %v1977
      %v1979 = vpop.f32.mrf.mxu0
      %v1980 = vpop.f32.mrf.mxu0
      %v1981 = vadd.f32 0.0, %v1980
      %v1982 = vpop.f32.mrf.mxu0
      %1983 = vmatprep.mubr.bf16.mxu0 0
      %1984 = vmatmul.mubr.bf16.gmra.mxu0 %v1935
      %v1985 = vpop.f32.mrf.mxu0
      %v1986 = vadd.f32 0.0, %v1985
      %v1987 = vpop.f32.mrf.mxu0
      %v1988 = vpop.f32.mrf.mxu0
      %v1989 = vadd.f32 0.0, %v1988
      %v1990 = vpop.f32.mrf.mxu0
      %1991 = vmatprep.mubr.bf16.mxu0 0
      %1992 = vmatmul.mubr.bf16.gmra.mxu0 %v1938
      %v1993 = vpop.f32.mrf.mxu0
      %v1994 = vadd.f32 0.0, %v1993
      %v1995 = vpop.f32.mrf.mxu0
      %v1996 = vpop.f32.mrf.mxu0
      %v1997 = vadd.f32 0.0, %v1996
      %v1998 = vpop.f32.mrf.mxu0
      %1999 = vmatprep.mubr.bf16.mxu0 0
      %2000 = vmatmul.mubr.bf16.gmra.mxu0 %v1941
      %v2001 = vpop.f32.mrf.mxu0
      %v2002 = vadd.f32 0.0, %v2001
      %v2003 = vpop.f32.mrf.mxu0
      %v2004 = vpop.f32.mrf.mxu0
      %v2005 = vadd.f32 0.0, %v2004
      %v2006 = vpop.f32.mrf.mxu0
      %2007 = vdwg.mxu0
      %v2012 = vunpack.c.l.b16 %v1293
      %v2013 = vunpack.c.l.b16 %v1294
      %v2014 = vunpack.c.l.b16 %v1295
      %v2015 = vunpack.c.l.b16 %v1296
      %v2016 = vpack.c.b16 %v2013, %v2012
      %v2017 = vpack.c.b16 %v2015, %v2014
      %v2021 = vsel %vm1321, %v1597, 0
      %v2024 = vsel %vm1321, %v1598, 0
      %v2027 = vsel %vm1321, %v1599, 0
      %v2030 = vsel %vm1321, %v1600, 0
      %2032 = vmatprep.subr.bf16.mxu0 0
      %2033 = vmatpush1.bf16.msra.mxu0 0
      %2034 = vmatprep.subr.bf16.mxu0 0
      %2035 = vmatpush1.bf16.msra.mxu0 0
      %2036 = vmatprep.subr.bf16.mxu0 0
      %2037 = vmatpush1.bf16.msra.mxu0 0
      %2038 = vmatprep.subr.bf16.mxu0 0
      %2039 = vmatpush1.bf16.msra.mxu0 0
      %2040 = vmatprep.subr.bf16.mxu0 0
      %2041 = vmatpush1.bf16.msra.mxu0 0
      %2042 = vmatprep.subr.bf16.mxu0 0
      %2043 = vmatpush1.bf16.msra.mxu0 0
      %2044 = vmatprep.subr.bf16.mxu0 0
      %2045 = vmatpush1.bf16.msra.mxu0 %v2017
      %2046 = vmatprep.subr.bf16.mxu0 0
      %2047 = vmatpush1.bf16.msra.mxu0 %v2016
      %2048 = vmatprep.subr.bf16.mxu0 0
      %2049 = vmatpush2.bf16.msra.mxu0 0
      %2050 = vmatprep.subr.bf16.mxu0 0
      %2051 = vmatpush2.bf16.msra.mxu0 0
      %2052 = vmatprep.subr.bf16.mxu0 0
      %2053 = vmatpush2.bf16.msra.mxu0 0
      %2054 = vmatprep.subr.bf16.mxu0 0
      %2055 = vmatpush2.bf16.msra.mxu0 0
      %2056 = vmatprep.subr.bf16.mxu0 0
      %2057 = vmatpush2.bf16.msra.mxu0 0
      %2058 = vmatprep.subr.bf16.mxu0 0
      %2059 = vmatpush2.bf16.msra.mxu0 0
      %2060 = vmatprep.subr.bf16.mxu0 0
      %2061 = vmatpush2.bf16.msra.mxu0 0
      %2062 = vmatprep.subr.bf16.mxu0 0
      %2063 = vmatpush2.bf16.msra.mxu0 0
      %2064 = vmatprep.mubr.bf16.mxu0 0
      %2065 = vmatmul.mubr.bf16.gmra.mxu0 %v2021
      %v2066 = vpop.f32.mrf.mxu0
      %v2067 = vadd.f32 %v1978, %v2066
      %v2068 = vpop.f32.mrf.mxu0
      %v2069 = vpop.f32.mrf.mxu0
      %v2070 = vadd.f32 %v1981, %v2069
      %v2071 = vpop.f32.mrf.mxu0
      %2072 = vmatprep.mubr.bf16.mxu0 0
      %2073 = vmatmul.mubr.bf16.gmra.mxu0 %v2024
      %v2074 = vpop.f32.mrf.mxu0
      %v2075 = vadd.f32 %v1986, %v2074
      %v2076 = vpop.f32.mrf.mxu0
      %v2077 = vpop.f32.mrf.mxu0
      %v2078 = vadd.f32 %v1989, %v2077
      %v2079 = vpop.f32.mrf.mxu0
      %2080 = vmatprep.mubr.bf16.mxu0 0
      %2081 = vmatmul.mubr.bf16.gmra.mxu0 %v2027
      %v2082 = vpop.f32.mrf.mxu0
      %v2083 = vadd.f32 %v1994, %v2082
      %v2084 = vpop.f32.mrf.mxu0
      %v2085 = vpop.f32.mrf.mxu0
      %v2086 = vadd.f32 %v1997, %v2085
      %v2087 = vpop.f32.mrf.mxu0
      %2088 = vmatprep.mubr.bf16.mxu0 0
      %2089 = vmatmul.mubr.bf16.gmra.mxu0 %v2030
      %v2090 = vpop.f32.mrf.mxu0
      %v2091 = vadd.f32 %v2002, %v2090
      %v2092 = vpop.f32.mrf.mxu0
      %v2093 = vpop.f32.mrf.mxu0
      %v2094 = vadd.f32 %v2005, %v2093
      %v2095 = vpop.f32.mrf.mxu0
      %2096 = vdwg.mxu0
      %2097 = vrot.lane.b32.xlu0 %v1309, 64
      %v2098 = vpop.permute.xlu0 %2097
      %2099 = vrot.lane.b32.xlu0 %v1310, 64
      %v2100 = vpop.permute.xlu0 %2099
      %2101 = vrot.lane.b32.xlu0 %v1311, 64
      %v2102 = vpop.permute.xlu0 %2101
      %2103 = vrot.lane.b32.xlu0 %v1312, 64
      %v2104 = vpop.permute.xlu0 %2103
      %2105 = vrot.lane.b32.xlu0 %v1313, 64
      %v2106 = vpop.permute.xlu0 %2105
      %2107 = vrot.lane.b32.xlu0 %v1314, 64
      %v2108 = vpop.permute.xlu0 %2107
      %2109 = vrot.lane.b32.xlu0 %v1315, 64
      %v2110 = vpop.permute.xlu0 %2109
      %2111 = vrot.lane.b32.xlu0 %v1316, 64
      %v2112 = vpop.permute.xlu0 %2111
      %v2114 = vsel %vm1321, %v2098, 0
      %v2117 = vsel %vm1321, %v2100, 0
      %v2120 = vsel %vm1321, %v2102, 0
      %v2123 = vsel %vm1321, %v2104, 0
      %v2126 = vsel %vm1321, %v2106, 0
      %v2129 = vsel %vm1321, %v2108, 0
      %v2132 = vsel %vm1321, %v2110, 0
      %v2135 = vsel %vm1321, %v2112, 0
      %2137 = vmatprep.subr.bf16.mxu0 0
      %2138 = vmatpush1.bf16.xpose.msra.mxu0 0
      %2139 = vmatprep.subr.bf16.mxu0 0
      %2140 = vmatpush1.bf16.xpose.msra.mxu0 0
      %2141 = vmatprep.subr.bf16.mxu0 0
      %2142 = vmatpush1.bf16.xpose.msra.mxu0 0
      %2143 = vmatprep.subr.bf16.mxu0 0
      %2144 = vmatpush1.bf16.xpose.msra.mxu0 0
      %2145 = vmatprep.subr.bf16.mxu0 0
      %2146 = vmatpush1.bf16.xpose.msra.mxu0 %v2135
      %2147 = vmatprep.subr.bf16.mxu0 0
      %2148 = vmatpush1.bf16.xpose.msra.mxu0 %v2132
      %2149 = vmatprep.subr.bf16.mxu0 0
      %2150 = vmatpush1.bf16.xpose.msra.mxu0 %v2129
      %2151 = vmatprep.subr.bf16.mxu0 0
      %2152 = vmatpush1.bf16.xpose.msra.mxu0 %v2126
      %2153 = vmatprep.subr.bf16.mxu0 0
      %2154 = vmatpush2.bf16.xpose.msra.mxu0 0
      %2155 = vmatprep.subr.bf16.mxu0 0
      %2156 = vmatpush2.bf16.xpose.msra.mxu0 0
      %2157 = vmatprep.subr.bf16.mxu0 0
      %2158 = vmatpush2.bf16.xpose.msra.mxu0 0
      %2159 = vmatprep.subr.bf16.mxu0 0
      %2160 = vmatpush2.bf16.xpose.msra.mxu0 0
      %2161 = vmatprep.subr.bf16.mxu0 0
      %2162 = vmatpush2.bf16.xpose.msra.mxu0 0
      %2163 = vmatprep.subr.bf16.mxu0 0
      %2164 = vmatpush2.bf16.xpose.msra.mxu0 0
      %2165 = vmatprep.subr.bf16.mxu0 0
      %2166 = vmatpush2.bf16.xpose.msra.mxu0 0
      %2167 = vmatprep.subr.bf16.mxu0 0
      %2168 = vmatpush2.bf16.xpose.msra.mxu0 0
      %2169 = vmatprep.mubr.bf16.mxu0 0
      %2170 = vmatmul.mubr.bf16.gmra.mxu0 %v2114
      %v2171 = vpop.f32.mrf.mxu0
      %v2172 = vadd.f32 0.0, %v2171
      %v2173 = vpop.f32.mrf.mxu0
      %v2174 = vpop.f32.mrf.mxu0
      %v2175 = vadd.f32 0.0, %v2174
      %v2176 = vpop.f32.mrf.mxu0
      %2177 = vmatprep.mubr.bf16.mxu0 0
      %2178 = vmatmul.mubr.bf16.gmra.mxu0 %v2117
      %v2179 = vpop.f32.mrf.mxu0
      %v2180 = vadd.f32 0.0, %v2179
      %v2181 = vpop.f32.mrf.mxu0
      %v2182 = vpop.f32.mrf.mxu0
      %v2183 = vadd.f32 0.0, %v2182
      %v2184 = vpop.f32.mrf.mxu0
      %2185 = vmatprep.mubr.bf16.mxu0 0
      %2186 = vmatmul.mubr.bf16.gmra.mxu0 %v2120
      %v2187 = vpop.f32.mrf.mxu0
      %v2188 = vadd.f32 0.0, %v2187
      %v2189 = vpop.f32.mrf.mxu0
      %v2190 = vpop.f32.mrf.mxu0
      %v2191 = vadd.f32 0.0, %v2190
      %v2192 = vpop.f32.mrf.mxu0
      %2193 = vmatprep.mubr.bf16.mxu0 0
      %2194 = vmatmul.mubr.bf16.gmra.mxu0 %v2123
      %v2195 = vpop.f32.mrf.mxu0
      %v2196 = vadd.f32 0.0, %v2195
      %v2197 = vpop.f32.mrf.mxu0
      %v2198 = vpop.f32.mrf.mxu0
      %v2199 = vadd.f32 0.0, %v2198
      %v2200 = vpop.f32.mrf.mxu0
      %2201 = vdwg.mxu0
      %v2202 = vmul.f32 %v2172, 0.28867513
      %v2203 = vmul.f32 %v2175, 0.28867513
      %v2204 = vmul.f32 %v2180, 0.28867513
      %v2205 = vmul.f32 %v2183, 0.28867513
      %v2206 = vmul.f32 %v2188, 0.28867513
      %v2207 = vmul.f32 %v2191, 0.28867513
      %v2208 = vmul.f32 %v2196, 0.28867513
      %v2209 = vmul.f32 %v2199, 0.28867513
      %v2210 = vadd.f32 %v2202, %v1277
      %v2211 = vadd.f32 %v2203, %v1278
      %v2212 = vadd.f32 %v2204, %v1279
      %v2213 = vadd.f32 %v2205, %v1280
      %v2214 = vadd.f32 %v2206, %v1281
      %v2215 = vadd.f32 %v2207, %v1282
      %v2216 = vadd.f32 %v2208, %v1283
      %v2217 = vadd.f32 %v2209, %v1284
      %v2218 = vsel %vm1427, %v2210, -inf
      %2219 = vmax.xlane.f32.xlu0 %v2218
      %v2220 = vpop.xlane.xlu0 %2219
      %v2221 = vsel %vm1427, %v2211, -inf
      %2222 = vmax.xlane.f32.xlu0 %v2221
      %v2223 = vpop.xlane.xlu0 %2222
      %v2224 = vsel %vm1427, %v2212, -inf
      %2225 = vmax.xlane.f32.xlu0 %v2224
      %v2226 = vpop.xlane.xlu0 %2225
      %v2227 = vsel %vm1427, %v2213, -inf
      %2228 = vmax.xlane.f32.xlu0 %v2227
      %v2229 = vpop.xlane.xlu0 %2228
      %v2230 = vsel %vm1427, %v2214, -inf
      %2231 = vmax.xlane.f32.xlu0 %v2230
      %v2232 = vpop.xlane.xlu0 %2231
      %v2233 = vsel %vm1427, %v2215, -inf
      %2234 = vmax.xlane.f32.xlu0 %v2233
      %v2235 = vpop.xlane.xlu0 %2234
      %v2236 = vsel %vm1427, %v2216, -inf
      %2237 = vmax.xlane.f32.xlu0 %v2236
      %v2238 = vpop.xlane.xlu0 %2237
      %v2239 = vsel %vm1427, %v2217, -inf
      %2240 = vmax.xlane.f32.xlu0 %v2239
      %v2241 = vpop.xlane.xlu0 %2240
      %v2242 = vsub.f32 %v2210, %v2220
      %v2243 = vsub.f32 %v2211, %v2223
      %v2244 = vsub.f32 %v2212, %v2226
      %v2245 = vsub.f32 %v2213, %v2229
      %v2246 = vsub.f32 %v2214, %v2232
      %v2247 = vsub.f32 %v2215, %v2235
      %v2248 = vsub.f32 %v2216, %v2238
      %v2249 = vsub.f32 %v2217, %v2241
      %v2250 = vmul.f32 %v2242, 1.442695
      %v2251 = vpow.pop %v2250
      %v2252 = vmul.f32 %v2243, 1.442695
      %v2253 = vpow.pop %v2252
      %v2254 = vmul.f32 %v2244, 1.442695
      %v2255 = vpow.pop %v2254
      %v2256 = vmul.f32 %v2245, 1.442695
      %v2257 = vpow.pop %v2256
      %v2258 = vmul.f32 %v2246, 1.442695
      %v2259 = vpow.pop %v2258
      %v2260 = vmul.f32 %v2247, 1.442695
      %v2261 = vpow.pop %v2260
      %v2262 = vmul.f32 %v2248, 1.442695
      %v2263 = vpow.pop %v2262
      %v2264 = vmul.f32 %v2249, 1.442695
      %v2265 = vpow.pop %v2264
      %v2266 = vsel %vm1427, %v2251, 0.0
      %2267 = vadd.xlane.f32.xlu0 %v2266
      %v2268 = vpop.xlane.xlu0 %2267
      %v2269 = vsel %vm1427, %v2253, 0.0
      %2270 = vadd.xlane.f32.xlu0 %v2269
      %v2271 = vpop.xlane.xlu0 %2270
      %v2272 = vsel %vm1427, %v2255, 0.0
      %2273 = vadd.xlane.f32.xlu0 %v2272
      %v2274 = vpop.xlane.xlu0 %2273
      %v2275 = vsel %vm1427, %v2257, 0.0
      %2276 = vadd.xlane.f32.xlu0 %v2275
      %v2277 = vpop.xlane.xlu0 %2276
      %v2278 = vsel %vm1427, %v2259, 0.0
      %2279 = vadd.xlane.f32.xlu0 %v2278
      %v2280 = vpop.xlane.xlu0 %2279
      %v2281 = vsel %vm1427, %v2261, 0.0
      %2282 = vadd.xlane.f32.xlu0 %v2281
      %v2283 = vpop.xlane.xlu0 %2282
      %v2284 = vsel %vm1427, %v2263, 0.0
      %2285 = vadd.xlane.f32.xlu0 %v2284
      %v2286 = vpop.xlane.xlu0 %2285
      %v2287 = vsel %vm1427, %v2265, 0.0
      %2288 = vadd.xlane.f32.xlu0 %v2287
      %v2289 = vpop.xlane.xlu0 %2288
      %v2290 = vrcp.pop %v2268
      %v2291 = vrcp.pop %v2271
      %v2292 = vrcp.pop %v2274
      %v2293 = vrcp.pop %v2277
      %v2294 = vrcp.pop %v2280
      %v2295 = vrcp.pop %v2283
      %v2296 = vrcp.pop %v2286
      %v2297 = vrcp.pop %v2289
      %v2298 = vmul.f32 %v2251, %v2290
      %v2299 = vmul.f32 %v2253, %v2291
      %v2300 = vmul.f32 %v2255, %v2292
      %v2301 = vmul.f32 %v2257, %v2293
      %v2302 = vmul.f32 %v2259, %v2294
      %v2303 = vmul.f32 %v2261, %v2295
      %v2304 = vmul.f32 %v2263, %v2296
      %v2305 = vmul.f32 %v2265, %v2297
      %v2306 = vpack.c.bf16 %v2299, %v2298
      %v2307 = vpack.c.bf16 %v2301, %v2300
      %v2308 = vpack.c.bf16 %v2303, %v2302
      %v2309 = vpack.c.bf16 %v2305, %v2304
      %2310 = vrot.lane.b32.xlu0 %v1317, 64
      %v2311 = vpop.permute.xlu0 %2310
      %2312 = vrot.lane.b32.xlu0 %v1318, 64
      %v2313 = vpop.permute.xlu0 %2312
      %2314 = vrot.lane.b32.xlu0 %v1319, 64
      %v2315 = vpop.permute.xlu0 %2314
      %2316 = vrot.lane.b32.xlu0 %v1320, 64
      %v2317 = vpop.permute.xlu0 %2316
      %v2323 = vsel %vm1427, %v2306, 0
      %v2326 = vsel %vm1427, %v2307, 0
      %v2329 = vsel %vm1427, %v2308, 0
      %v2332 = vsel %vm1427, %v2309, 0
      %2334 = vmatprep.subr.bf16.mxu0 0
      %2335 = vmatpush1.bf16.msra.mxu0 0
      %2336 = vmatprep.subr.bf16.mxu0 0
      %2337 = vmatpush1.bf16.msra.mxu0 0
      %2338 = vmatprep.subr.bf16.mxu0 0
      %2339 = vmatpush1.bf16.msra.mxu0 0
      %2340 = vmatprep.subr.bf16.mxu0 0
      %2341 = vmatpush1.bf16.msra.mxu0 0
      %2342 = vmatprep.subr.bf16.mxu0 0
      %2343 = vmatpush1.bf16.msra.mxu0 %v2317
      %2344 = vmatprep.subr.bf16.mxu0 0
      %2345 = vmatpush1.bf16.msra.mxu0 %v2315
      %2346 = vmatprep.subr.bf16.mxu0 0
      %2347 = vmatpush1.bf16.msra.mxu0 %v2313
      %2348 = vmatprep.subr.bf16.mxu0 0
      %2349 = vmatpush1.bf16.msra.mxu0 %v2311
      %2350 = vmatprep.subr.bf16.mxu0 0
      %2351 = vmatpush2.bf16.msra.mxu0 0
      %2352 = vmatprep.subr.bf16.mxu0 0
      %2353 = vmatpush2.bf16.msra.mxu0 0
      %2354 = vmatprep.subr.bf16.mxu0 0
      %2355 = vmatpush2.bf16.msra.mxu0 0
      %2356 = vmatprep.subr.bf16.mxu0 0
      %2357 = vmatpush2.bf16.msra.mxu0 0
      %2358 = vmatprep.subr.bf16.mxu0 0
      %2359 = vmatpush2.bf16.msra.mxu0 0
      %2360 = vmatprep.subr.bf16.mxu0 0
      %2361 = vmatpush2.bf16.msra.mxu0 0
      %2362 = vmatprep.subr.bf16.mxu0 0
      %2363 = vmatpush2.bf16.msra.mxu0 0
      %2364 = vmatprep.subr.bf16.mxu0 0
      %2365 = vmatpush2.bf16.msra.mxu0 0
      %2366 = vmatprep.mubr.bf16.mxu0 0
      %2367 = vmatmul.mubr.bf16.gmra.mxu0 %v2323
      %v2368 = vpop.f32.mrf.mxu0
      %v2369 = vadd.f32 0.0, %v2368
      %v2370 = vpop.f32.mrf.mxu0
      %v2371 = vpop.f32.mrf.mxu0
      %v2372 = vadd.f32 0.0, %v2371
      %v2373 = vpop.f32.mrf.mxu0
      %2374 = vmatprep.mubr.bf16.mxu0 0
      %2375 = vmatmul.mubr.bf16.gmra.mxu0 %v2326
      %v2376 = vpop.f32.mrf.mxu0
      %v2377 = vadd.f32 0.0, %v2376
      %v2378 = vpop.f32.mrf.mxu0
      %v2379 = vpop.f32.mrf.mxu0
      %v2380 = vadd.f32 0.0, %v2379
      %v2381 = vpop.f32.mrf.mxu0
      %2382 = vmatprep.mubr.bf16.mxu0 0
      %2383 = vmatmul.mubr.bf16.gmra.mxu0 %v2329
      %v2384 = vpop.f32.mrf.mxu0
      %v2385 = vadd.f32 0.0, %v2384
      %v2386 = vpop.f32.mrf.mxu0
      %v2387 = vpop.f32.mrf.mxu0
      %v2388 = vadd.f32 0.0, %v2387
      %v2389 = vpop.f32.mrf.mxu0
      %2390 = vmatprep.mubr.bf16.mxu0 0
      %2391 = vmatmul.mubr.bf16.gmra.mxu0 %v2332
      %v2392 = vpop.f32.mrf.mxu0
      %v2393 = vadd.f32 0.0, %v2392
      %v2394 = vpop.f32.mrf.mxu0
      %v2395 = vpop.f32.mrf.mxu0
      %v2396 = vadd.f32 0.0, %v2395
      %v2397 = vpop.f32.mrf.mxu0
      %2398 = vdwg.mxu0
      %v2399 = vpack.c.bf16 %v2372, %v2369
      %v2400 = vpack.c.bf16 %v2380, %v2377
      %v2401 = vpack.c.bf16 %v2388, %v2385
      %v2402 = vpack.c.bf16 %v2396, %v2393
      %v2407 = vunpack.c.l.b16 %v1301
      %v2408 = vunpack.c.l.b16 %v1302
      %v2409 = vunpack.c.l.b16 %v1303
      %v2410 = vunpack.c.l.b16 %v1304
      %v2411 = vpack.c.b16 %v2408, %v2407
      %v2412 = vpack.c.b16 %v2410, %v2409
      %v2416 = vsel %vm1321, %v2399, 0
      %v2419 = vsel %vm1321, %v2400, 0
      %v2422 = vsel %vm1321, %v2401, 0
      %v2425 = vsel %vm1321, %v2402, 0
      %2427 = vmatprep.subr.bf16.mxu0 0
      %2428 = vmatpush1.bf16.msra.mxu0 0
      %2429 = vmatprep.subr.bf16.mxu0 0
      %2430 = vmatpush1.bf16.msra.mxu0 0
      %2431 = vmatprep.subr.bf16.mxu0 0
      %2432 = vmatpush1.bf16.msra.mxu0 0
      %2433 = vmatprep.subr.bf16.mxu0 0
      %2434 = vmatpush1.bf16.msra.mxu0 0
      %2435 = vmatprep.subr.bf16.mxu0 0
      %2436 = vmatpush1.bf16.msra.mxu0 0
      %2437 = vmatprep.subr.bf16.mxu0 0
      %2438 = vmatpush1.bf16.msra.mxu0 0
      %2439 = vmatprep.subr.bf16.mxu0 0
      %2440 = vmatpush1.bf16.msra.mxu0 %v2412
      %2441 = vmatprep.subr.bf16.mxu0 0
      %2442 = vmatpush1.bf16.msra.mxu0 %v2411
      %2443 = vmatprep.subr.bf16.mxu0 0
      %2444 = vmatpush2.bf16.msra.mxu0 0
      %2445 = vmatprep.subr.bf16.mxu0 0
      %2446 = vmatpush2.bf16.msra.mxu0 0
      %2447 = vmatprep.subr.bf16.mxu0 0
      %2448 = vmatpush2.bf16.msra.mxu0 0
      %2449 = vmatprep.subr.bf16.mxu0 0
      %2450 = vmatpush2.bf16.msra.mxu0 0
      %2451 = vmatprep.subr.bf16.mxu0 0
      %2452 = vmatpush2.bf16.msra.mxu0 0
      %2453 = vmatprep.subr.bf16.mxu0 0
      %2454 = vmatpush2.bf16.msra.mxu0 0
      %2455 = vmatprep.subr.bf16.mxu0 0
      %2456 = vmatpush2.bf16.msra.mxu0 0
      %2457 = vmatprep.subr.bf16.mxu0 0
      %2458 = vmatpush2.bf16.msra.mxu0 0
      %2459 = vmatprep.mubr.bf16.mxu0 0
      %2460 = vmatmul.mubr.bf16.gmra.mxu0 %v2416
      %v2461 = vpop.f32.mrf.mxu0
      %v2462 = vadd.f32 0.0, %v2461
      %v2463 = vpop.f32.mrf.mxu0
      %v2464 = vpop.f32.mrf.mxu0
      %v2465 = vadd.f32 0.0, %v2464
      %v2466 = vpop.f32.mrf.mxu0
      %2467 = vmatprep.mubr.bf16.mxu0 0
      %2468 = vmatmul.mubr.bf16.gmra.mxu0 %v2419
      %v2469 = vpop.f32.mrf.mxu0
      %v2470 = vadd.f32 0.0, %v2469
      %v2471 = vpop.f32.mrf.mxu0
      %v2472 = vpop.f32.mrf.mxu0
      %v2473 = vadd.f32 0.0, %v2472
      %v2474 = vpop.f32.mrf.mxu0
      %2475 = vmatprep.mubr.bf16.mxu0 0
      %2476 = vmatmul.mubr.bf16.gmra.mxu0 %v2422
      %v2477 = vpop.f32.mrf.mxu0
      %v2478 = vadd.f32 0.0, %v2477
      %v2479 = vpop.f32.mrf.mxu0
      %v2480 = vpop.f32.mrf.mxu0
      %v2481 = vadd.f32 0.0, %v2480
      %v2482 = vpop.f32.mrf.mxu0
      %2483 = vmatprep.mubr.bf16.mxu0 0
      %2484 = vmatmul.mubr.bf16.gmra.mxu0 %v2425
      %v2485 = vpop.f32.mrf.mxu0
      %v2486 = vadd.f32 0.0, %v2485
      %v2487 = vpop.f32.mrf.mxu0
      %v2488 = vpop.f32.mrf.mxu0
      %v2489 = vadd.f32 0.0, %v2488
      %v2490 = vpop.f32.mrf.mxu0
      %2491 = vdwg.mxu0
      %v2492 = vadd.f32 %v2067, %v2462
      %v2493 = vadd.f32 %v2070, %v2465
      %v2494 = vadd.f32 %v2075, %v2470
      %v2495 = vadd.f32 %v2078, %v2473
      %v2496 = vadd.f32 %v2083, %v2478
      %v2497 = vadd.f32 %v2086, %v2481
      %v2498 = vadd.f32 %v2091, %v2486
      %v2499 = vadd.f32 %v2094, %v2489
      %2500 = vrot.lane.b32.xlu0 %v1309, 32
      %v2501 = vpop.permute.xlu0 %2500
      %2502 = vrot.lane.b32.xlu0 %v1310, 32
      %v2503 = vpop.permute.xlu0 %2502
      %2504 = vrot.lane.b32.xlu0 %v1311, 32
      %v2505 = vpop.permute.xlu0 %2504
      %2506 = vrot.lane.b32.xlu0 %v1312, 32
      %v2507 = vpop.permute.xlu0 %2506
      %2508 = vrot.lane.b32.xlu0 %v1313, 32
      %v2509 = vpop.permute.xlu0 %2508
      %2510 = vrot.lane.b32.xlu0 %v1314, 32
      %v2511 = vpop.permute.xlu0 %2510
      %2512 = vrot.lane.b32.xlu0 %v1315, 32
      %v2513 = vpop.permute.xlu0 %2512
      %2514 = vrot.lane.b32.xlu0 %v1316, 32
      %v2515 = vpop.permute.xlu0 %2514
      %v2517 = vsel %vm1321, %v2501, 0
      %v2520 = vsel %vm1321, %v2503, 0
      %v2523 = vsel %vm1321, %v2505, 0
      %v2526 = vsel %vm1321, %v2507, 0
      %v2529 = vsel %vm1321, %v2509, 0
      %v2532 = vsel %vm1321, %v2511, 0
      %v2535 = vsel %vm1321, %v2513, 0
      %v2538 = vsel %vm1321, %v2515, 0
      %2540 = vmatprep.subr.bf16.mxu0 0
      %2541 = vmatpush1.bf16.xpose.msra.mxu0 0
      %2542 = vmatprep.subr.bf16.mxu0 0
      %2543 = vmatpush1.bf16.xpose.msra.mxu0 0
      %2544 = vmatprep.subr.bf16.mxu0 0
      %2545 = vmatpush1.bf16.xpose.msra.mxu0 0
      %2546 = vmatprep.subr.bf16.mxu0 0
      %2547 = vmatpush1.bf16.xpose.msra.mxu0 0
      %2548 = vmatprep.subr.bf16.mxu0 0
      %2549 = vmatpush1.bf16.xpose.msra.mxu0 %v2538
      %2550 = vmatprep.subr.bf16.mxu0 0
      %2551 = vmatpush1.bf16.xpose.msra.mxu0 %v2535
      %2552 = vmatprep.subr.bf16.mxu0 0
      %2553 = vmatpush1.bf16.xpose.msra.mxu0 %v2532
      %2554 = vmatprep.subr.bf16.mxu0 0
      %2555 = vmatpush1.bf16.xpose.msra.mxu0 %v2529
      %2556 = vmatprep.subr.bf16.mxu0 0
      %2557 = vmatpush2.bf16.xpose.msra.mxu0 0
      %2558 = vmatprep.subr.bf16.mxu0 0
      %2559 = vmatpush2.bf16.xpose.msra.mxu0 0
      %2560 = vmatprep.subr.bf16.mxu0 0
      %2561 = vmatpush2.bf16.xpose.msra.mxu0 0
      %2562 = vmatprep.subr.bf16.mxu0 0
      %2563 = vmatpush2.bf16.xpose.msra.mxu0 0
      %2564 = vmatprep.subr.bf16.mxu0 0
      %2565 = vmatpush2.bf16.xpose.msra.mxu0 0
      %2566 = vmatprep.subr.bf16.mxu0 0
      %2567 = vmatpush2.bf16.xpose.msra.mxu0 0
      %2568 = vmatprep.subr.bf16.mxu0 0
      %2569 = vmatpush2.bf16.xpose.msra.mxu0 0
      %2570 = vmatprep.subr.bf16.mxu0 0
      %2571 = vmatpush2.bf16.xpose.msra.mxu0 0
      %2572 = vmatprep.mubr.bf16.mxu0 0
      %2573 = vmatmul.mubr.bf16.gmra.mxu0 %v2517
      %v2574 = vpop.f32.mrf.mxu0
      %v2575 = vadd.f32 0.0, %v2574
      %v2576 = vpop.f32.mrf.mxu0
      %v2577 = vpop.f32.mrf.mxu0
      %v2578 = vadd.f32 0.0, %v2577
      %v2579 = vpop.f32.mrf.mxu0
      %2580 = vmatprep.mubr.bf16.mxu0 0
      %2581 = vmatmul.mubr.bf16.gmra.mxu0 %v2520
      %v2582 = vpop.f32.mrf.mxu0
      %v2583 = vadd.f32 0.0, %v2582
      %v2584 = vpop.f32.mrf.mxu0
      %v2585 = vpop.f32.mrf.mxu0
      %v2586 = vadd.f32 0.0, %v2585
      %v2587 = vpop.f32.mrf.mxu0
      %2588 = vmatprep.mubr.bf16.mxu0 0
      %2589 = vmatmul.mubr.bf16.gmra.mxu0 %v2523
      %v2590 = vpop.f32.mrf.mxu0
      %v2591 = vadd.f32 0.0, %v2590
      %v2592 = vpop.f32.mrf.mxu0
      %v2593 = vpop.f32.mrf.mxu0
      %v2594 = vadd.f32 0.0, %v2593
      %v2595 = vpop.f32.mrf.mxu0
      %2596 = vmatprep.mubr.bf16.mxu0 0
      %2597 = vmatmul.mubr.bf16.gmra.mxu0 %v2526
      %v2598 = vpop.f32.mrf.mxu0
      %v2599 = vadd.f32 0.0, %v2598
      %v2600 = vpop.f32.mrf.mxu0
      %v2601 = vpop.f32.mrf.mxu0
      %v2602 = vadd.f32 0.0, %v2601
      %v2603 = vpop.f32.mrf.mxu0
      %2604 = vdwg.mxu0
      %v2605 = vmul.f32 %v2575, 0.28867513
      %v2606 = vmul.f32 %v2578, 0.28867513
      %v2607 = vmul.f32 %v2583, 0.28867513
      %v2608 = vmul.f32 %v2586, 0.28867513
      %v2609 = vmul.f32 %v2591, 0.28867513
      %v2610 = vmul.f32 %v2594, 0.28867513
      %v2611 = vmul.f32 %v2599, 0.28867513
      %v2612 = vmul.f32 %v2602, 0.28867513
      %v2613 = vadd.f32 %v2605, %v1285
      %v2614 = vadd.f32 %v2606, %v1286
      %v2615 = vadd.f32 %v2607, %v1287
      %v2616 = vadd.f32 %v2608, %v1288
      %v2617 = vadd.f32 %v2609, %v1289
      %v2618 = vadd.f32 %v2610, %v1290
      %v2619 = vadd.f32 %v2611, %v1291
      %v2620 = vadd.f32 %v2612, %v1292
      %v2621 = vsel %vm1427, %v2613, -inf
      %2622 = vmax.xlane.f32.xlu0 %v2621
      %v2623 = vpop.xlane.xlu0 %2622
      %v2624 = vsel %vm1427, %v2614, -inf
      %2625 = vmax.xlane.f32.xlu0 %v2624
      %v2626 = vpop.xlane.xlu0 %2625
      %v2627 = vsel %vm1427, %v2615, -inf
      %2628 = vmax.xlane.f32.xlu0 %v2627
      %v2629 = vpop.xlane.xlu0 %2628
      %v2630 = vsel %vm1427, %v2616, -inf
      %2631 = vmax.xlane.f32.xlu0 %v2630
      %v2632 = vpop.xlane.xlu0 %2631
      %v2633 = vsel %vm1427, %v2617, -inf
      %2634 = vmax.xlane.f32.xlu0 %v2633
      %v2635 = vpop.xlane.xlu0 %2634
      %v2636 = vsel %vm1427, %v2618, -inf
      %2637 = vmax.xlane.f32.xlu0 %v2636
      %v2638 = vpop.xlane.xlu0 %2637
      %v2639 = vsel %vm1427, %v2619, -inf
      %2640 = vmax.xlane.f32.xlu0 %v2639
      %v2641 = vpop.xlane.xlu0 %2640
      %v2642 = vsel %vm1427, %v2620, -inf
      %2643 = vmax.xlane.f32.xlu0 %v2642
      %v2644 = vpop.xlane.xlu0 %2643
      %v2645 = vsub.f32 %v2613, %v2623
      %v2646 = vsub.f32 %v2614, %v2626
      %v2647 = vsub.f32 %v2615, %v2629
      %v2648 = vsub.f32 %v2616, %v2632
      %v2649 = vsub.f32 %v2617, %v2635
      %v2650 = vsub.f32 %v2618, %v2638
      %v2651 = vsub.f32 %v2619, %v2641
      %v2652 = vsub.f32 %v2620, %v2644
      %v2653 = vmul.f32 %v2645, 1.442695
      %v2654 = vpow.pop %v2653
      %v2655 = vmul.f32 %v2646, 1.442695
      %v2656 = vpow.pop %v2655
      %v2657 = vmul.f32 %v2647, 1.442695
      %v2658 = vpow.pop %v2657
      %v2659 = vmul.f32 %v2648, 1.442695
      %v2660 = vpow.pop %v2659
      %v2661 = vmul.f32 %v2649, 1.442695
      %v2662 = vpow.pop %v2661
      %v2663 = vmul.f32 %v2650, 1.442695
      %v2664 = vpow.pop %v2663
      %v2665 = vmul.f32 %v2651, 1.442695
      %v2666 = vpow.pop %v2665
      %v2667 = vmul.f32 %v2652, 1.442695
      %v2668 = vpow.pop %v2667
      %v2669 = vsel %vm1427, %v2654, 0.0
      %2670 = vadd.xlane.f32.xlu0 %v2669
      %v2671 = vpop.xlane.xlu0 %2670
      %v2672 = vsel %vm1427, %v2656, 0.0
      %2673 = vadd.xlane.f32.xlu0 %v2672
      %v2674 = vpop.xlane.xlu0 %2673
      %v2675 = vsel %vm1427, %v2658, 0.0
      %2676 = vadd.xlane.f32.xlu0 %v2675
      %v2677 = vpop.xlane.xlu0 %2676
      %v2678 = vsel %vm1427, %v2660, 0.0
      %2679 = vadd.xlane.f32.xlu0 %v2678
      %v2680 = vpop.xlane.xlu0 %2679
      %v2681 = vsel %vm1427, %v2662, 0.0
      %2682 = vadd.xlane.f32.xlu0 %v2681
      %v2683 = vpop.xlane.xlu0 %2682
      %v2684 = vsel %vm1427, %v2664, 0.0
      %2685 = vadd.xlane.f32.xlu0 %v2684
      %v2686 = vpop.xlane.xlu0 %2685
      %v2687 = vsel %vm1427, %v2666, 0.0
      %2688 = vadd.xlane.f32.xlu0 %v2687
      %v2689 = vpop.xlane.xlu0 %2688
      %v2690 = vsel %vm1427, %v2668, 0.0
      %2691 = vadd.xlane.f32.xlu0 %v2690
      %v2692 = vpop.xlane.xlu0 %2691
      %v2693 = vrcp.pop %v2671
      %v2694 = vrcp.pop %v2674
      %v2695 = vrcp.pop %v2677
      %v2696 = vrcp.pop %v2680
      %v2697 = vrcp.pop %v2683
      %v2698 = vrcp.pop %v2686
      %v2699 = vrcp.pop %v2689
      %v2700 = vrcp.pop %v2692
      %v2701 = vmul.f32 %v2654, %v2693
      %v2702 = vmul.f32 %v2656, %v2694
      %v2703 = vmul.f32 %v2658, %v2695
      %v2704 = vmul.f32 %v2660, %v2696
      %v2705 = vmul.f32 %v2662, %v2697
      %v2706 = vmul.f32 %v2664, %v2698
      %v2707 = vmul.f32 %v2666, %v2699
      %v2708 = vmul.f32 %v2668, %v2700
      %v2709 = vpack.c.bf16 %v2702, %v2701
      %v2710 = vpack.c.bf16 %v2704, %v2703
      %v2711 = vpack.c.bf16 %v2706, %v2705
      %v2712 = vpack.c.bf16 %v2708, %v2707
      %2713 = vrot.lane.b32.xlu0 %v1317, 32
      %v2714 = vpop.permute.xlu0 %2713
      %2715 = vrot.lane.b32.xlu0 %v1318, 32
      %v2716 = vpop.permute.xlu0 %2715
      %2717 = vrot.lane.b32.xlu0 %v1319, 32
      %v2718 = vpop.permute.xlu0 %2717
      %2719 = vrot.lane.b32.xlu0 %v1320, 32
      %v2720 = vpop.permute.xlu0 %2719
      %v2726 = vsel %vm1427, %v2709, 0
      %v2729 = vsel %vm1427, %v2710, 0
      %v2732 = vsel %vm1427, %v2711, 0
      %v2735 = vsel %vm1427, %v2712, 0
      %2737 = vmatprep.subr.bf16.mxu0 0
      %2738 = vmatpush1.bf16.msra.mxu0 0
      %2739 = vmatprep.subr.bf16.mxu0 0
      %2740 = vmatpush1.bf16.msra.mxu0 0
      %2741 = vmatprep.subr.bf16.mxu0 0
      %2742 = vmatpush1.bf16.msra.mxu0 0
      %2743 = vmatprep.subr.bf16.mxu0 0
      %2744 = vmatpush1.bf16.msra.mxu0 0
      %2745 = vmatprep.subr.bf16.mxu0 0
      %2746 = vmatpush1.bf16.msra.mxu0 %v2720
      %2747 = vmatprep.subr.bf16.mxu0 0
      %2748 = vmatpush1.bf16.msra.mxu0 %v2718
      %2749 = vmatprep.subr.bf16.mxu0 0
      %2750 = vmatpush1.bf16.msra.mxu0 %v2716
      %2751 = vmatprep.subr.bf16.mxu0 0
      %2752 = vmatpush1.bf16.msra.mxu0 %v2714
      %2753 = vmatprep.subr.bf16.mxu0 0
      %2754 = vmatpush2.bf16.msra.mxu0 0
      %2755 = vmatprep.subr.bf16.mxu0 0
      %2756 = vmatpush2.bf16.msra.mxu0 0
      %2757 = vmatprep.subr.bf16.mxu0 0
      %2758 = vmatpush2.bf16.msra.mxu0 0
      %2759 = vmatprep.subr.bf16.mxu0 0
      %2760 = vmatpush2.bf16.msra.mxu0 0
      %2761 = vmatprep.subr.bf16.mxu0 0
      %2762 = vmatpush2.bf16.msra.mxu0 0
      %2763 = vmatprep.subr.bf16.mxu0 0
      %2764 = vmatpush2.bf16.msra.mxu0 0
      %2765 = vmatprep.subr.bf16.mxu0 0
      %2766 = vmatpush2.bf16.msra.mxu0 0
      %2767 = vmatprep.subr.bf16.mxu0 0
      %2768 = vmatpush2.bf16.msra.mxu0 0
      %2769 = vmatprep.mubr.bf16.mxu0 0
      %2770 = vmatmul.mubr.bf16.gmra.mxu0 %v2726
      %v2771 = vpop.f32.mrf.mxu0
      %v2772 = vadd.f32 0.0, %v2771
      %v2773 = vpop.f32.mrf.mxu0
      %v2774 = vpop.f32.mrf.mxu0
      %v2775 = vadd.f32 0.0, %v2774
      %v2776 = vpop.f32.mrf.mxu0
      %2777 = vmatprep.mubr.bf16.mxu0 0
      %2778 = vmatmul.mubr.bf16.gmra.mxu0 %v2729
      %v2779 = vpop.f32.mrf.mxu0
      %v2780 = vadd.f32 0.0, %v2779
      %v2781 = vpop.f32.mrf.mxu0
      %v2782 = vpop.f32.mrf.mxu0
      %v2783 = vadd.f32 0.0, %v2782
      %v2784 = vpop.f32.mrf.mxu0
      %2785 = vmatprep.mubr.bf16.mxu0 0
      %2786 = vmatmul.mubr.bf16.gmra.mxu0 %v2732
      %v2787 = vpop.f32.mrf.mxu0
      %v2788 = vadd.f32 0.0, %v2787
      %v2789 = vpop.f32.mrf.mxu0
      %v2790 = vpop.f32.mrf.mxu0
      %v2791 = vadd.f32 0.0, %v2790
      %v2792 = vpop.f32.mrf.mxu0
      %2793 = vmatprep.mubr.bf16.mxu0 0
      %2794 = vmatmul.mubr.bf16.gmra.mxu0 %v2735
      %v2795 = vpop.f32.mrf.mxu0
      %v2796 = vadd.f32 0.0, %v2795
      %v2797 = vpop.f32.mrf.mxu0
      %v2798 = vpop.f32.mrf.mxu0
      %v2799 = vadd.f32 0.0, %v2798
      %v2800 = vpop.f32.mrf.mxu0
      %2801 = vdwg.mxu0
      %v2802 = vpack.c.bf16 %v2775, %v2772
      %v2803 = vpack.c.bf16 %v2783, %v2780
      %v2804 = vpack.c.bf16 %v2791, %v2788
      %v2805 = vpack.c.bf16 %v2799, %v2796
      %v2810 = vunpack.c.l.b16 %v1305
      %v2811 = vunpack.c.l.b16 %v1306
      %v2812 = vunpack.c.l.b16 %v1307
      %v2813 = vunpack.c.l.b16 %v1308
      %v2814 = vpack.c.b16 %v2811, %v2810
      %v2815 = vpack.c.b16 %v2813, %v2812
      %v2819 = vsel %vm1321, %v2802, 0
      %v2822 = vsel %vm1321, %v2803, 0
      %v2825 = vsel %vm1321, %v2804, 0
      %v2828 = vsel %vm1321, %v2805, 0
      %2830 = vmatprep.subr.bf16.mxu0 0
      %2831 = vmatpush1.bf16.msra.mxu0 0
      %2832 = vmatprep.subr.bf16.mxu0 0
      %2833 = vmatpush1.bf16.msra.mxu0 0
      %2834 = vmatprep.subr.bf16.mxu0 0
      %2835 = vmatpush1.bf16.msra.mxu0 0
      %2836 = vmatprep.subr.bf16.mxu0 0
      %2837 = vmatpush1.bf16.msra.mxu0 0
      %2838 = vmatprep.subr.bf16.mxu0 0
      %2839 = vmatpush1.bf16.msra.mxu0 0
      %2840 = vmatprep.subr.bf16.mxu0 0
      %2841 = vmatpush1.bf16.msra.mxu0 0
      %2842 = vmatprep.subr.bf16.mxu0 0
      %2843 = vmatpush1.bf16.msra.mxu0 %v2815
      %2844 = vmatprep.subr.bf16.mxu0 0
      %2845 = vmatpush1.bf16.msra.mxu0 %v2814
      %2846 = vmatprep.subr.bf16.mxu0 0
      %2847 = vmatpush2.bf16.msra.mxu0 0
      %2848 = vmatprep.subr.bf16.mxu0 0
      %2849 = vmatpush2.bf16.msra.mxu0 0
      %2850 = vmatprep.subr.bf16.mxu0 0
      %2851 = vmatpush2.bf16.msra.mxu0 0
      %2852 = vmatprep.subr.bf16.mxu0 0
      %2853 = vmatpush2.bf16.msra.mxu0 0
      %2854 = vmatprep.subr.bf16.mxu0 0
      %2855 = vmatpush2.bf16.msra.mxu0 0
      %2856 = vmatprep.subr.bf16.mxu0 0
      %2857 = vmatpush2.bf16.msra.mxu0 0
      %2858 = vmatprep.subr.bf16.mxu0 0
      %2859 = vmatpush2.bf16.msra.mxu0 0
      %2860 = vmatprep.subr.bf16.mxu0 0
      %2861 = vmatpush2.bf16.msra.mxu0 0
      %2862 = vmatprep.mubr.bf16.mxu0 0
      %2863 = vmatmul.mubr.bf16.gmra.mxu0 %v2819
      %v2864 = vpop.f32.mrf.mxu0
      %v2865 = vadd.f32 0.0, %v2864
      %v2866 = vpop.f32.mrf.mxu0
      %v2867 = vpop.f32.mrf.mxu0
      %v2868 = vadd.f32 0.0, %v2867
      %v2869 = vpop.f32.mrf.mxu0
      %2870 = vmatprep.mubr.bf16.mxu0 0
      %2871 = vmatmul.mubr.bf16.gmra.mxu0 %v2822
      %v2872 = vpop.f32.mrf.mxu0
      %v2873 = vadd.f32 0.0, %v2872
      %v2874 = vpop.f32.mrf.mxu0
      %v2875 = vpop.f32.mrf.mxu0
      %v2876 = vadd.f32 0.0, %v2875
      %v2877 = vpop.f32.mrf.mxu0
      %2878 = vmatprep.mubr.bf16.mxu0 0
      %2879 = vmatmul.mubr.bf16.gmra.mxu0 %v2825
      %v2880 = vpop.f32.mrf.mxu0
      %v2881 = vadd.f32 0.0, %v2880
      %v2882 = vpop.f32.mrf.mxu0
      %v2883 = vpop.f32.mrf.mxu0
      %v2884 = vadd.f32 0.0, %v2883
      %v2885 = vpop.f32.mrf.mxu0
      %2886 = vmatprep.mubr.bf16.mxu0 0
      %2887 = vmatmul.mubr.bf16.gmra.mxu0 %v2828
      %v2888 = vpop.f32.mrf.mxu0
      %v2889 = vadd.f32 0.0, %v2888
      %v2890 = vpop.f32.mrf.mxu0
      %v2891 = vpop.f32.mrf.mxu0
      %v2892 = vadd.f32 0.0, %v2891
      %v2893 = vpop.f32.mrf.mxu0
      %2894 = vdwg.mxu0
      %v2895 = vadd.f32 %v2492, %v2865
      %v2896 = vadd.f32 %v2493, %v2868
      %v2897 = vadd.f32 %v2494, %v2873
      %v2898 = vadd.f32 %v2495, %v2876
      %v2899 = vadd.f32 %v2496, %v2881
      %v2900 = vadd.f32 %v2497, %v2884
      %v2901 = vadd.f32 %v2498, %v2889
      %v2902 = vadd.f32 %v2499, %v2892
      %v2903 = vld [vmem:[%s732] sm:$0x1]
      %v2905 = vlaneseq
      %v2906 = vshrl.u32 %v2905, 7
      %v2907 = vsub.s32 0, %v2906
      %v2908 = vrot.slane %v2903, %v2907
      %v2910 = vadd.f32 %v2895, %v2908
      %v2911 = vadd.f32 %v2896, %v2908
      %v2912 = vadd.f32 %v2897, %v2908
      %v2913 = vadd.f32 %v2898, %v2908
      %v2914 = vadd.f32 %v2899, %v2908
      %v2915 = vadd.f32 %v2900, %v2908
      %v2916 = vadd.f32 %v2901, %v2908
      %v2917 = vadd.f32 %v2902, %v2908
      %v2918 = vadd.f32 %v2910, %v934
      %v2919 = vadd.f32 %v2911, %v935
      %v2920 = vadd.f32 %v2912, %v936
      %v2921 = vadd.f32 %v2913, %v937
      %v2922 = vadd.f32 %v2914, %v938
      %v2923 = vadd.f32 %v2915, %v939
      %v2924 = vadd.f32 %v2916, %v940
      %v2925 = vadd.f32 %v2917, %v941
      %v2926 = vld [vmem:[%s735] sm:$0x1]
      %v2927 = vld [vmem:[%s738] sm:$0x1]
      %v2928 = vmul.f32 %v2918, %v766
      %v2929 = vmul.f32 %v2919, %v766
      %v2930 = vmul.f32 %v2920, %v766
      %v2931 = vmul.f32 %v2921, %v766
      %v2932 = vmul.f32 %v2922, %v766
      %v2933 = vmul.f32 %v2923, %v766
      %v2934 = vmul.f32 %v2924, %v766
      %v2935 = vmul.f32 %v2925, %v766
      %2936 = vadd.xlane.f32.xlu0 %v2928
      %v2937 = vpop.xlane.xlu0 %2936
      %2938 = vadd.xlane.f32.xlu0 %v2929
      %v2939 = vpop.xlane.xlu0 %2938
      %2940 = vadd.xlane.f32.xlu0 %v2930
      %v2941 = vpop.xlane.xlu0 %2940
      %2942 = vadd.xlane.f32.xlu0 %v2931
      %v2943 = vpop.xlane.xlu0 %2942
      %2944 = vadd.xlane.f32.xlu0 %v2932
      %v2945 = vpop.xlane.xlu0 %2944
      %2946 = vadd.xlane.f32.xlu0 %v2933
      %v2947 = vpop.xlane.xlu0 %2946
      %2948 = vadd.xlane.f32.xlu0 %v2934
      %v2949 = vpop.xlane.xlu0 %2948
      %2950 = vadd.xlane.f32.xlu0 %v2935
      %v2951 = vpop.xlane.xlu0 %2950
      %v2952 = vmul.f32 %v2937, 0.020833334
      %v2953 = vmul.f32 %v2939, 0.020833334
      %v2954 = vmul.f32 %v2941, 0.020833334
      %v2955 = vmul.f32 %v2943, 0.020833334
      %v2956 = vmul.f32 %v2945, 0.020833334
      %v2957 = vmul.f32 %v2947, 0.020833334
      %v2958 = vmul.f32 %v2949, 0.020833334
      %v2959 = vmul.f32 %v2951, 0.020833334
      %v2960 = vsub.f32 %v2918, %v2952
      %v2961 = vsub.f32 %v2919, %v2953
      %v2962 = vsub.f32 %v2920, %v2954
      %v2963 = vsub.f32 %v2921, %v2955
      %v2964 = vsub.f32 %v2922, %v2956
      %v2965 = vsub.f32 %v2923, %v2957
      %v2966 = vsub.f32 %v2924, %v2958
      %v2967 = vsub.f32 %v2925, %v2959
      %v2968 = vmul.f32 %v2960, %v766
      %v2969 = vmul.f32 %v2961, %v766
      %v2970 = vmul.f32 %v2962, %v766
      %v2971 = vmul.f32 %v2963, %v766
      %v2972 = vmul.f32 %v2964, %v766
      %v2973 = vmul.f32 %v2965, %v766
      %v2974 = vmul.f32 %v2966, %v766
      %v2975 = vmul.f32 %v2967, %v766
      %v2976 = vmul.f32 %v2968, %v2968
      %v2977 = vmul.f32 %v2969, %v2969
      %v2978 = vmul.f32 %v2970, %v2970
      %v2979 = vmul.f32 %v2971, %v2971
      %v2980 = vmul.f32 %v2972, %v2972
      %v2981 = vmul.f32 %v2973, %v2973
      %v2982 = vmul.f32 %v2974, %v2974
      %v2983 = vmul.f32 %v2975, %v2975
      %2984 = vadd.xlane.f32.xlu0 %v2976
      %v2985 = vpop.xlane.xlu0 %2984
      %2986 = vadd.xlane.f32.xlu0 %v2977
      %v2987 = vpop.xlane.xlu0 %2986
      %2988 = vadd.xlane.f32.xlu0 %v2978
      %v2989 = vpop.xlane.xlu0 %2988
      %2990 = vadd.xlane.f32.xlu0 %v2979
      %v2991 = vpop.xlane.xlu0 %2990
      %2992 = vadd.xlane.f32.xlu0 %v2980
      %v2993 = vpop.xlane.xlu0 %2992
      %2994 = vadd.xlane.f32.xlu0 %v2981
      %v2995 = vpop.xlane.xlu0 %2994
      %2996 = vadd.xlane.f32.xlu0 %v2982
      %v2997 = vpop.xlane.xlu0 %2996
      %2998 = vadd.xlane.f32.xlu0 %v2983
      %v2999 = vpop.xlane.xlu0 %2998
      %v3000 = vmul.f32 %v2985, 0.020833334
      %v3001 = vmul.f32 %v2987, 0.020833334
      %v3002 = vmul.f32 %v2989, 0.020833334
      %v3003 = vmul.f32 %v2991, 0.020833334
      %v3004 = vmul.f32 %v2993, 0.020833334
      %v3005 = vmul.f32 %v2995, 0.020833334
      %v3006 = vmul.f32 %v2997, 0.020833334
      %v3007 = vmul.f32 %v2999, 0.020833334
      %v3008 = vadd.f32 %v3000, 1e-12
      %v3009 = vadd.f32 %v3001, 1e-12
      %v3010 = vadd.f32 %v3002, 1e-12
      %v3011 = vadd.f32 %v3003, 1e-12
      %v3012 = vadd.f32 %v3004, 1e-12
      %v3013 = vadd.f32 %v3005, 1e-12
      %v3014 = vadd.f32 %v3006, 1e-12
      %v3015 = vadd.f32 %v3007, 1e-12
      %v3016 = vrsqrt.pop %v3008
      %v3017 = vrsqrt.pop %v3009
      %v3018 = vrsqrt.pop %v3010
      %v3019 = vrsqrt.pop %v3011
      %v3020 = vrsqrt.pop %v3012
      %v3021 = vrsqrt.pop %v3013
      %v3022 = vrsqrt.pop %v3014
      %v3023 = vrsqrt.pop %v3015
      %v3024 = vmul.f32 %v2968, %v3016
      %v3025 = vmul.f32 %v2969, %v3017
      %v3026 = vmul.f32 %v2970, %v3018
      %v3027 = vmul.f32 %v2971, %v3019
      %v3028 = vmul.f32 %v2972, %v3020
      %v3029 = vmul.f32 %v2973, %v3021
      %v3030 = vmul.f32 %v2974, %v3022
      %v3031 = vmul.f32 %v2975, %v3023
      %v3033 = vlaneseq
      %v3034 = vshrl.u32 %v3033, 7
      %v3035 = vsub.s32 0, %v3034
      %v3036 = vrot.slane %v2926, %v3035
      %v3038 = vmul.f32 %v3024, %v3036
      %v3039 = vmul.f32 %v3025, %v3036
      %v3040 = vmul.f32 %v3026, %v3036
      %v3041 = vmul.f32 %v3027, %v3036
      %v3042 = vmul.f32 %v3028, %v3036
      %v3043 = vmul.f32 %v3029, %v3036
      %v3044 = vmul.f32 %v3030, %v3036
      %v3045 = vmul.f32 %v3031, %v3036
      %v3047 = vlaneseq
      %v3048 = vshrl.u32 %v3047, 7
      %v3049 = vsub.s32 0, %v3048
      %v3050 = vrot.slane %v2927, %v3049
      %v3052 = vadd.f32 %v3038, %v3050
      %v3053 = vadd.f32 %v3039, %v3050
      %v3054 = vadd.f32 %v3040, %v3050
      %v3055 = vadd.f32 %v3041, %v3050
      %v3056 = vadd.f32 %v3042, %v3050
      %v3057 = vadd.f32 %v3043, %v3050
      %v3058 = vadd.f32 %v3044, %v3050
      %v3059 = vadd.f32 %v3045, %v3050
      %v3060 = vpack.c.bf16 %v3053, %v3052
      %v3061 = vpack.c.bf16 %v3055, %v3054
      %v3062 = vpack.c.bf16 %v3057, %v3056
      %v3063 = vpack.c.bf16 %v3059, %v3058
      %v3064 = vld [vmem:[%s743] sm:$0xf]
      %v3065 = vld [vmem:[%s743 + $0x4] sm:$0xf]
      %v3066 = vld [vmem:[%s743 + $0x8] sm:$0xf]
      %v3067 = vld [vmem:[%s743 + $0xc] sm:$0xf]
      %v3068 = vld [vmem:[%s743 + $0x10] sm:$0xf]
      %v3069 = vld [vmem:[%s743 + $0x14] sm:$0xf]
      %v3070 = vld [vmem:[%s743 + $0x18] sm:$0xf]
      %v3071 = vld [vmem:[%s743 + $0x1c] sm:$0xf]
      %v3072 = vld [vmem:[%s743 + $0x20] sm:$0xf]
      %v3073 = vld [vmem:[%s743 + $0x24] sm:$0xf]
      %v3074 = vld [vmem:[%s743 + $0x28] sm:$0xf]
      %v3075 = vld [vmem:[%s743 + $0x2c] sm:$0xf]
      %v3076 = vld [vmem:[%s743 + $0x30] sm:$0xf]
      %v3077 = vld [vmem:[%s743 + $0x34] sm:$0xf]
      %v3078 = vld [vmem:[%s743 + $0x38] sm:$0xf]
      %v3079 = vld [vmem:[%s743 + $0x3c] sm:$0xf]
      %v3080 = vld [vmem:[%s746] sm:$0x1]
      %v3082 = vlaneseq
      %v3083 = vshrl.u32 %v3082, 7
      %v3084 = vsub.s32 0, %v3083
      %v3085 = vrot.slane %v3080, %v3084
      %v3103 = vunpack.c.l.b16 %v3064
      %v3104 = vunpack.c.l.b16 %v3065
      %v3105 = vunpack.c.l.b16 %v3066
      %v3106 = vunpack.c.l.b16 %v3067
      %v3107 = vunpack.c.l.b16 %v3068
      %v3108 = vunpack.c.l.b16 %v3069
      %v3109 = vunpack.c.l.b16 %v3070
      %v3110 = vunpack.c.l.b16 %v3071
      %v3111 = vunpack.c.l.b16 %v3072
      %v3112 = vunpack.c.l.b16 %v3073
      %v3113 = vunpack.c.l.b16 %v3074
      %v3114 = vunpack.c.l.b16 %v3075
      %v3115 = vunpack.c.l.b16 %v3076
      %v3116 = vunpack.c.l.b16 %v3077
      %v3117 = vunpack.c.l.b16 %v3078
      %v3118 = vunpack.c.l.b16 %v3079
      %v3119 = vpack.c.b16 %v3104, %v3103
      %v3120 = vpack.c.b16 %v3106, %v3105
      %v3121 = vpack.c.b16 %v3108, %v3107
      %v3122 = vpack.c.b16 %v3110, %v3109
      %v3123 = vpack.c.b16 %v3112, %v3111
      %v3124 = vpack.c.b16 %v3114, %v3113
      %v3125 = vpack.c.b16 %v3116, %v3115
      %v3126 = vpack.c.b16 %v3118, %v3117
      %3135 = vmatprep.subr.bf16.mxu0 0
      %3136 = vmatpush1.bf16.msra.mxu0 %v3126
      %3137 = vmatprep.subr.bf16.mxu0 0
      %3138 = vmatpush1.bf16.msra.mxu0 %v3125
      %3139 = vmatprep.subr.bf16.mxu0 0
      %3140 = vmatpush1.bf16.msra.mxu0 %v3124
      %3141 = vmatprep.subr.bf16.mxu0 0
      %3142 = vmatpush1.bf16.msra.mxu0 %v3123
      %3143 = vmatprep.subr.bf16.mxu0 0
      %3144 = vmatpush1.bf16.msra.mxu0 %v3122
      %3145 = vmatprep.subr.bf16.mxu0 0
      %3146 = vmatpush1.bf16.msra.mxu0 %v3121
      %3147 = vmatprep.subr.bf16.mxu0 0
      %3148 = vmatpush1.bf16.msra.mxu0 %v3120
      %3149 = vmatprep.subr.bf16.mxu0 0
      %3150 = vmatpush1.bf16.msra.mxu0 %v3119
      %3151 = vmatprep.subr.bf16.mxu0 0
      %3152 = vmatpush2.bf16.msra.mxu0 0
      %3153 = vmatprep.subr.bf16.mxu0 0
      %3154 = vmatpush2.bf16.msra.mxu0 0
      %3155 = vmatprep.subr.bf16.mxu0 0
      %3156 = vmatpush2.bf16.msra.mxu0 0
      %3157 = vmatprep.subr.bf16.mxu0 0
      %3158 = vmatpush2.bf16.msra.mxu0 0
      %3159 = vmatprep.subr.bf16.mxu0 0
      %3160 = vmatpush2.bf16.msra.mxu0 0
      %3161 = vmatprep.subr.bf16.mxu0 0
      %3162 = vmatpush2.bf16.msra.mxu0 0
      %3163 = vmatprep.subr.bf16.mxu0 0
      %3164 = vmatpush2.bf16.msra.mxu0 0
      %3165 = vmatprep.subr.bf16.mxu0 0
      %3166 = vmatpush2.bf16.msra.mxu0 0
      %3167 = vmatprep.mubr.bf16.mxu0 0
      %3168 = vmatmul.mubr.bf16.gmra.mxu0 %v3060
      %v3169 = vpop.f32.mrf.mxu0
      %v3170 = vadd.f32 %v3085, %v3169
      %v3171 = vpop.f32.mrf.mxu0
      %v3172 = vpop.f32.mrf.mxu0
      %v3173 = vadd.f32 %v3085, %v3172
      %v3174 = vpop.f32.mrf.mxu0
      %3175 = vmatprep.mubr.bf16.mxu0 0
      %3176 = vmatmul.mubr.bf16.gmra.mxu0 %v3061
      %v3177 = vpop.f32.mrf.mxu0
      %v3178 = vadd.f32 %v3085, %v3177
      %v3179 = vpop.f32.mrf.mxu0
      %v3180 = vpop.f32.mrf.mxu0
      %v3181 = vadd.f32 %v3085, %v3180
      %v3182 = vpop.f32.mrf.mxu0
      %3183 = vmatprep.mubr.bf16.mxu0 0
      %3184 = vmatmul.mubr.bf16.gmra.mxu0 %v3062
      %v3185 = vpop.f32.mrf.mxu0
      %v3186 = vadd.f32 %v3085, %v3185
      %v3187 = vpop.f32.mrf.mxu0
      %v3188 = vpop.f32.mrf.mxu0
      %v3189 = vadd.f32 %v3085, %v3188
      %v3190 = vpop.f32.mrf.mxu0
      %3191 = vmatprep.mubr.bf16.mxu0 0
      %3192 = vmatmul.mubr.bf16.gmra.mxu0 %v3063
      %v3193 = vpop.f32.mrf.mxu0
      %v3194 = vadd.f32 %v3085, %v3193
      %v3195 = vpop.f32.mrf.mxu0
      %v3196 = vpop.f32.mrf.mxu0
      %v3197 = vadd.f32 %v3085, %v3196
      %v3198 = vpop.f32.mrf.mxu0
      %3199 = vdwg.mxu0
      %v3200 = vmul.f32 %v3170, 0.5
      %v3201 = vmul.f32 %v3173, 0.5
      %v3202 = vmul.f32 %v3178, 0.5
      %v3203 = vmul.f32 %v3181, 0.5
      %v3204 = vmul.f32 %v3186, 0.5
      %v3205 = vmul.f32 %v3189, 0.5
      %v3206 = vmul.f32 %v3194, 0.5
      %v3207 = vmul.f32 %v3197, 0.5
      %v3208 = vmul.f32 %v3170, 0.044715
      %v3209 = vmul.f32 %v3173, 0.044715
      %v3210 = vmul.f32 %v3178, 0.044715
      %v3211 = vmul.f32 %v3181, 0.044715
      %v3212 = vmul.f32 %v3186, 0.044715
      %v3213 = vmul.f32 %v3189, 0.044715
      %v3214 = vmul.f32 %v3194, 0.044715
      %v3215 = vmul.f32 %v3197, 0.044715
      %v3216 = vmul.f32 %v3208, %v3170
      %v3217 = vmul.f32 %v3209, %v3173
      %v3218 = vmul.f32 %v3210, %v3178
      %v3219 = vmul.f32 %v3211, %v3181
      %v3220 = vmul.f32 %v3212, %v3186
      %v3221 = vmul.f32 %v3213, %v3189
      %v3222 = vmul.f32 %v3214, %v3194
      %v3223 = vmul.f32 %v3215, %v3197
      %v3224 = vmul.f32 %v3216, %v3170
      %v3225 = vmul.f32 %v3217, %v3173
      %v3226 = vmul.f32 %v3218, %v3178
      %v3227 = vmul.f32 %v3219, %v3181
      %v3228 = vmul.f32 %v3220, %v3186
      %v3229 = vmul.f32 %v3221, %v3189
      %v3230 = vmul.f32 %v3222, %v3194
      %v3231 = vmul.f32 %v3223, %v3197
      %v3232 = vadd.f32 %v3170, %v3224
      %v3233 = vadd.f32 %v3173, %v3225
      %v3234 = vadd.f32 %v3178, %v3226
      %v3235 = vadd.f32 %v3181, %v3227
      %v3236 = vadd.f32 %v3186, %v3228
      %v3237 = vadd.f32 %v3189, %v3229
      %v3238 = vadd.f32 %v3194, %v3230
      %v3239 = vadd.f32 %v3197, %v3231
      %v3240 = vmul.f32 %v3232, 0.7978846
      %v3241 = vmul.f32 %v3233, 0.7978846
      %v3242 = vmul.f32 %v3234, 0.7978846
      %v3243 = vmul.f32 %v3235, 0.7978846
      %v3244 = vmul.f32 %v3236, 0.7978846
      %v3245 = vmul.f32 %v3237, 0.7978846
      %v3246 = vmul.f32 %v3238, 0.7978846
      %v3247 = vmul.f32 %v3239, 0.7978846
      %v3248 = vtanh.pop %v3240
      %v3249 = vtanh.pop %v3241
      %v3250 = vtanh.pop %v3242
      %v3251 = vtanh.pop %v3243
      %v3252 = vtanh.pop %v3244
      %v3253 = vtanh.pop %v3245
      %v3254 = vtanh.pop %v3246
      %v3255 = vtanh.pop %v3247
      %v3256 = vadd.f32 %v3248, 1.0
      %v3257 = vadd.f32 %v3249, 1.0
      %v3258 = vadd.f32 %v3250, 1.0
      %v3259 = vadd.f32 %v3251, 1.0
      %v3260 = vadd.f32 %v3252, 1.0
      %v3261 = vadd.f32 %v3253, 1.0
      %v3262 = vadd.f32 %v3254, 1.0
      %v3263 = vadd.f32 %v3255, 1.0
      %v3264 = vmul.f32 %v3200, %v3256
      %v3265 = vmul.f32 %v3201, %v3257
      %v3266 = vmul.f32 %v3202, %v3258
      %v3267 = vmul.f32 %v3203, %v3259
      %v3268 = vmul.f32 %v3204, %v3260
      %v3269 = vmul.f32 %v3205, %v3261
      %v3270 = vmul.f32 %v3206, %v3262
      %v3271 = vmul.f32 %v3207, %v3263
      %v3272 = vpack.c.bf16 %v3265, %v3264
      %v3273 = vpack.c.bf16 %v3267, %v3266
      %v3274 = vpack.c.bf16 %v3269, %v3268
      %v3275 = vpack.c.bf16 %v3271, %v3270
      %v3276 = vld [vmem:[%s751] sm:$0xf]
      %v3277 = vld [vmem:[%s751 + $0x4] sm:$0xf]
      %v3278 = vld [vmem:[%s751 + $0x8] sm:$0xf]
      %v3279 = vld [vmem:[%s751 + $0xc] sm:$0xf]
      %v3280 = vld [vmem:[%s751 + $0x10] sm:$0xf]
      %v3281 = vld [vmem:[%s751 + $0x14] sm:$0xf]
      %v3282 = vld [vmem:[%s751 + $0x18] sm:$0xf]
      %v3283 = vld [vmem:[%s751 + $0x1c] sm:$0xf]
      %v3284 = vld [vmem:[%s751 + $0x20] sm:$0xf]
      %v3285 = vld [vmem:[%s751 + $0x24] sm:$0xf]
      %v3286 = vld [vmem:[%s751 + $0x28] sm:$0xf]
      %v3287 = vld [vmem:[%s751 + $0x2c] sm:$0xf]
      %v3288 = vld [vmem:[%s751 + $0x30] sm:$0xf]
      %v3289 = vld [vmem:[%s751 + $0x34] sm:$0xf]
      %v3290 = vld [vmem:[%s751 + $0x38] sm:$0xf]
      %v3291 = vld [vmem:[%s751 + $0x3c] sm:$0xf]
      %v3292 = vld [vmem:[%s754] sm:$0x1]
      %v3294 = vlaneseq
      %v3295 = vshrl.u32 %v3294, 7
      %v3296 = vsub.s32 0, %v3295
      %v3297 = vrot.slane %v3292, %v3296
      %v3315 = vunpack.c.l.b16 %v3276
      %v3316 = vunpack.c.l.b16 %v3277
      %v3317 = vunpack.c.l.b16 %v3278
      %v3318 = vunpack.c.l.b16 %v3279
      %v3319 = vunpack.c.l.b16 %v3280
      %v3320 = vunpack.c.l.b16 %v3281
      %v3321 = vunpack.c.l.b16 %v3282
      %v3322 = vunpack.c.l.b16 %v3283
      %v3323 = vunpack.c.l.b16 %v3284
      %v3324 = vunpack.c.l.b16 %v3285
      %v3325 = vunpack.c.l.b16 %v3286
      %v3326 = vunpack.c.l.b16 %v3287
      %v3327 = vunpack.c.l.b16 %v3288
      %v3328 = vunpack.c.l.b16 %v3289
      %v3329 = vunpack.c.l.b16 %v3290
      %v3330 = vunpack.c.l.b16 %v3291
      %v3331 = vpack.c.b16 %v3316, %v3315
      %v3332 = vpack.c.b16 %v3318, %v3317
      %v3333 = vpack.c.b16 %v3320, %v3319
      %v3334 = vpack.c.b16 %v3322, %v3321
      %v3335 = vpack.c.b16 %v3324, %v3323
      %v3336 = vpack.c.b16 %v3326, %v3325
      %v3337 = vpack.c.b16 %v3328, %v3327
      %v3338 = vpack.c.b16 %v3330, %v3329
      %3347 = vmatprep.subr.bf16.mxu0 0
      %3348 = vmatpush1.bf16.msra.mxu0 %v3338
      %3349 = vmatprep.subr.bf16.mxu0 0
      %3350 = vmatpush1.bf16.msra.mxu0 %v3337
      %3351 = vmatprep.subr.bf16.mxu0 0
      %3352 = vmatpush1.bf16.msra.mxu0 %v3336
      %3353 = vmatprep.subr.bf16.mxu0 0
      %3354 = vmatpush1.bf16.msra.mxu0 %v3335
      %3355 = vmatprep.subr.bf16.mxu0 0
      %3356 = vmatpush1.bf16.msra.mxu0 %v3334
      %3357 = vmatprep.subr.bf16.mxu0 0
      %3358 = vmatpush1.bf16.msra.mxu0 %v3333
      %3359 = vmatprep.subr.bf16.mxu0 0
      %3360 = vmatpush1.bf16.msra.mxu0 %v3332
      %3361 = vmatprep.subr.bf16.mxu0 0
      %3362 = vmatpush1.bf16.msra.mxu0 %v3331
      %3363 = vmatprep.subr.bf16.mxu0 0
      %3364 = vmatpush2.bf16.msra.mxu0 0
      %3365 = vmatprep.subr.bf16.mxu0 0
      %3366 = vmatpush2.bf16.msra.mxu0 0
      %3367 = vmatprep.subr.bf16.mxu0 0
      %3368 = vmatpush2.bf16.msra.mxu0 0
      %3369 = vmatprep.subr.bf16.mxu0 0
      %3370 = vmatpush2.bf16.msra.mxu0 0
      %3371 = vmatprep.subr.bf16.mxu0 0
      %3372 = vmatpush2.bf16.msra.mxu0 0
      %3373 = vmatprep.subr.bf16.mxu0 0
      %3374 = vmatpush2.bf16.msra.mxu0 0
      %3375 = vmatprep.subr.bf16.mxu0 0
      %3376 = vmatpush2.bf16.msra.mxu0 0
      %3377 = vmatprep.subr.bf16.mxu0 0
      %3378 = vmatpush2.bf16.msra.mxu0 0
      %3379 = vmatprep.mubr.bf16.mxu0 0
      %3380 = vmatmul.mubr.bf16.gmra.mxu0 %v3272
      %v3381 = vpop.f32.mrf.mxu0
      %v3382 = vadd.f32 %v3297, %v3381
      %v3383 = vpop.f32.mrf.mxu0
      %v3384 = vpop.f32.mrf.mxu0
      %v3385 = vadd.f32 %v3297, %v3384
      %v3386 = vpop.f32.mrf.mxu0
      %3387 = vmatprep.mubr.bf16.mxu0 0
      %3388 = vmatmul.mubr.bf16.gmra.mxu0 %v3273
      %v3389 = vpop.f32.mrf.mxu0
      %v3390 = vadd.f32 %v3297, %v3389
      %v3391 = vpop.f32.mrf.mxu0
      %v3392 = vpop.f32.mrf.mxu0
      %v3393 = vadd.f32 %v3297, %v3392
      %v3394 = vpop.f32.mrf.mxu0
      %3395 = vmatprep.mubr.bf16.mxu0 0
      %3396 = vmatmul.mubr.bf16.gmra.mxu0 %v3274
      %v3397 = vpop.f32.mrf.mxu0
      %v3398 = vadd.f32 %v3297, %v3397
      %v3399 = vpop.f32.mrf.mxu0
      %v3400 = vpop.f32.mrf.mxu0
      %v3401 = vadd.f32 %v3297, %v3400
      %v3402 = vpop.f32.mrf.mxu0
      %3403 = vmatprep.mubr.bf16.mxu0 0
      %3404 = vmatmul.mubr.bf16.gmra.mxu0 %v3275
      %v3405 = vpop.f32.mrf.mxu0
      %v3406 = vadd.f32 %v3297, %v3405
      %v3407 = vpop.f32.mrf.mxu0
      %v3408 = vpop.f32.mrf.mxu0
      %v3409 = vadd.f32 %v3297, %v3408
      %v3410 = vpop.f32.mrf.mxu0
      %3411 = vdwg.mxu0
      %v3412 = vadd.f32 %v3382, %v3052
      %v3413 = vadd.f32 %v3385, %v3053
      %v3414 = vadd.f32 %v3390, %v3054
      %v3415 = vadd.f32 %v3393, %v3055
      %v3416 = vadd.f32 %v3398, %v3056
      %v3417 = vadd.f32 %v3401, %v3057
      %v3418 = vadd.f32 %v3406, %v3058
      %v3419 = vadd.f32 %v3409, %v3059
      %v3420 = vld [vmem:[%s757] sm:$0x1]
      %v3421 = vld [vmem:[%s760] sm:$0x1]
      %v3422 = vmul.f32 %v3412, %v766
      %v3423 = vmul.f32 %v3413, %v766
      %v3424 = vmul.f32 %v3414, %v766
      %v3425 = vmul.f32 %v3415, %v766
      %v3426 = vmul.f32 %v3416, %v766
      %v3427 = vmul.f32 %v3417, %v766
      %v3428 = vmul.f32 %v3418, %v766
      %v3429 = vmul.f32 %v3419, %v766
      %3430 = vadd.xlane.f32.xlu0 %v3422
      %v3431 = vpop.xlane.xlu0 %3430
      %3432 = vadd.xlane.f32.xlu0 %v3423
      %v3433 = vpop.xlane.xlu0 %3432
      %3434 = vadd.xlane.f32.xlu0 %v3424
      %v3435 = vpop.xlane.xlu0 %3434
      %3436 = vadd.xlane.f32.xlu0 %v3425
      %v3437 = vpop.xlane.xlu0 %3436
      %3438 = vadd.xlane.f32.xlu0 %v3426
      %v3439 = vpop.xlane.xlu0 %3438
      %3440 = vadd.xlane.f32.xlu0 %v3427
      %v3441 = vpop.xlane.xlu0 %3440
      %3442 = vadd.xlane.f32.xlu0 %v3428
      %v3443 = vpop.xlane.xlu0 %3442
      %3444 = vadd.xlane.f32.xlu0 %v3429
      %v3445 = vpop.xlane.xlu0 %3444
      %v3446 = vmul.f32 %v3431, 0.020833334
      %v3447 = vmul.f32 %v3433, 0.020833334
      %v3448 = vmul.f32 %v3435, 0.020833334
      %v3449 = vmul.f32 %v3437, 0.020833334
      %v3450 = vmul.f32 %v3439, 0.020833334
      %v3451 = vmul.f32 %v3441, 0.020833334
      %v3452 = vmul.f32 %v3443, 0.020833334
      %v3453 = vmul.f32 %v3445, 0.020833334
      %v3454 = vsub.f32 %v3412, %v3446
      %v3455 = vsub.f32 %v3413, %v3447
      %v3456 = vsub.f32 %v3414, %v3448
      %v3457 = vsub.f32 %v3415, %v3449
      %v3458 = vsub.f32 %v3416, %v3450
      %v3459 = vsub.f32 %v3417, %v3451
      %v3460 = vsub.f32 %v3418, %v3452
      %v3461 = vsub.f32 %v3419, %v3453
      %v3462 = vmul.f32 %v3454, %v766
      %v3463 = vmul.f32 %v3455, %v766
      %v3464 = vmul.f32 %v3456, %v766
      %v3465 = vmul.f32 %v3457, %v766
      %v3466 = vmul.f32 %v3458, %v766
      %v3467 = vmul.f32 %v3459, %v766
      %v3468 = vmul.f32 %v3460, %v766
      %v3469 = vmul.f32 %v3461, %v766
      %v3470 = vmul.f32 %v3462, %v3462
      %v3471 = vmul.f32 %v3463, %v3463
      %v3472 = vmul.f32 %v3464, %v3464
      %v3473 = vmul.f32 %v3465, %v3465
      %v3474 = vmul.f32 %v3466, %v3466
      %v3475 = vmul.f32 %v3467, %v3467
      %v3476 = vmul.f32 %v3468, %v3468
      %v3477 = vmul.f32 %v3469, %v3469
      %3478 = vadd.xlane.f32.xlu0 %v3470
      %v3479 = vpop.xlane.xlu0 %3478
      %3480 = vadd.xlane.f32.xlu0 %v3471
      %v3481 = vpop.xlane.xlu0 %3480
      %3482 = vadd.xlane.f32.xlu0 %v3472
      %v3483 = vpop.xlane.xlu0 %3482
      %3484 = vadd.xlane.f32.xlu0 %v3473
      %v3485 = vpop.xlane.xlu0 %3484
      %3486 = vadd.xlane.f32.xlu0 %v3474
      %v3487 = vpop.xlane.xlu0 %3486
      %3488 = vadd.xlane.f32.xlu0 %v3475
      %v3489 = vpop.xlane.xlu0 %3488
      %3490 = vadd.xlane.f32.xlu0 %v3476
      %v3491 = vpop.xlane.xlu0 %3490
      %3492 = vadd.xlane.f32.xlu0 %v3477
      %v3493 = vpop.xlane.xlu0 %3492
      %v3494 = vmul.f32 %v3479, 0.020833334
      %v3495 = vmul.f32 %v3481, 0.020833334
      %v3496 = vmul.f32 %v3483, 0.020833334
      %v3497 = vmul.f32 %v3485, 0.020833334
      %v3498 = vmul.f32 %v3487, 0.020833334
      %v3499 = vmul.f32 %v3489, 0.020833334
      %v3500 = vmul.f32 %v3491, 0.020833334
      %v3501 = vmul.f32 %v3493, 0.020833334
      %v3502 = vadd.f32 %v3494, 1e-12
      %v3503 = vadd.f32 %v3495, 1e-12
      %v3504 = vadd.f32 %v3496, 1e-12
      %v3505 = vadd.f32 %v3497, 1e-12
      %v3506 = vadd.f32 %v3498, 1e-12
      %v3507 = vadd.f32 %v3499, 1e-12
      %v3508 = vadd.f32 %v3500, 1e-12
      %v3509 = vadd.f32 %v3501, 1e-12
      %v3510 = vrsqrt.pop %v3502
      %v3511 = vrsqrt.pop %v3503
      %v3512 = vrsqrt.pop %v3504
      %v3513 = vrsqrt.pop %v3505
      %v3514 = vrsqrt.pop %v3506
      %v3515 = vrsqrt.pop %v3507
      %v3516 = vrsqrt.pop %v3508
      %v3517 = vrsqrt.pop %v3509
      %v3518 = vmul.f32 %v3462, %v3510
      %v3519 = vmul.f32 %v3463, %v3511
      %v3520 = vmul.f32 %v3464, %v3512
      %v3521 = vmul.f32 %v3465, %v3513
      %v3522 = vmul.f32 %v3466, %v3514
      %v3523 = vmul.f32 %v3467, %v3515
      %v3524 = vmul.f32 %v3468, %v3516
      %v3525 = vmul.f32 %v3469, %v3517
      %v3527 = vlaneseq
      %v3528 = vshrl.u32 %v3527, 7
      %v3529 = vsub.s32 0, %v3528
      %v3530 = vrot.slane %v3420, %v3529
      %v3532 = vmul.f32 %v3518, %v3530
      %v3533 = vmul.f32 %v3519, %v3530
      %v3534 = vmul.f32 %v3520, %v3530
      %v3535 = vmul.f32 %v3521, %v3530
      %v3536 = vmul.f32 %v3522, %v3530
      %v3537 = vmul.f32 %v3523, %v3530
      %v3538 = vmul.f32 %v3524, %v3530
      %v3539 = vmul.f32 %v3525, %v3530
      %v3541 = vlaneseq
      %v3542 = vshrl.u32 %v3541, 7
      %v3543 = vsub.s32 0, %v3542
      %v3544 = vrot.slane %v3421, %v3543
      %v3546 = vadd.f32 %v3532, %v3544
      %v3547 = vadd.f32 %v3533, %v3544
      %v3548 = vadd.f32 %v3534, %v3544
      %v3549 = vadd.f32 %v3535, %v3544
      %v3550 = vadd.f32 %v3536, %v3544
      %v3551 = vadd.f32 %v3537, %v3544
      %v3552 = vadd.f32 %v3538, %v3544
      %v3553 = vadd.f32 %v3539, %v3544
      %3554 = vst [vmem:[%s18] sm:$0xff] %v3546
      %3555 = vst [vmem:[%s18 + $0x8] sm:$0xff] %v3547
      %3556 = vst [vmem:[%s18 + $0x10] sm:$0xff] %v3548
      %3557 = vst [vmem:[%s18 + $0x18] sm:$0xff] %v3549
      %3558 = vst [vmem:[%s18 + $0x20] sm:$0xff] %v3550
      %3559 = vst [vmem:[%s18 + $0x28] sm:$0xff] %v3551
      %3560 = vst [vmem:[%s18 + $0x30] sm:$0xff] %v3552
      %3561 = vst [vmem:[%s18 + $0x38] sm:$0xff] %v3553
      %p3562 = scmp.eq.s32.totalorder %s31, 1
      // Predicated region
      $region101: #{layoutlmv2_forward.1} parent=91 // pred_check
        %p3563 = pneg %p3562
      $region102: #{layoutlmv2_forward.1} parent=91 // pred_check_branch
        %3565 = sbr.rel (%p3563) target = $region104
      $region103: #{layoutlmv2_forward.1} parent=91 // pred_region
        %v3566 = vpack.c.bf16 %v3550, %v3546
        %v3567 = vld [vmem:[%s16] sm:$0xf]
        %v3568 = vld [vmem:[%s16 + $0x4] sm:$0xf]
        %v3569 = vld [vmem:[%s16 + $0x8] sm:$0xf]
        %v3570 = vld [vmem:[%s16 + $0xc] sm:$0xf]
        %v3571 = vld [vmem:[%s16 + $0x10] sm:$0xf]
        %v3572 = vld [vmem:[%s16 + $0x14] sm:$0xf]
        %v3573 = vld [vmem:[%s16 + $0x18] sm:$0xf]
        %v3574 = vld [vmem:[%s16 + $0x1c] sm:$0xf]
        %v3575 = vld [vmem:[%s16 + $0x20] sm:$0xf]
        %v3576 = vld [vmem:[%s16 + $0x24] sm:$0xf]
        %v3577 = vld [vmem:[%s16 + $0x28] sm:$0xf]
        %v3578 = vld [vmem:[%s16 + $0x2c] sm:$0xf]
        %v3579 = vld [vmem:[%s16 + $0x30] sm:$0xf]
        %v3580 = vld [vmem:[%s16 + $0x34] sm:$0xf]
        %v3581 = vld [vmem:[%s16 + $0x38] sm:$0xf]
        %v3582 = vld [vmem:[%s16 + $0x3c] sm:$0xf]
        %v3583 = vld [vmem:[%s17] sm:$0x1]
        %v3585 = vlaneseq
        %v3586 = vshrl.u32 %v3585, 7
        %v3587 = vsub.s32 0, %v3586
        %v3588 = vrot.slane %v3583, %v3587
        %v3606 = vunpack.c.l.b16 %v3567
        %v3607 = vunpack.c.l.b16 %v3568
        %v3608 = vunpack.c.l.b16 %v3569
        %v3609 = vunpack.c.l.b16 %v3570
        %v3610 = vunpack.c.l.b16 %v3571
        %v3611 = vunpack.c.l.b16 %v3572
        %v3612 = vunpack.c.l.b16 %v3573
        %v3613 = vunpack.c.l.b16 %v3574
        %v3614 = vunpack.c.l.b16 %v3575
        %v3615 = vunpack.c.l.b16 %v3576
        %v3616 = vunpack.c.l.b16 %v3577
        %v3617 = vunpack.c.l.b16 %v3578
        %v3618 = vunpack.c.l.b16 %v3579
        %v3619 = vunpack.c.l.b16 %v3580
        %v3620 = vunpack.c.l.b16 %v3581
        %v3621 = vunpack.c.l.b16 %v3582
        %v3622 = vpack.c.b16 %v3607, %v3606
        %v3623 = vpack.c.b16 %v3609, %v3608
        %v3624 = vpack.c.b16 %v3611, %v3610
        %v3625 = vpack.c.b16 %v3613, %v3612
        %v3626 = vpack.c.b16 %v3615, %v3614
        %v3627 = vpack.c.b16 %v3617, %v3616
        %v3628 = vpack.c.b16 %v3619, %v3618
        %v3629 = vpack.c.b16 %v3621, %v3620
        %3638 = vmatprep.subr.bf16.mxu0 0
        %3639 = vmatpush1.bf16.msra.mxu0 %v3629
        %3640 = vmatprep.subr.bf16.mxu0 0
        %3641 = vmatpush1.bf16.msra.mxu0 %v3628
        %3642 = vmatprep.subr.bf16.mxu0 0
        %3643 = vmatpush1.bf16.msra.mxu0 %v3627
        %3644 = vmatprep.subr.bf16.mxu0 0
        %3645 = vmatpush1.bf16.msra.mxu0 %v3626
        %3646 = vmatprep.subr.bf16.mxu0 0
        %3647 = vmatpush1.bf16.msra.mxu0 %v3625
        %3648 = vmatprep.subr.bf16.mxu0 0
        %3649 = vmatpush1.bf16.msra.mxu0 %v3624
        %3650 = vmatprep.subr.bf16.mxu0 0
        %3651 = vmatpush1.bf16.msra.mxu0 %v3623
        %3652 = vmatprep.subr.bf16.mxu0 0
        %3653 = vmatpush1.bf16.msra.mxu0 %v3622
        %3654 = vmatprep.subr.bf16.mxu0 0
        %3655 = vmatpush2.bf16.msra.mxu0 0
        %3656 = vmatprep.subr.bf16.mxu0 0
        %3657 = vmatpush2.bf16.msra.mxu0 0
        %3658 = vmatprep.subr.bf16.mxu0 0
        %3659 = vmatpush2.bf16.msra.mxu0 0
        %3660 = vmatprep.subr.bf16.mxu0 0
        %3661 = vmatpush2.bf16.msra.mxu0 0
        %3662 = vmatprep.subr.bf16.mxu0 0
        %3663 = vmatpush2.bf16.msra.mxu0 0
        %3664 = vmatprep.subr.bf16.mxu0 0
        %3665 = vmatpush2.bf16.msra.mxu0 0
        %3666 = vmatprep.subr.bf16.mxu0 0
        %3667 = vmatpush2.bf16.msra.mxu0 0
        %3668 = vmatprep.subr.bf16.mxu0 0
        %3669 = vmatpush2.bf16.msra.mxu0 0
        %3670 = vmatprep.mubr.bf16.mxu0 0
        %3671 = vmatmul.mubr.bf16.gmra.mxu0 %v3566
        %v3672 = vpop.f32.mrf.mxu0
        %v3673 = vadd.f32 %v3588, %v3672
        %v3674 = vpop.f32.mrf.mxu0
        %v3675 = vpop.f32.mrf.mxu0
        %v3676 = vadd.f32 %v3588, %v3675
        %v3677 = vpop.f32.mrf.mxu0
        %3678 = vdwg.mxu0
        %v3679 = vtanh.pop %v3673
        %v3680 = vtanh.pop %v3676
        %3681 = vst [vmem:[%s19] sm:$0xff] %v3679
        %3682 = vst [vmem:[%s19 + $0x8] sm:$0xff] %v3680
      $region104: #{layoutlmv2_forward.1} parent=91 // pred_fallthru
        _
      // Predicated region
      $region105: #{layoutlmv2_forward.1} parent=91 // pred_check
        %p3683 = pneg %p482
      $region106: #{layoutlmv2_forward.1} parent=91 // pred_check_branch
        %3685 = sbr.rel (%p3683) target = $region108
      $region107: #{layoutlmv2_forward.1} parent=91 // pred_region
        _
      $region108: #{layoutlmv2_forward.1} parent=91 // pred_fallthru
        _
      // Predicated region
      $region109: #{layoutlmv2_forward.1} parent=91 // pred_check
        %p3686 = pneg %p503
      $region110: #{layoutlmv2_forward.1} parent=91 // pred_check_branch
        %3688 = sbr.rel (%p3686) target = $region112
      $region111: #{layoutlmv2_forward.1} parent=91 // pred_region
        _
      $region112: #{layoutlmv2_forward.1} parent=91 // pred_fallthru
        _
      // Predicated region
      $region113: #{layoutlmv2_forward.1} parent=91 // pred_check
        %p3689 = pneg %p482
      $region114: #{layoutlmv2_forward.1} parent=91 // pred_check_branch
        %3691 = sbr.rel (%p3689) target = $region116
      $region115: #{layoutlmv2_forward.1} parent=91 // pred_region
        _
      $region116: #{layoutlmv2_forward.1} parent=91 // pred_fallthru
        _
      // Predicated region
      $region117: #{layoutlmv2_forward.1} parent=91 // pred_check
        %p3692 = pneg %p503
      $region118: #{layoutlmv2_forward.1} parent=91 // pred_check_branch
        %3694 = sbr.rel (%p3692) target = $region120
      $region119: #{layoutlmv2_forward.1} parent=91 // pred_region
        _
      $region120: #{layoutlmv2_forward.1} parent=91 // pred_fallthru
        _
    $region92: #{layoutlmv2_forward.1} parent=5 // pred_fallthru
      _
    %p3695 = scmp.le.s32.totalorder 2, %s26
    // Predicated region
    $region121: #{layoutlmv2_forward.1} parent=5 // pred_check
      %p3696 = pneg %p3695
    $region122: #{layoutlmv2_forward.1} parent=5 // pred_check_branch
      %3698 = sbr.rel (%p3696) target = $region124
    $region123: #{layoutlmv2_forward.1} parent=5 // pred_region
      %s3699 = ssub.s32 %s26, 2
    $region124: #{layoutlmv2_forward.1} parent=5 // pred_fallthru
      _
  $region6: #{layoutlmv2_forward.1} parent=0 // loop_footer
    %s30 = sadd.s32 1, %s26
  $region7: #{layoutlmv2_forward.1} parent=0 // loop_footer_branch
    %25 = sbr.rel target = $region3
  $region8: #{layoutlmv2_forward.1} parent=0 // loop_exit
    _

</llo_original>
